<compile_context>
chip_gen: v6e
topology: v6e:2x2x1
jax: 0.10.0
libtpu: 0.0.40
codegen_flags: <defaults>
</compile_context>

<pallas_src>
import math

import jax
import jax.numpy as jnp
from jax.experimental import pallas as pl
from jax.experimental.pallas import tpu as pltpu

# ----------------------------- config ---------------------------------------
SSL_DIM = 1024          # SSLModel.out_dim
EMB = 128               # args.emb_size / Config.hidden_size
NUM_HEADS = 4           # Config.num_heads
HEAD_DIM = EMB // NUM_HEADS
MLP_DIM = 512           # Config.mlp_dim
NUM_LAYERS = 2          # Config.num_layers = 6; 2 layers kept for the small demo
LN_EPS = 1e-6
BN_EPS = 1e-5
SELU_ALPHA = 1.6732632423543772848170429916717
SELU_LAMBDA = 1.0507009873554804934193349852946


def _round_up(x, m):
    return ((x + m - 1) // m) * m


def _ln(x, g, b):
    mu = jnp.mean(x, axis=-1, keepdims=True)
    var = jnp.mean((x - mu) ** 2, axis=-1, keepdims=True)
    return (x - mu) * jax.lax.rsqrt(var + LN_EPS) * g + b


# ----------------------------- kernels --------------------------------------
def _ll_bn_selu_kernel(x_ref, w_ref, b_ref, o_ref):
    # Linear(1024 -> EMB) in bf16 with f32 accumulation, fused with
    # BatchNorm2d(1) (eval mode, default params -> 1/sqrt(1+eps) scale) and SELU.
    y = jnp.dot(x_ref[...], w_ref[...], preferred_element_type=jnp.float32)
    y = y + b_ref[...]
    y = y * (1.0 / math.sqrt(1.0 + BN_EPS))
    o_ref[...] = (SELU_LAMBDA *
                  jnp.where(y > 0, y, SELU_ALPHA * (jnp.exp(y) - 1.0))
                  ).astype(o_ref.dtype)


def _encoder_stack_kernel(x_ref,
                          ln1_g, ln1_b, wqkv_ref, bqkv_ref, wo_ref, bo_ref,
                          ln2_g, ln2_b, w1_ref, b1_ref, w2_ref, b2_ref,
                          lnf_g, lnf_b,
                          cls_ref, mean_ref):
    # Full pre-LN transformer encoder stack + final LN + CLS/mean pooling for
    # one batch element.  All layer weights are resident in VMEM; the (S, D)
    # activation never leaves VMEM between layers.
    x = x_ref[0].astype(jnp.float32)                       # (S, D)
    scale = 1.0 / math.sqrt(HEAD_DIM)

    for l in range(NUM_LAYERS):                            # static unroll
        # --- LN1 prologue + fused QKV projection (lane-dense (S, 3D) matmul) ---
        h = _ln(x, ln1_g[l], ln1_b[l])
        qkv = jnp.dot(h, wqkv_ref[l],
                      preferred_element_type=jnp.float32) + bqkv_ref[l]   # (S, 3D)

        # --- multi-head self-attention, all heads in-kernel ---
        outs = []
        for hh in range(NUM_HEADS):
            q = qkv[:, hh * HEAD_DIM:(hh + 1) * HEAD_DIM]
            k = qkv[:, EMB + hh * HEAD_DIM:EMB + (hh + 1) * HEAD_DIM]
            v = qkv[:, 2 * EMB + hh * HEAD_DIM:2 * EMB + (hh + 1) * HEAD_DIM]
            s = jax.lax.dot_general(q, k, (((1,), (1,)), ((), ())),
                                    preferred_element_type=jnp.float32) * scale
            s = s - jnp.max(s, axis=-1, keepdims=True)
            p = jnp.exp(s)
            p = p * pl.reciprocal(jnp.sum(p, axis=-1, keepdims=True), approx=True)
            outs.append(jnp.dot(p, v, preferred_element_type=jnp.float32))
        attn = jnp.concatenate(outs, axis=-1)              # (S, D)

        # Wo + residual (dropout = identity at inference)
        x = x + jnp.dot(attn, wo_ref[l],
                        preferred_element_type=jnp.float32) + bo_ref[l]

        # --- LN2 + MLP (GELU) + residual ---
        h2 = _ln(x, ln2_g[l], ln2_b[l])
        f = jax.nn.gelu(jnp.dot(h2, w1_ref[l],
                                preferred_element_type=jnp.float32) + b1_ref[l])
        x = x + jnp.dot(f, w2_ref[l],
                        preferred_element_type=jnp.float32) + b2_ref[l]

    # --- final LayerNorm + pooling: CLS token and mean of patch tokens ---
    y = _ln(x, lnf_g[...], lnf_b[...])
    cls = y[0:1, :]
    total = jnp.sum(y, axis=0, keepdims=True)
    cls_ref[0] = cls.astype(cls_ref.dtype)
    mean_ref[0] = ((total - cls) * (1.0 / (y.shape[0] - 1))).astype(mean_ref.dtype)


# ----------------------------- wrappers -------------------------------------
def pallas_ll_bn_selu(x, w, b):
    # x: (M, 1024) f32, w: (1024, EMB), b: (EMB,)
    M, K = x.shape
    N = w.shape[1]
    tile_m = min(256, _round_up(M, 8))
    M_pad = _round_up(M, tile_m)
    xb = x.astype(jnp.bfloat16)
    if M_pad != M:
        xb = jnp.pad(xb, ((0, M_pad - M), (0, 0)))
    out = pl.pallas_call(
        _ll_bn_selu_kernel,
        out_shape=jax.ShapeDtypeStruct((M_pad, N), jnp.float32),
        grid=(M_pad // tile_m,),
        in_specs=[pl.BlockSpec((tile_m, K), lambda i: (i, 0)),
                  pl.BlockSpec((K, N), lambda i: (0, 0)),
                  pl.BlockSpec((1, N), lambda i: (0, 0))],
        out_specs=pl.BlockSpec((tile_m, N), lambda i: (i, 0)),
        compiler_params=pltpu.CompilerParams(
            dimension_semantics=("parallel",)),
    )(xb, w.astype(jnp.bfloat16), b.reshape(1, N).astype(jnp.float32))
    return out[:M]


def pallas_encoder_pool(x, enc, lnf_g, lnf_b):
    # x: (B, S, D) f32 -> (cls: (B, D), mean-of-patch-tokens: (B, D))
    # One grid step per batch element (parallel across megacore).
    B, S, D = x.shape

    def cspec(a):
        nd = a.ndim
        return pl.BlockSpec(a.shape, lambda i, _n=nd: (0,) * _n)

    operands = [enc["ln1_g"], enc["ln1_b"], enc["wqkv"], enc["bqkv"],
                enc["wo"], enc["bo"], enc["ln2_g"], enc["ln2_b"],
                enc["w1"], enc["b1"], enc["w2"], enc["b2"],
                lnf_g.reshape(1, D), lnf_b.reshape(1, D)]

    cls, mean = pl.pallas_call(
        _encoder_stack_kernel,
        out_shape=(jax.ShapeDtypeStruct((B, 1, D), jnp.float32),
                   jax.ShapeDtypeStruct((B, 1, D), jnp.float32)),
        grid=(B,),
        in_specs=[pl.BlockSpec((1, S, D), lambda i: (i, 0, 0))]
                 + [cspec(a) for a in operands],
        out_specs=(pl.BlockSpec((1, 1, D), lambda i: (i, 0, 0)),
                   pl.BlockSpec((1, 1, D), lambda i: (i, 0, 0))),
        compiler_params=pltpu.CompilerParams(
            dimension_semantics=("parallel",)),
    )(x, *operands)
    return cls[:, 0, :], mean[:, 0, :]


# ----------------------------- model glue -----------------------------------
def sinusoidal_embedding(n_pos, dim):
    # Matches the torch reference: pe[p, i] = p / 10000**(2*(i//2)/dim),
    # sin on even columns, cos on odd columns.
    pos = jnp.arange(n_pos, dtype=jnp.float32)[:, None]
    idx = jnp.arange(dim, dtype=jnp.float32)[None, :]
    angle = pos / jnp.power(10000.0, 2.0 * jnp.floor(idx / 2.0) / dim)
    even = (jnp.arange(dim) % 2) == 0
    pe = jnp.where(even[None, :], jnp.sin(angle), jnp.cos(angle))
    return pe[None]  # (1, n_pos, dim)


def model_forward(params, x_ssl_feat):
    """x_ssl_feat: (B, T, 1024) -- output of SSLModel.extract_feat (see TODO)."""
    B, T, F = x_ssl_feat.shape
    D = EMB

    # LL + BatchNorm2d(1) + SELU (fused, M-tiled, bf16 matmul / f32 accumulate)
    h = pallas_ll_bn_selu(x_ssl_feat.reshape(B * T, F),
                          params["ll_w"], params["ll_b"]).reshape(B, T, D)

    # MyConformer: positional embedding + class token prepend (tiny, plain JAX)
    h = h + params["pos_emb"][:, :T, :]
    cls = jnp.broadcast_to(params["cls_token"][None, :, :], (B, 1, D))
    h = jnp.concatenate([cls, h], axis=1)       # (B, S, D), S = T + 1

    # IELTEncoder stand-in: whole encoder stack + final LN + pooling, one kernel
    x_cls, xc = pallas_encoder_pool(h, params["enc"],
                                    params["lnf_g"], params["lnf_b"])

    # head + assist logits: N=2 outputs -> plain JAX (lane-sparse in Pallas)
    complement_logits = xc @ params["head_w"] + params["head_b"]
    probability = jax.nn.softmax(complement_logits, axis=-1)
    assist_logit = probability * jnp.sum(params["head_w"], axis=0)  # head.weight.sum(-1)
    part_logits = x_cls @ params["head_w"] + params["head_b"] + assist_logit
    return part_logits


# ----------------------------- params ---------------------------------------
def init_params(key, max_pos=64):
    def dense(k, fan_in, fan_out):
        return 0.02 * jax.random.normal(k, (fan_in, fan_out), dtype=jnp.float32)

    keys = jax.random.split(key, 4 + NUM_LAYERS)
    params = {
        "ll_w": dense(keys[0], SSL_DIM, EMB),
        "ll_b": jnp.zeros((EMB,), jnp.float32),
        "pos_emb": sinusoidal_embedding(max_pos, EMB),
        "cls_token": jax.random.uniform(keys[1], (1, EMB), dtype=jnp.float32),
        "head_w": dense(keys[2], EMB, 2),
        "head_b": jnp.zeros((2,), jnp.float32),
        "lnf_g": jnp.ones((EMB,), jnp.float32),
        "lnf_b": jnp.zeros((EMB,), jnp.float32),
    }

    names = ["ln1_g", "ln1_b", "ln2_g", "ln2_b", "wqkv", "bqkv",
             "wo", "bo", "w1", "b1", "w2", "b2"]
    stacks = {n: [] for n in names}
    for li in range(NUM_LAYERS):
        lk = jax.random.split(keys[4 + li], 6)
        wq = dense(lk[0], EMB, EMB)
        wk = dense(lk[1], EMB, EMB)
        wv = dense(lk[2], EMB, EMB)
        stacks["ln1_g"].append(jnp.ones((1, EMB), jnp.float32))
        stacks["ln1_b"].append(jnp.zeros((1, EMB), jnp.float32))
        stacks["ln2_g"].append(jnp.ones((1, EMB), jnp.float32))
        stacks["ln2_b"].append(jnp.zeros((1, EMB), jnp.float32))
        stacks["wqkv"].append(jnp.concatenate([wq, wk, wv], axis=1))   # (D, 3D)
        stacks["bqkv"].append(jnp.zeros((1, 3 * EMB), jnp.float32))
        stacks["wo"].append(dense(lk[3], EMB, EMB))
        stacks["bo"].append(jnp.zeros((1, EMB), jnp.float32))
        stacks["w1"].append(dense(lk[4], EMB, MLP_DIM))
        stacks["b1"].append(jnp.zeros((1, MLP_DIM), jnp.float32))
        stacks["w2"].append(dense(lk[5], MLP_DIM, EMB))
        stacks["b2"].append(jnp.zeros((1, EMB), jnp.float32))
    params["enc"] = {n: jnp.stack(v, axis=0) for n, v in stacks.items()}
    return params


# ----------------------------- main ------------------------------------------
if __name__ == "__main__":
    key = jax.random.PRNGKey(0)
    k_in, k_par = jax.random.split(key)

    B, T = 2, 8
    # stand-in for SSLModel.extract_feat output (B, T, 1024)
    x_ssl_feat = jax.random.normal(k_in, (B, T, SSL_DIM), dtype=jnp.float32)
    params = init_params(k_par)

    part_logits = jax.jit(model_forward)(params, x_ssl_feat)
    part_logits = jax.block_until_ready(part_logits)

    assert part_logits.shape == (B, 2)
    assert bool(jnp.all(jnp.isfinite(part_logits)))
    print("KERNEL_OK")
</pallas_src>

<mosaic_0001>
module attributes {stable_mosaic.version = 11 : i64} {
  func.func @_ll_bn_selu_kernel(%arg0: i32, %arg1: memref<16x1024xbf16, #tpu.memory_space<vmem>>, %arg2: memref<1024x128xbf16, #tpu.memory_space<vmem>>, %arg3: memref<1x128xf32, #tpu.memory_space<vmem>>, %arg4: memref<16x128xf32, #tpu.memory_space<vmem>>) attributes {dimension_semantics = [#tpu.dimension_semantics<parallel>], iteration_bounds = array<i64: 1>, scalar_prefetch = 0 : i64, scratch_operands = 0 : i64, tpu.core_type = #tpu.core_type<tc>, window_params = [{transform_indices = @transform_0, window_bounds = array<i64: 16, 1024>}, {pipeline_mode = #tpu.pipeline_mode<synchronous>, transform_indices = @transform_1, window_bounds = array<i64: 1024, 128>}, {pipeline_mode = #tpu.pipeline_mode<synchronous>, transform_indices = @transform_2, window_bounds = array<i64: 1, 128>}, {transform_indices = @transform_3, window_bounds = array<i64: 16, 128>}]} {
    %c0 = arith.constant 0 : index
    %c0_0 = arith.constant 0 : index
    %0 = vector.load %arg1[%c0, %c0_0] : memref<16x1024xbf16, #tpu.memory_space<vmem>>, vector<16x1024xbf16>
    %c0_1 = arith.constant 0 : index
    %c0_2 = arith.constant 0 : index
    %1 = vector.load %arg2[%c0_1, %c0_2] : memref<1024x128xbf16, #tpu.memory_space<vmem>>, vector<1024x128xbf16>
    %cst = arith.constant dense<0.000000e+00> : vector<16x128xf32>
    %2 = tpu.matmul %0, %1, %cst {dimension_numbers = #tpu.dot_dimension_numbers<[1], [0], [0], [1], [0, 0, 1, 1], [], []>} : vector<16x1024xbf16>, vector<1024x128xbf16>, vector<16x128xf32> -> vector<16x128xf32>
    %c0_3 = arith.constant 0 : index
    %c0_4 = arith.constant 0 : index
    %3 = vector.load %arg3[%c0_3, %c0_4] : memref<1x128xf32, #tpu.memory_space<vmem>>, vector<1x128xf32>
    %4 = vector.broadcast %3 : vector<1x128xf32> to vector<16x128xf32>
    %5 = arith.addf %2, %4 : vector<16x128xf32>
    %cst_5 = arith.constant 0.999994993 : f32
    %6 = vector.broadcast %cst_5 : f32 to vector<16x128xf32>
    %7 = arith.mulf %5, %6 : vector<16x128xf32>
    %cst_6 = arith.constant 0.000000e+00 : f32
    %8 = vector.broadcast %cst_6 : f32 to vector<16x128xf32>
    %9 = arith.cmpf ogt, %7, %8 : vector<16x128xf32>
    %10 = math.exp %7 : vector<16x128xf32>
    %cst_7 = arith.constant 1.000000e+00 : f32
    %11 = vector.broadcast %cst_7 : f32 to vector<16x128xf32>
    %12 = arith.subf %10, %11 : vector<16x128xf32>
    %cst_8 = arith.constant 1.67326319 : f32
    %13 = vector.broadcast %cst_8 : f32 to vector<16x128xf32>
    %14 = arith.mulf %13, %12 : vector<16x128xf32>
    %15 = arith.select %9, %7, %14 : vector<16x128xi1>, vector<16x128xf32>
    %cst_9 = arith.constant 1.05070102 : f32
    %16 = vector.broadcast %cst_9 : f32 to vector<16x128xf32>
    %17 = arith.mulf %16, %15 : vector<16x128xf32>
    %c0_10 = arith.constant 0 : index
    %c0_11 = arith.constant 0 : index
    %18 = vector.load %arg4[%c0_10, %c0_11] : memref<16x128xf32, #tpu.memory_space<vmem>>, vector<16x128xf32>
    tpu.vector_store %arg4[%c0_10, %c0_11], %17 {strides = array<i32>} : memref<16x128xf32, #tpu.memory_space<vmem>>, vector<16x128xf32>,
    return
  }
  func.func @transform_0(%arg0: i32) -> (i32, i32) {
    %c0_i32 = arith.constant 0 : i32
    %c0_i32_0 = arith.constant 0 : i32
    return %arg0, %c0_i32 : i32, i32
  }
  func.func @transform_1(%arg0: i32) -> (i32, i32) {
    %c0_i32 = arith.constant 0 : i32
    %c0_i32_0 = arith.constant 0 : i32
    %c0_i32_1 = arith.constant 0 : i32
    return %c0_i32, %c0_i32_0 : i32, i32
  }
  func.func @transform_2(%arg0: i32) -> (i32, i32) {
    %c0_i32 = arith.constant 0 : i32
    %c0_i32_0 = arith.constant 0 : i32
    %c0_i32_1 = arith.constant 0 : i32
    return %c0_i32, %c0_i32_0 : i32, i32
  }
  func.func @transform_3(%arg0: i32) -> (i32, i32) {
    %c0_i32 = arith.constant 0 : i32
    %c0_i32_0 = arith.constant 0 : i32
    return %arg0, %c0_i32 : i32, i32
  }
}

module attributes {stable_mosaic.version = 11 : i64} {
  func.func @_encoder_stack_kernel(%arg0: i32, %arg1: memref<1x9x128xf32, #tpu.memory_space<vmem>>, %arg2: memref<2x1x128xf32, #tpu.memory_space<vmem>>, %arg3: memref<2x1x128xf32, #tpu.memory_space<vmem>>, %arg4: memref<2x128x384xf32, #tpu.memory_space<vmem>>, %arg5: memref<2x1x384xf32, #tpu.memory_space<vmem>>, %arg6: memref<2x128x128xf32, #tpu.memory_space<vmem>>, %arg7: memref<2x1x128xf32, #tpu.memory_space<vmem>>, %arg8: memref<2x1x128xf32, #tpu.memory_space<vmem>>, %arg9: memref<2x1x128xf32, #tpu.memory_space<vmem>>, %arg10: memref<2x128x512xf32, #tpu.memory_space<vmem>>, %arg11: memref<2x1x512xf32, #tpu.memory_space<vmem>>, %arg12: memref<2x512x128xf32, #tpu.memory_space<vmem>>, %arg13: memref<2x1x128xf32, #tpu.memory_space<vmem>>, %arg14: memref<1x128xf32, #tpu.memory_space<vmem>>, %arg15: memref<1x128xf32, #tpu.memory_space<vmem>>, %arg16: memref<1x1x128xf32, #tpu.memory_space<vmem>>, %arg17: memref<1x1x128xf32, #tpu.memory_space<vmem>>) attributes {dimension_semantics = [#tpu.dimension_semantics<parallel>], iteration_bounds = array<i64: 2>, scalar_prefetch = 0 : i64, scratch_operands = 0 : i64, tpu.core_type = #tpu.core_type<tc>, window_params = [{transform_indices = @transform_0, window_bounds = array<i64: 1, 9, 128>}, {pipeline_mode = #tpu.pipeline_mode<synchronous>, transform_indices = @transform_1, window_bounds = array<i64: 2, 1, 128>}, {pipeline_mode = #tpu.pipeline_mode<synchronous>, transform_indices = @transform_2, window_bounds = array<i64: 2, 1, 128>}, {pipeline_mode = #tpu.pipeline_mode<synchronous>, transform_indices = @transform_3, window_bounds = array<i64: 2, 128, 384>}, {pipeline_mode = #tpu.pipeline_mode<synchronous>, transform_indices = @transform_4, window_bounds = array<i64: 2, 1, 384>}, {pipeline_mode = #tpu.pipeline_mode<synchronous>, transform_indices = @transform_5, window_bounds = array<i64: 2, 128, 128>}, {pipeline_mode = #tpu.pipeline_mode<synchronous>, transform_indices = @transform_6, window_bounds = array<i64: 2, 1, 128>}, {pipeline_mode = #tpu.pipeline_mode<synchronous>, transform_indices = @transform_7, window_bounds = array<i64: 2, 1, 128>}, {pipeline_mode = #tpu.pipeline_mode<synchronous>, transform_indices = @transform_8, window_bounds = array<i64: 2, 1, 128>}, {pipeline_mode = #tpu.pipeline_mode<synchronous>, transform_indices = @transform_9, window_bounds = array<i64: 2, 128, 512>}, {pipeline_mode = #tpu.pipeline_mode<synchronous>, transform_indices = @transform_10, window_bounds = array<i64: 2, 1, 512>}, {pipeline_mode = #tpu.pipeline_mode<synchronous>, transform_indices = @transform_11, window_bounds = array<i64: 2, 512, 128>}, {pipeline_mode = #tpu.pipeline_mode<synchronous>, transform_indices = @transform_12, window_bounds = array<i64: 2, 1, 128>}, {pipeline_mode = #tpu.pipeline_mode<synchronous>, transform_indices = @transform_13, window_bounds = array<i64: 1, 128>}, {pipeline_mode = #tpu.pipeline_mode<synchronous>, transform_indices = @transform_14, window_bounds = array<i64: 1, 128>}, {transform_indices = @transform_15, window_bounds = array<i64: 1, 1, 128>}, {transform_indices = @transform_16, window_bounds = array<i64: 1, 1, 128>}]} {
    %c0 = arith.constant 0 : index
    %c0_0 = arith.constant 0 : index
    %c0_1 = arith.constant 0 : index
    %0 = vector.load %arg1[%c0, %c0_0, %c0_1] : memref<1x9x128xf32, #tpu.memory_space<vmem>>, vector<1x9x128xf32>
    %1 = vector.shape_cast %0 : vector<1x9x128xf32> to vector<9x128xf32>
    %c0_2 = arith.constant 0 : index
    %c0_3 = arith.constant 0 : index
    %c0_4 = arith.constant 0 : index
    %2 = vector.load %arg2[%c0_2, %c0_3, %c0_4] : memref<2x1x128xf32, #tpu.memory_space<vmem>>, vector<1x1x128xf32>
    %3 = vector.shape_cast %2 : vector<1x1x128xf32> to vector<1x128xf32>
    %c0_5 = arith.constant 0 : index
    %c0_6 = arith.constant 0 : index
    %c0_7 = arith.constant 0 : index
    %4 = vector.load %arg3[%c0_5, %c0_6, %c0_7] : memref<2x1x128xf32, #tpu.memory_space<vmem>>, vector<1x1x128xf32>
    %5 = vector.shape_cast %4 : vector<1x1x128xf32> to vector<1x128xf32>
    %cst = arith.constant dense<0.000000e+00> : vector<9xf32>
    %6 = vector.multi_reduction <add>, %1, %cst [1] : vector<9x128xf32> to vector<9xf32>
    %7 = vector.shape_cast %6 : vector<9xf32> to vector<9x1xf32>
    %cst_8 = arith.constant 1.280000e+02 : f32
    %8 = vector.broadcast %cst_8 : f32 to vector<9x1xf32>
    %9 = arith.divf %7, %8 : vector<9x1xf32>
    %10 = vector.broadcast %9 : vector<9x1xf32> to vector<9x128xf32>
    %11 = arith.subf %1, %10 : vector<9x128xf32>
    %12 = arith.mulf %11, %11 : vector<9x128xf32>
    %cst_9 = arith.constant dense<0.000000e+00> : vector<9xf32>
    %13 = vector.multi_reduction <add>, %12, %cst_9 [1] : vector<9x128xf32> to vector<9xf32>
    %14 = vector.shape_cast %13 : vector<9xf32> to vector<9x1xf32>
    %cst_10 = arith.constant 1.280000e+02 : f32
    %15 = vector.broadcast %cst_10 : f32 to vector<9x1xf32>
    %16 = arith.divf %14, %15 : vector<9x1xf32>
    %17 = vector.broadcast %9 : vector<9x1xf32> to vector<9x128xf32>
    %18 = arith.subf %1, %17 : vector<9x128xf32>
    %cst_11 = arith.constant 9.99999997E-7 : f32
    %19 = vector.broadcast %cst_11 : f32 to vector<9x1xf32>
    %20 = arith.addf %16, %19 : vector<9x1xf32>
    %21 = math.rsqrt %20 : vector<9x1xf32>
    %22 = vector.broadcast %21 : vector<9x1xf32> to vector<9x128xf32>
    %23 = arith.mulf %18, %22 : vector<9x128xf32>
    %24 = vector.broadcast %3 : vector<1x128xf32> to vector<9x128xf32>
    %25 = arith.mulf %23, %24 : vector<9x128xf32>
    %26 = vector.broadcast %5 : vector<1x128xf32> to vector<9x128xf32>
    %27 = arith.addf %25, %26 : vector<9x128xf32>
    %c0_12 = arith.constant 0 : index
    %c0_13 = arith.constant 0 : index
    %c0_14 = arith.constant 0 : index
    %28 = vector.load %arg4[%c0_12, %c0_13, %c0_14] : memref<2x128x384xf32, #tpu.memory_space<vmem>>, vector<1x128x384xf32>
    %29 = vector.shape_cast %28 : vector<1x128x384xf32> to vector<128x384xf32>
    %cst_15 = arith.constant dense<0.000000e+00> : vector<9x384xf32>
    %30 = tpu.matmul %27, %29, %cst_15 {dimension_numbers = #tpu.dot_dimension_numbers<[1], [0], [0], [1], [0, 0, 1, 1], [], []>} : vector<9x128xf32>, vector<128x384xf32>, vector<9x384xf32> -> vector<9x384xf32>
    %c0_16 = arith.constant 0 : index
    %c0_17 = arith.constant 0 : index
    %c0_18 = arith.constant 0 : index
    %31 = vector.load %arg5[%c0_16, %c0_17, %c0_18] : memref<2x1x384xf32, #tpu.memory_space<vmem>>, vector<1x1x384xf32>
    %32 = vector.shape_cast %31 : vector<1x1x384xf32> to vector<1x384xf32>
    %33 = vector.broadcast %32 : vector<1x384xf32> to vector<9x384xf32>
    %34 = arith.addf %30, %33 : vector<9x384xf32>
    %35 = vector.extract_strided_slice %34 {offsets = [0, 0], sizes = [9, 32], strides = [1, 1]} : vector<9x384xf32> to vector<9x32xf32>
    %36 = vector.extract_strided_slice %34 {offsets = [0, 128], sizes = [9, 32], strides = [1, 1]} : vector<9x384xf32> to vector<9x32xf32>
    %37 = vector.extract_strided_slice %34 {offsets = [0, 256], sizes = [9, 32], strides = [1, 1]} : vector<9x384xf32> to vector<9x32xf32>
    %cst_19 = arith.constant dense<0.000000e+00> : vector<9x9xf32>
    %38 = tpu.matmul %35, %36, %cst_19 {dimension_numbers = #tpu.dot_dimension_numbers<[1], [1], [0], [0], [0, 0, 1, 0], [], []>} : vector<9x32xf32>, vector<9x32xf32>, vector<9x9xf32> -> vector<9x9xf32>
    %cst_20 = arith.constant 0.176776692 : f32
    %39 = vector.broadcast %cst_20 : f32 to vector<9x9xf32>
    %40 = arith.mulf %38, %39 : vector<9x9xf32>
    %cst_21 = arith.constant dense<0xFF800000> : vector<9xf32>
    %41 = vector.multi_reduction <maximumf>, %40, %cst_21 [1] : vector<9x9xf32> to vector<9xf32>
    %42 = vector.shape_cast %41 : vector<9xf32> to vector<9x1xf32>
    %43 = vector.broadcast %42 : vector<9x1xf32> to vector<9x9xf32>
    %44 = arith.subf %40, %43 : vector<9x9xf32>
    %45 = math.exp %44 : vector<9x9xf32>
    %cst_22 = arith.constant dense<0.000000e+00> : vector<9xf32>
    %46 = vector.multi_reduction <add>, %45, %cst_22 [1] : vector<9x9xf32> to vector<9xf32>
    %47 = vector.shape_cast %46 : vector<9xf32> to vector<9x1xf32>
    %48 = tpu.reciprocal %47 {approx = true} : vector<9x1xf32> -> vector<9x1xf32>
    %49 = vector.broadcast %48 : vector<9x1xf32> to vector<9x9xf32>
    %50 = arith.mulf %45, %49 : vector<9x9xf32>
    %cst_23 = arith.constant dense<0.000000e+00> : vector<9x32xf32>
    %51 = tpu.matmul %50, %37, %cst_23 {dimension_numbers = #tpu.dot_dimension_numbers<[1], [0], [0], [1], [0, 0, 1, 1], [], []>} : vector<9x9xf32>, vector<9x32xf32>, vector<9x32xf32> -> vector<9x32xf32>
    %52 = vector.extract_strided_slice %34 {offsets = [0, 32], sizes = [9, 32], strides = [1, 1]} : vector<9x384xf32> to vector<9x32xf32>
    %53 = vector.extract_strided_slice %34 {offsets = [0, 160], sizes = [9, 32], strides = [1, 1]} : vector<9x384xf32> to vector<9x32xf32>
    %54 = vector.extract_strided_slice %34 {offsets = [0, 288], sizes = [9, 32], strides = [1, 1]} : vector<9x384xf32> to vector<9x32xf32>
    %cst_24 = arith.constant dense<0.000000e+00> : vector<9x9xf32>
    %55 = tpu.matmul %52, %53, %cst_24 {dimension_numbers = #tpu.dot_dimension_numbers<[1], [1], [0], [0], [0, 0, 1, 0], [], []>} : vector<9x32xf32>, vector<9x32xf32>, vector<9x9xf32> -> vector<9x9xf32>
    %cst_25 = arith.constant 0.176776692 : f32
    %56 = vector.broadcast %cst_25 : f32 to vector<9x9xf32>
    %57 = arith.mulf %55, %56 : vector<9x9xf32>
    %cst_26 = arith.constant dense<0xFF800000> : vector<9xf32>
    %58 = vector.multi_reduction <maximumf>, %57, %cst_26 [1] : vector<9x9xf32> to vector<9xf32>
    %59 = vector.shape_cast %58 : vector<9xf32> to vector<9x1xf32>
    %60 = vector.broadcast %59 : vector<9x1xf32> to vector<9x9xf32>
    %61 = arith.subf %57, %60 : vector<9x9xf32>
    %62 = math.exp %61 : vector<9x9xf32>
    %cst_27 = arith.constant dense<0.000000e+00> : vector<9xf32>
    %63 = vector.multi_reduction <add>, %62, %cst_27 [1] : vector<9x9xf32> to vector<9xf32>
    %64 = vector.shape_cast %63 : vector<9xf32> to vector<9x1xf32>
    %65 = tpu.reciprocal %64 {approx = true} : vector<9x1xf32> -> vector<9x1xf32>
    %66 = vector.broadcast %65 : vector<9x1xf32> to vector<9x9xf32>
    %67 = arith.mulf %62, %66 : vector<9x9xf32>
    %cst_28 = arith.constant dense<0.000000e+00> : vector<9x32xf32>
    %68 = tpu.matmul %67, %54, %cst_28 {dimension_numbers = #tpu.dot_dimension_numbers<[1], [0], [0], [1], [0, 0, 1, 1], [], []>} : vector<9x9xf32>, vector<9x32xf32>, vector<9x32xf32> -> vector<9x32xf32>
    %69 = vector.extract_strided_slice %34 {offsets = [0, 64], sizes = [9, 32], strides = [1, 1]} : vector<9x384xf32> to vector<9x32xf32>
    %70 = vector.extract_strided_slice %34 {offsets = [0, 192], sizes = [9, 32], strides = [1, 1]} : vector<9x384xf32> to vector<9x32xf32>
    %71 = vector.extract_strided_slice %34 {offsets = [0, 320], sizes = [9, 32], strides = [1, 1]} : vector<9x384xf32> to vector<9x32xf32>
    %cst_29 = arith.constant dense<0.000000e+00> : vector<9x9xf32>
    %72 = tpu.matmul %69, %70, %cst_29 {dimension_numbers = #tpu.dot_dimension_numbers<[1], [1], [0], [0], [0, 0, 1, 0], [], []>} : vector<9x32xf32>, vector<9x32xf32>, vector<9x9xf32> -> vector<9x9xf32>
    %cst_30 = arith.constant 0.176776692 : f32
    %73 = vector.broadcast %cst_30 : f32 to vector<9x9xf32>
    %74 = arith.mulf %72, %73 : vector<9x9xf32>
    %cst_31 = arith.constant dense<0xFF800000> : vector<9xf32>
    %75 = vector.multi_reduction <maximumf>, %74, %cst_31 [1] : vector<9x9xf32> to vector<9xf32>
    %76 = vector.shape_cast %75 : vector<9xf32> to vector<9x1xf32>
    %77 = vector.broadcast %76 : vector<9x1xf32> to vector<9x9xf32>
    %78 = arith.subf %74, %77 : vector<9x9xf32>
    %79 = math.exp %78 : vector<9x9xf32>
    %cst_32 = arith.constant dense<0.000000e+00> : vector<9xf32>
    %80 = vector.multi_reduction <add>, %79, %cst_32 [1] : vector<9x9xf32> to vector<9xf32>
    %81 = vector.shape_cast %80 : vector<9xf32> to vector<9x1xf32>
    %82 = tpu.reciprocal %81 {approx = true} : vector<9x1xf32> -> vector<9x1xf32>
    %83 = vector.broadcast %82 : vector<9x1xf32> to vector<9x9xf32>
    %84 = arith.mulf %79, %83 : vector<9x9xf32>
    %cst_33 = arith.constant dense<0.000000e+00> : vector<9x32xf32>
    %85 = tpu.matmul %84, %71, %cst_33 {dimension_numbers = #tpu.dot_dimension_numbers<[1], [0], [0], [1], [0, 0, 1, 1], [], []>} : vector<9x9xf32>, vector<9x32xf32>, vector<9x32xf32> -> vector<9x32xf32>
    %86 = vector.extract_strided_slice %34 {offsets = [0, 96], sizes = [9, 32], strides = [1, 1]} : vector<9x384xf32> to vector<9x32xf32>
    %87 = vector.extract_strided_slice %34 {offsets = [0, 224], sizes = [9, 32], strides = [1, 1]} : vector<9x384xf32> to vector<9x32xf32>
    %88 = vector.extract_strided_slice %34 {offsets = [0, 352], sizes = [9, 32], strides = [1, 1]} : vector<9x384xf32> to vector<9x32xf32>
    %cst_34 = arith.constant dense<0.000000e+00> : vector<9x9xf32>
    %89 = tpu.matmul %86, %87, %cst_34 {dimension_numbers = #tpu.dot_dimension_numbers<[1], [1], [0], [0], [0, 0, 1, 0], [], []>} : vector<9x32xf32>, vector<9x32xf32>, vector<9x9xf32> -> vector<9x9xf32>
    %cst_35 = arith.constant 0.176776692 : f32
    %90 = vector.broadcast %cst_35 : f32 to vector<9x9xf32>
    %91 = arith.mulf %89, %90 : vector<9x9xf32>
    %cst_36 = arith.constant dense<0xFF800000> : vector<9xf32>
    %92 = vector.multi_reduction <maximumf>, %91, %cst_36 [1] : vector<9x9xf32> to vector<9xf32>
    %93 = vector.shape_cast %92 : vector<9xf32> to vector<9x1xf32>
    %94 = vector.broadcast %93 : vector<9x1xf32> to vector<9x9xf32>
    %95 = arith.subf %91, %94 : vector<9x9xf32>
    %96 = math.exp %95 : vector<9x9xf32>
    %cst_37 = arith.constant dense<0.000000e+00> : vector<9xf32>
    %97 = vector.multi_reduction <add>, %96, %cst_37 [1] : vector<9x9xf32> to vector<9xf32>
    %98 = vector.shape_cast %97 : vector<9xf32> to vector<9x1xf32>
    %99 = tpu.reciprocal %98 {approx = true} : vector<9x1xf32> -> vector<9x1xf32>
    %100 = vector.broadcast %99 : vector<9x1xf32> to vector<9x9xf32>
    %101 = arith.mulf %96, %100 : vector<9x9xf32>
    %cst_38 = arith.constant dense<0.000000e+00> : vector<9x32xf32>
    %102 = tpu.matmul %101, %88, %cst_38 {dimension_numbers = #tpu.dot_dimension_numbers<[1], [0], [0], [1], [0, 0, 1, 1], [], []>} : vector<9x9xf32>, vector<9x32xf32>, vector<9x32xf32> -> vector<9x32xf32>
    %103 = tpu.concatenate %51, %68, %85, %102 in 1 : vector<9x32xf32>, vector<9x32xf32>, vector<9x32xf32>, vector<9x32xf32> -> vector<9x128xf32>
    %c0_39 = arith.constant 0 : index
    %c0_40 = arith.constant 0 : index
    %c0_41 = arith.constant 0 : index
    %104 = vector.load %arg6[%c0_39, %c0_40, %c0_41] : memref<2x128x128xf32, #tpu.memory_space<vmem>>, vector<1x128x128xf32>
    %105 = vector.shape_cast %104 : vector<1x128x128xf32> to vector<128x128xf32>
    %cst_42 = arith.constant dense<0.000000e+00> : vector<9x128xf32>
    %106 = tpu.matmul %103, %105, %cst_42 {dimension_numbers = #tpu.dot_dimension_numbers<[1], [0], [0], [1], [0, 0, 1, 1], [], []>} : vector<9x128xf32>, vector<128x128xf32>, vector<9x128xf32> -> vector<9x128xf32>
    %107 = arith.addf %1, %106 : vector<9x128xf32>
    %c0_43 = arith.constant 0 : index
    %c0_44 = arith.constant 0 : index
    %c0_45 = arith.constant 0 : index
    %108 = vector.load %arg7[%c0_43, %c0_44, %c0_45] : memref<2x1x128xf32, #tpu.memory_space<vmem>>, vector<1x1x128xf32>
    %109 = vector.shape_cast %108 : vector<1x1x128xf32> to vector<1x128xf32>
    %110 = vector.broadcast %109 : vector<1x128xf32> to vector<9x128xf32>
    %111 = arith.addf %107, %110 : vector<9x128xf32>
    %c0_46 = arith.constant 0 : index
    %c0_47 = arith.constant 0 : index
    %c0_48 = arith.constant 0 : index
    %112 = vector.load %arg8[%c0_46, %c0_47, %c0_48] : memref<2x1x128xf32, #tpu.memory_space<vmem>>, vector<1x1x128xf32>
    %113 = vector.shape_cast %112 : vector<1x1x128xf32> to vector<1x128xf32>
    %c0_49 = arith.constant 0 : index
    %c0_50 = arith.constant 0 : index
    %c0_51 = arith.constant 0 : index
    %114 = vector.load %arg9[%c0_49, %c0_50, %c0_51] : memref<2x1x128xf32, #tpu.memory_space<vmem>>, vector<1x1x128xf32>
    %115 = vector.shape_cast %114 : vector<1x1x128xf32> to vector<1x128xf32>
    %cst_52 = arith.constant dense<0.000000e+00> : vector<9xf32>
    %116 = vector.multi_reduction <add>, %111, %cst_52 [1] : vector<9x128xf32> to vector<9xf32>
    %117 = vector.shape_cast %116 : vector<9xf32> to vector<9x1xf32>
    %cst_53 = arith.constant 1.280000e+02 : f32
    %118 = vector.broadcast %cst_53 : f32 to vector<9x1xf32>
    %119 = arith.divf %117, %118 : vector<9x1xf32>
    %120 = vector.broadcast %119 : vector<9x1xf32> to vector<9x128xf32>
    %121 = arith.subf %111, %120 : vector<9x128xf32>
    %122 = arith.mulf %121, %121 : vector<9x128xf32>
    %cst_54 = arith.constant dense<0.000000e+00> : vector<9xf32>
    %123 = vector.multi_reduction <add>, %122, %cst_54 [1] : vector<9x128xf32> to vector<9xf32>
    %124 = vector.shape_cast %123 : vector<9xf32> to vector<9x1xf32>
    %cst_55 = arith.constant 1.280000e+02 : f32
    %125 = vector.broadcast %cst_55 : f32 to vector<9x1xf32>
    %126 = arith.divf %124, %125 : vector<9x1xf32>
    %127 = vector.broadcast %119 : vector<9x1xf32> to vector<9x128xf32>
    %128 = arith.subf %111, %127 : vector<9x128xf32>
    %cst_56 = arith.constant 9.99999997E-7 : f32
    %129 = vector.broadcast %cst_56 : f32 to vector<9x1xf32>
    %130 = arith.addf %126, %129 : vector<9x1xf32>
    %131 = math.rsqrt %130 : vector<9x1xf32>
    %132 = vector.broadcast %131 : vector<9x1xf32> to vector<9x128xf32>
    %133 = arith.mulf %128, %132 : vector<9x128xf32>
    %134 = vector.broadcast %113 : vector<1x128xf32> to vector<9x128xf32>
    %135 = arith.mulf %133, %134 : vector<9x128xf32>
    %136 = vector.broadcast %115 : vector<1x128xf32> to vector<9x128xf32>
    %137 = arith.addf %135, %136 : vector<9x128xf32>
    %c0_57 = arith.constant 0 : index
    %c0_58 = arith.constant 0 : index
    %c0_59 = arith.constant 0 : index
    %138 = vector.load %arg10[%c0_57, %c0_58, %c0_59] : memref<2x128x512xf32, #tpu.memory_space<vmem>>, vector<1x128x512xf32>
    %139 = vector.shape_cast %138 : vector<1x128x512xf32> to vector<128x512xf32>
    %cst_60 = arith.constant dense<0.000000e+00> : vector<9x512xf32>
    %140 = tpu.matmul %137, %139, %cst_60 {dimension_numbers = #tpu.dot_dimension_numbers<[1], [0], [0], [1], [0, 0, 1, 1], [], []>} : vector<9x128xf32>, vector<128x512xf32>, vector<9x512xf32> -> vector<9x512xf32>
    %c0_61 = arith.constant 0 : index
    %c0_62 = arith.constant 0 : index
    %c0_63 = arith.constant 0 : index
    %141 = vector.load %arg11[%c0_61, %c0_62, %c0_63] : memref<2x1x512xf32, #tpu.memory_space<vmem>>, vector<1x1x512xf32>
    %142 = vector.shape_cast %141 : vector<1x1x512xf32> to vector<1x512xf32>
    %143 = vector.broadcast %142 : vector<1x512xf32> to vector<9x512xf32>
    %144 = arith.addf %140, %143 : vector<9x512xf32>
    %145 = arith.mulf %144, %144 : vector<9x512xf32>
    %146 = arith.mulf %144, %145 : vector<9x512xf32>
    %cst_64 = arith.constant 4.471500e-02 : f32
    %147 = vector.broadcast %cst_64 : f32 to vector<9x512xf32>
    %148 = arith.mulf %147, %146 : vector<9x512xf32>
    %149 = arith.addf %144, %148 : vector<9x512xf32>
    %cst_65 = arith.constant 0.797884583 : f32
    %150 = vector.broadcast %cst_65 : f32 to vector<9x512xf32>
    %151 = arith.mulf %150, %149 : vector<9x512xf32>
    %152 = math.tanh %151 : vector<9x512xf32>
    %cst_66 = arith.constant 1.000000e+00 : f32
    %153 = vector.broadcast %cst_66 : f32 to vector<9x512xf32>
    %154 = arith.addf %153, %152 : vector<9x512xf32>
    %cst_67 = arith.constant 5.000000e-01 : f32
    %155 = vector.broadcast %cst_67 : f32 to vector<9x512xf32>
    %156 = arith.mulf %155, %154 : vector<9x512xf32>
    %157 = arith.mulf %144, %156 : vector<9x512xf32>
    %c0_68 = arith.constant 0 : index
    %c0_69 = arith.constant 0 : index
    %c0_70 = arith.constant 0 : index
    %158 = vector.load %arg12[%c0_68, %c0_69, %c0_70] : memref<2x512x128xf32, #tpu.memory_space<vmem>>, vector<1x512x128xf32>
    %159 = vector.shape_cast %158 : vector<1x512x128xf32> to vector<512x128xf32>
    %cst_71 = arith.constant dense<0.000000e+00> : vector<9x128xf32>
    %160 = tpu.matmul %157, %159, %cst_71 {dimension_numbers = #tpu.dot_dimension_numbers<[1], [0], [0], [1], [0, 0, 1, 1], [], []>} : vector<9x512xf32>, vector<512x128xf32>, vector<9x128xf32> -> vector<9x128xf32>
    %161 = arith.addf %111, %160 : vector<9x128xf32>
    %c0_72 = arith.constant 0 : index
    %c0_73 = arith.constant 0 : index
    %c0_74 = arith.constant 0 : index
    %162 = vector.load %arg13[%c0_72, %c0_73, %c0_74] : memref<2x1x128xf32, #tpu.memory_space<vmem>>, vector<1x1x128xf32>
    %163 = vector.shape_cast %162 : vector<1x1x128xf32> to vector<1x128xf32>
    %164 = vector.broadcast %163 : vector<1x128xf32> to vector<9x128xf32>
    %165 = arith.addf %161, %164 : vector<9x128xf32>
    %c1 = arith.constant 1 : index
    %c0_75 = arith.constant 0 : index
    %c0_76 = arith.constant 0 : index
    %166 = vector.load %arg2[%c1, %c0_75, %c0_76] : memref<2x1x128xf32, #tpu.memory_space<vmem>>, vector<1x1x128xf32>
    %167 = vector.shape_cast %166 : vector<1x1x128xf32> to vector<1x128xf32>
    %c1_77 = arith.constant 1 : index
    %c0_78 = arith.constant 0 : index
    %c0_79 = arith.constant 0 : index
    %168 = vector.load %arg3[%c1_77, %c0_78, %c0_79] : memref<2x1x128xf32, #tpu.memory_space<vmem>>, vector<1x1x128xf32>
    %169 = vector.shape_cast %168 : vector<1x1x128xf32> to vector<1x128xf32>
    %cst_80 = arith.constant dense<0.000000e+00> : vector<9xf32>
    %170 = vector.multi_reduction <add>, %165, %cst_80 [1] : vector<9x128xf32> to vector<9xf32>
    %171 = vector.shape_cast %170 : vector<9xf32> to vector<9x1xf32>
    %cst_81 = arith.constant 1.280000e+02 : f32
    %172 = vector.broadcast %cst_81 : f32 to vector<9x1xf32>
    %173 = arith.divf %171, %172 : vector<9x1xf32>
    %174 = vector.broadcast %173 : vector<9x1xf32> to vector<9x128xf32>
    %175 = arith.subf %165, %174 : vector<9x128xf32>
    %176 = arith.mulf %175, %175 : vector<9x128xf32>
    %cst_82 = arith.constant dense<0.000000e+00> : vector<9xf32>
    %177 = vector.multi_reduction <add>, %176, %cst_82 [1] : vector<9x128xf32> to vector<9xf32>
    %178 = vector.shape_cast %177 : vector<9xf32> to vector<9x1xf32>
    %cst_83 = arith.constant 1.280000e+02 : f32
    %179 = vector.broadcast %cst_83 : f32 to vector<9x1xf32>
    %180 = arith.divf %178, %179 : vector<9x1xf32>
    %181 = vector.broadcast %173 : vector<9x1xf32> to vector<9x128xf32>
    %182 = arith.subf %165, %181 : vector<9x128xf32>
    %cst_84 = arith.constant 9.99999997E-7 : f32
    %183 = vector.broadcast %cst_84 : f32 to vector<9x1xf32>
    %184 = arith.addf %180, %183 : vector<9x1xf32>
    %185 = math.rsqrt %184 : vector<9x1xf32>
    %186 = vector.broadcast %185 : vector<9x1xf32> to vector<9x128xf32>
    %187 = arith.mulf %182, %186 : vector<9x128xf32>
    %188 = vector.broadcast %167 : vector<1x128xf32> to vector<9x128xf32>
    %189 = arith.mulf %187, %188 : vector<9x128xf32>
    %190 = vector.broadcast %169 : vector<1x128xf32> to vector<9x128xf32>
    %191 = arith.addf %189, %190 : vector<9x128xf32>
    %c1_85 = arith.constant 1 : index
    %c0_86 = arith.constant 0 : index
    %c0_87 = arith.constant 0 : index
    %192 = vector.load %arg4[%c1_85, %c0_86, %c0_87] : memref<2x128x384xf32, #tpu.memory_space<vmem>>, vector<1x128x384xf32>
    %193 = vector.shape_cast %192 : vector<1x128x384xf32> to vector<128x384xf32>
    %cst_88 = arith.constant dense<0.000000e+00> : vector<9x384xf32>
    %194 = tpu.matmul %191, %193, %cst_88 {dimension_numbers = #tpu.dot_dimension_numbers<[1], [0], [0], [1], [0, 0, 1, 1], [], []>} : vector<9x128xf32>, vector<128x384xf32>, vector<9x384xf32> -> vector<9x384xf32>
    %c1_89 = arith.constant 1 : index
    %c0_90 = arith.constant 0 : index
    %c0_91 = arith.constant 0 : index
    %195 = vector.load %arg5[%c1_89, %c0_90, %c0_91] : memref<2x1x384xf32, #tpu.memory_space<vmem>>, vector<1x1x384xf32>
    %196 = vector.shape_cast %195 : vector<1x1x384xf32> to vector<1x384xf32>
    %197 = vector.broadcast %196 : vector<1x384xf32> to vector<9x384xf32>
    %198 = arith.addf %194, %197 : vector<9x384xf32>
    %199 = vector.extract_strided_slice %198 {offsets = [0, 0], sizes = [9, 32], strides = [1, 1]} : vector<9x384xf32> to vector<9x32xf32>
    %200 = vector.extract_strided_slice %198 {offsets = [0, 128], sizes = [9, 32], strides = [1, 1]} : vector<9x384xf32> to vector<9x32xf32>
    %201 = vector.extract_strided_slice %198 {offsets = [0, 256], sizes = [9, 32], strides = [1, 1]} : vector<9x384xf32> to vector<9x32xf32>
    %cst_92 = arith.constant dense<0.000000e+00> : vector<9x9xf32>
    %202 = tpu.matmul %199, %200, %cst_92 {dimension_numbers = #tpu.dot_dimension_numbers<[1], [1], [0], [0], [0, 0, 1, 0], [], []>} : vector<9x32xf32>, vector<9x32xf32>, vector<9x9xf32> -> vector<9x9xf32>
    %cst_93 = arith.constant 0.176776692 : f32
    %203 = vector.broadcast %cst_93 : f32 to vector<9x9xf32>
    %204 = arith.mulf %202, %203 : vector<9x9xf32>
    %cst_94 = arith.constant dense<0xFF800000> : vector<9xf32>
    %205 = vector.multi_reduction <maximumf>, %204, %cst_94 [1] : vector<9x9xf32> to vector<9xf32>
    %206 = vector.shape_cast %205 : vector<9xf32> to vector<9x1xf32>
    %207 = vector.broadcast %206 : vector<9x1xf32> to vector<9x9xf32>
    %208 = arith.subf %204, %207 : vector<9x9xf32>
    %209 = math.exp %208 : vector<9x9xf32>
    %cst_95 = arith.constant dense<0.000000e+00> : vector<9xf32>
    %210 = vector.multi_reduction <add>, %209, %cst_95 [1] : vector<9x9xf32> to vector<9xf32>
    %211 = vector.shape_cast %210 : vector<9xf32> to vector<9x1xf32>
    %212 = tpu.reciprocal %211 {approx = true} : vector<9x1xf32> -> vector<9x1xf32>
    %213 = vector.broadcast %212 : vector<9x1xf32> to vector<9x9xf32>
    %214 = arith.mulf %209, %213 : vector<9x9xf32>
    %cst_96 = arith.constant dense<0.000000e+00> : vector<9x32xf32>
    %215 = tpu.matmul %214, %201, %cst_96 {dimension_numbers = #tpu.dot_dimension_numbers<[1], [0], [0], [1], [0, 0, 1, 1], [], []>} : vector<9x9xf32>, vector<9x32xf32>, vector<9x32xf32> -> vector<9x32xf32>
    %216 = vector.extract_strided_slice %198 {offsets = [0, 32], sizes = [9, 32], strides = [1, 1]} : vector<9x384xf32> to vector<9x32xf32>
    %217 = vector.extract_strided_slice %198 {offsets = [0, 160], sizes = [9, 32], strides = [1, 1]} : vector<9x384xf32> to vector<9x32xf32>
    %218 = vector.extract_strided_slice %198 {offsets = [0, 288], sizes = [9, 32], strides = [1, 1]} : vector<9x384xf32> to vector<9x32xf32>
    %cst_97 = arith.constant dense<0.000000e+00> : vector<9x9xf32>
    %219 = tpu.matmul %216, %217, %cst_97 {dimension_numbers = #tpu.dot_dimension_numbers<[1], [1], [0], [0], [0, 0, 1, 0], [], []>} : vector<9x32xf32>, vector<9x32xf32>, vector<9x9xf32> -> vector<9x9xf32>
    %cst_98 = arith.constant 0.176776692 : f32
    %220 = vector.broadcast %cst_98 : f32 to vector<9x9xf32>
    %221 = arith.mulf %219, %220 : vector<9x9xf32>
    %cst_99 = arith.constant dense<0xFF800000> : vector<9xf32>
    %222 = vector.multi_reduction <maximumf>, %221, %cst_99 [1] : vector<9x9xf32> to vector<9xf32>
    %223 = vector.shape_cast %222 : vector<9xf32> to vector<9x1xf32>
    %224 = vector.broadcast %223 : vector<9x1xf32> to vector<9x9xf32>
    %225 = arith.subf %221, %224 : vector<9x9xf32>
    %226 = math.exp %225 : vector<9x9xf32>
    %cst_100 = arith.constant dense<0.000000e+00> : vector<9xf32>
    %227 = vector.multi_reduction <add>, %226, %cst_100 [1] : vector<9x9xf32> to vector<9xf32>
    %228 = vector.shape_cast %227 : vector<9xf32> to vector<9x1xf32>
    %229 = tpu.reciprocal %228 {approx = true} : vector<9x1xf32> -> vector<9x1xf32>
    %230 = vector.broadcast %229 : vector<9x1xf32> to vector<9x9xf32>
    %231 = arith.mulf %226, %230 : vector<9x9xf32>
    %cst_101 = arith.constant dense<0.000000e+00> : vector<9x32xf32>
    %232 = tpu.matmul %231, %218, %cst_101 {dimension_numbers = #tpu.dot_dimension_numbers<[1], [0], [0], [1], [0, 0, 1, 1], [], []>} : vector<9x9xf32>, vector<9x32xf32>, vector<9x32xf32> -> vector<9x32xf32>
    %233 = vector.extract_strided_slice %198 {offsets = [0, 64], sizes = [9, 32], strides = [1, 1]} : vector<9x384xf32> to vector<9x32xf32>
    %234 = vector.extract_strided_slice %198 {offsets = [0, 192], sizes = [9, 32], strides = [1, 1]} : vector<9x384xf32> to vector<9x32xf32>
    %235 = vector.extract_strided_slice %198 {offsets = [0, 320], sizes = [9, 32], strides = [1, 1]} : vector<9x384xf32> to vector<9x32xf32>
    %cst_102 = arith.constant dense<0.000000e+00> : vector<9x9xf32>
    %236 = tpu.matmul %233, %234, %cst_102 {dimension_numbers = #tpu.dot_dimension_numbers<[1], [1], [0], [0], [0, 0, 1, 0], [], []>} : vector<9x32xf32>, vector<9x32xf32>, vector<9x9xf32> -> vector<9x9xf32>
    %cst_103 = arith.constant 0.176776692 : f32
    %237 = vector.broadcast %cst_103 : f32 to vector<9x9xf32>
    %238 = arith.mulf %236, %237 : vector<9x9xf32>
    %cst_104 = arith.constant dense<0xFF800000> : vector<9xf32>
    %239 = vector.multi_reduction <maximumf>, %238, %cst_104 [1] : vector<9x9xf32> to vector<9xf32>
    %240 = vector.shape_cast %239 : vector<9xf32> to vector<9x1xf32>
    %241 = vector.broadcast %240 : vector<9x1xf32> to vector<9x9xf32>
    %242 = arith.subf %238, %241 : vector<9x9xf32>
    %243 = math.exp %242 : vector<9x9xf32>
    %cst_105 = arith.constant dense<0.000000e+00> : vector<9xf32>
    %244 = vector.multi_reduction <add>, %243, %cst_105 [1] : vector<9x9xf32> to vector<9xf32>
    %245 = vector.shape_cast %244 : vector<9xf32> to vector<9x1xf32>
    %246 = tpu.reciprocal %245 {approx = true} : vector<9x1xf32> -> vector<9x1xf32>
    %247 = vector.broadcast %246 : vector<9x1xf32> to vector<9x9xf32>
    %248 = arith.mulf %243, %247 : vector<9x9xf32>
    %cst_106 = arith.constant dense<0.000000e+00> : vector<9x32xf32>
    %249 = tpu.matmul %248, %235, %cst_106 {dimension_numbers = #tpu.dot_dimension_numbers<[1], [0], [0], [1], [0, 0, 1, 1], [], []>} : vector<9x9xf32>, vector<9x32xf32>, vector<9x32xf32> -> vector<9x32xf32>
    %250 = vector.extract_strided_slice %198 {offsets = [0, 96], sizes = [9, 32], strides = [1, 1]} : vector<9x384xf32> to vector<9x32xf32>
    %251 = vector.extract_strided_slice %198 {offsets = [0, 224], sizes = [9, 32], strides = [1, 1]} : vector<9x384xf32> to vector<9x32xf32>
    %252 = vector.extract_strided_slice %198 {offsets = [0, 352], sizes = [9, 32], strides = [1, 1]} : vector<9x384xf32> to vector<9x32xf32>
    %cst_107 = arith.constant dense<0.000000e+00> : vector<9x9xf32>
    %253 = tpu.matmul %250, %251, %cst_107 {dimension_numbers = #tpu.dot_dimension_numbers<[1], [1], [0], [0], [0, 0, 1, 0], [], []>} : vector<9x32xf32>, vector<9x32xf32>, vector<9x9xf32> -> vector<9x9xf32>
    %cst_108 = arith.constant 0.176776692 : f32
    %254 = vector.broadcast %cst_108 : f32 to vector<9x9xf32>
    %255 = arith.mulf %253, %254 : vector<9x9xf32>
    %cst_109 = arith.constant dense<0xFF800000> : vector<9xf32>
    %256 = vector.multi_reduction <maximumf>, %255, %cst_109 [1] : vector<9x9xf32> to vector<9xf32>
    %257 = vector.shape_cast %256 : vector<9xf32> to vector<9x1xf32>
    %258 = vector.broadcast %257 : vector<9x1xf32> to vector<9x9xf32>
    %259 = arith.subf %255, %258 : vector<9x9xf32>
    %260 = math.exp %259 : vector<9x9xf32>
    %cst_110 = arith.constant dense<0.000000e+00> : vector<9xf32>
    %261 = vector.multi_reduction <add>, %260, %cst_110 [1] : vector<9x9xf32> to vector<9xf32>
    %262 = vector.shape_cast %261 : vector<9xf32> to vector<9x1xf32>
    %263 = tpu.reciprocal %262 {approx = true} : vector<9x1xf32> -> vector<9x1xf32>
    %264 = vector.broadcast %263 : vector<9x1xf32> to vector<9x9xf32>
    %265 = arith.mulf %260, %264 : vector<9x9xf32>
    %cst_111 = arith.constant dense<0.000000e+00> : vector<9x32xf32>
    %266 = tpu.matmul %265, %252, %cst_111 {dimension_numbers = #tpu.dot_dimension_numbers<[1], [0], [0], [1], [0, 0, 1, 1], [], []>} : vector<9x9xf32>, vector<9x32xf32>, vector<9x32xf32> -> vector<9x32xf32>
    %267 = tpu.concatenate %215, %232, %249, %266 in 1 : vector<9x32xf32>, vector<9x32xf32>, vector<9x32xf32>, vector<9x32xf32> -> vector<9x128xf32>
    %c1_112 = arith.constant 1 : index
    %c0_113 = arith.constant 0 : index
    %c0_114 = arith.constant 0 : index
    %268 = vector.load %arg6[%c1_112, %c0_113, %c0_114] : memref<2x128x128xf32, #tpu.memory_space<vmem>>, vector<1x128x128xf32>
    %269 = vector.shape_cast %268 : vector<1x128x128xf32> to vector<128x128xf32>
    %cst_115 = arith.constant dense<0.000000e+00> : vector<9x128xf32>
    %270 = tpu.matmul %267, %269, %cst_115 {dimension_numbers = #tpu.dot_dimension_numbers<[1], [0], [0], [1], [0, 0, 1, 1], [], []>} : vector<9x128xf32>, vector<128x128xf32>, vector<9x128xf32> -> vector<9x128xf32>
    %271 = arith.addf %165, %270 : vector<9x128xf32>
    %c1_116 = arith.constant 1 : index
    %c0_117 = arith.constant 0 : index
    %c0_118 = arith.constant 0 : index
    %272 = vector.load %arg7[%c1_116, %c0_117, %c0_118] : memref<2x1x128xf32, #tpu.memory_space<vmem>>, vector<1x1x128xf32>
    %273 = vector.shape_cast %272 : vector<1x1x128xf32> to vector<1x128xf32>
    %274 = vector.broadcast %273 : vector<1x128xf32> to vector<9x128xf32>
    %275 = arith.addf %271, %274 : vector<9x128xf32>
    %c1_119 = arith.constant 1 : index
    %c0_120 = arith.constant 0 : index
    %c0_121 = arith.constant 0 : index
    %276 = vector.load %arg8[%c1_119, %c0_120, %c0_121] : memref<2x1x128xf32, #tpu.memory_space<vmem>>, vector<1x1x128xf32>
    %277 = vector.shape_cast %276 : vector<1x1x128xf32> to vector<1x128xf32>
    %c1_122 = arith.constant 1 : index
    %c0_123 = arith.constant 0 : index
    %c0_124 = arith.constant 0 : index
    %278 = vector.load %arg9[%c1_122, %c0_123, %c0_124] : memref<2x1x128xf32, #tpu.memory_space<vmem>>, vector<1x1x128xf32>
    %279 = vector.shape_cast %278 : vector<1x1x128xf32> to vector<1x128xf32>
    %cst_125 = arith.constant dense<0.000000e+00> : vector<9xf32>
    %280 = vector.multi_reduction <add>, %275, %cst_125 [1] : vector<9x128xf32> to vector<9xf32>
    %281 = vector.shape_cast %280 : vector<9xf32> to vector<9x1xf32>
    %cst_126 = arith.constant 1.280000e+02 : f32
    %282 = vector.broadcast %cst_126 : f32 to vector<9x1xf32>
    %283 = arith.divf %281, %282 : vector<9x1xf32>
    %284 = vector.broadcast %283 : vector<9x1xf32> to vector<9x128xf32>
    %285 = arith.subf %275, %284 : vector<9x128xf32>
    %286 = arith.mulf %285, %285 : vector<9x128xf32>
    %cst_127 = arith.constant dense<0.000000e+00> : vector<9xf32>
    %287 = vector.multi_reduction <add>, %286, %cst_127 [1] : vector<9x128xf32> to vector<9xf32>
    %288 = vector.shape_cast %287 : vector<9xf32> to vector<9x1xf32>
    %cst_128 = arith.constant 1.280000e+02 : f32
    %289 = vector.broadcast %cst_128 : f32 to vector<9x1xf32>
    %290 = arith.divf %288, %289 : vector<9x1xf32>
    %291 = vector.broadcast %283 : vector<9x1xf32> to vector<9x128xf32>
    %292 = arith.subf %275, %291 : vector<9x128xf32>
    %cst_129 = arith.constant 9.99999997E-7 : f32
    %293 = vector.broadcast %cst_129 : f32 to vector<9x1xf32>
    %294 = arith.addf %290, %293 : vector<9x1xf32>
    %295 = math.rsqrt %294 : vector<9x1xf32>
    %296 = vector.broadcast %295 : vector<9x1xf32> to vector<9x128xf32>
    %297 = arith.mulf %292, %296 : vector<9x128xf32>
    %298 = vector.broadcast %277 : vector<1x128xf32> to vector<9x128xf32>
    %299 = arith.mulf %297, %298 : vector<9x128xf32>
    %300 = vector.broadcast %279 : vector<1x128xf32> to vector<9x128xf32>
    %301 = arith.addf %299, %300 : vector<9x128xf32>
    %c1_130 = arith.constant 1 : index
    %c0_131 = arith.constant 0 : index
    %c0_132 = arith.constant 0 : index
    %302 = vector.load %arg10[%c1_130, %c0_131, %c0_132] : memref<2x128x512xf32, #tpu.memory_space<vmem>>, vector<1x128x512xf32>
    %303 = vector.shape_cast %302 : vector<1x128x512xf32> to vector<128x512xf32>
    %cst_133 = arith.constant dense<0.000000e+00> : vector<9x512xf32>
    %304 = tpu.matmul %301, %303, %cst_133 {dimension_numbers = #tpu.dot_dimension_numbers<[1], [0], [0], [1], [0, 0, 1, 1], [], []>} : vector<9x128xf32>, vector<128x512xf32>, vector<9x512xf32> -> vector<9x512xf32>
    %c1_134 = arith.constant 1 : index
    %c0_135 = arith.constant 0 : index
    %c0_136 = arith.constant 0 : index
    %305 = vector.load %arg11[%c1_134, %c0_135, %c0_136] : memref<2x1x512xf32, #tpu.memory_space<vmem>>, vector<1x1x512xf32>
    %306 = vector.shape_cast %305 : vector<1x1x512xf32> to vector<1x512xf32>
    %307 = vector.broadcast %306 : vector<1x512xf32> to vector<9x512xf32>
    %308 = arith.addf %304, %307 : vector<9x512xf32>
    %309 = arith.mulf %308, %308 : vector<9x512xf32>
    %310 = arith.mulf %308, %309 : vector<9x512xf32>
    %cst_137 = arith.constant 4.471500e-02 : f32
    %311 = vector.broadcast %cst_137 : f32 to vector<9x512xf32>
    %312 = arith.mulf %311, %310 : vector<9x512xf32>
    %313 = arith.addf %308, %312 : vector<9x512xf32>
    %cst_138 = arith.constant 0.797884583 : f32
    %314 = vector.broadcast %cst_138 : f32 to vector<9x512xf32>
    %315 = arith.mulf %314, %313 : vector<9x512xf32>
    %316 = math.tanh %315 : vector<9x512xf32>
    %cst_139 = arith.constant 1.000000e+00 : f32
    %317 = vector.broadcast %cst_139 : f32 to vector<9x512xf32>
    %318 = arith.addf %317, %316 : vector<9x512xf32>
    %cst_140 = arith.constant 5.000000e-01 : f32
    %319 = vector.broadcast %cst_140 : f32 to vector<9x512xf32>
    %320 = arith.mulf %319, %318 : vector<9x512xf32>
    %321 = arith.mulf %308, %320 : vector<9x512xf32>
    %c1_141 = arith.constant 1 : index
    %c0_142 = arith.constant 0 : index
    %c0_143 = arith.constant 0 : index
    %322 = vector.load %arg12[%c1_141, %c0_142, %c0_143] : memref<2x512x128xf32, #tpu.memory_space<vmem>>, vector<1x512x128xf32>
    %323 = vector.shape_cast %322 : vector<1x512x128xf32> to vector<512x128xf32>
    %cst_144 = arith.constant dense<0.000000e+00> : vector<9x128xf32>
    %324 = tpu.matmul %321, %323, %cst_144 {dimension_numbers = #tpu.dot_dimension_numbers<[1], [0], [0], [1], [0, 0, 1, 1], [], []>} : vector<9x512xf32>, vector<512x128xf32>, vector<9x128xf32> -> vector<9x128xf32>
    %325 = arith.addf %275, %324 : vector<9x128xf32>
    %c1_145 = arith.constant 1 : index
    %c0_146 = arith.constant 0 : index
    %c0_147 = arith.constant 0 : index
    %326 = vector.load %arg13[%c1_145, %c0_146, %c0_147] : memref<2x1x128xf32, #tpu.memory_space<vmem>>, vector<1x1x128xf32>
    %327 = vector.shape_cast %326 : vector<1x1x128xf32> to vector<1x128xf32>
    %328 = vector.broadcast %327 : vector<1x128xf32> to vector<9x128xf32>
    %329 = arith.addf %325, %328 : vector<9x128xf32>
    %c0_148 = arith.constant 0 : index
    %c0_149 = arith.constant 0 : index
    %330 = vector.load %arg14[%c0_148, %c0_149] : memref<1x128xf32, #tpu.memory_space<vmem>>, vector<1x128xf32>
    %c0_150 = arith.constant 0 : index
    %c0_151 = arith.constant 0 : index
    %331 = vector.load %arg15[%c0_150, %c0_151] : memref<1x128xf32, #tpu.memory_space<vmem>>, vector<1x128xf32>
    %cst_152 = arith.constant dense<0.000000e+00> : vector<9xf32>
    %332 = vector.multi_reduction <add>, %329, %cst_152 [1] : vector<9x128xf32> to vector<9xf32>
    %333 = vector.shape_cast %332 : vector<9xf32> to vector<9x1xf32>
    %cst_153 = arith.constant 1.280000e+02 : f32
    %334 = vector.broadcast %cst_153 : f32 to vector<9x1xf32>
    %335 = arith.divf %333, %334 : vector<9x1xf32>
    %336 = vector.broadcast %335 : vector<9x1xf32> to vector<9x128xf32>
    %337 = arith.subf %329, %336 : vector<9x128xf32>
    %338 = arith.mulf %337, %337 : vector<9x128xf32>
    %cst_154 = arith.constant dense<0.000000e+00> : vector<9xf32>
    %339 = vector.multi_reduction <add>, %338, %cst_154 [1] : vector<9x128xf32> to vector<9xf32>
    %340 = vector.shape_cast %339 : vector<9xf32> to vector<9x1xf32>
    %cst_155 = arith.constant 1.280000e+02 : f32
    %341 = vector.broadcast %cst_155 : f32 to vector<9x1xf32>
    %342 = arith.divf %340, %341 : vector<9x1xf32>
    %343 = vector.broadcast %335 : vector<9x1xf32> to vector<9x128xf32>
    %344 = arith.subf %329, %343 : vector<9x128xf32>
    %cst_156 = arith.constant 9.99999997E-7 : f32
    %345 = vector.broadcast %cst_156 : f32 to vector<9x1xf32>
    %346 = arith.addf %342, %345 : vector<9x1xf32>
    %347 = math.rsqrt %346 : vector<9x1xf32>
    %348 = vector.broadcast %347 : vector<9x1xf32> to vector<9x128xf32>
    %349 = arith.mulf %344, %348 : vector<9x128xf32>
    %350 = vector.broadcast %330 : vector<1x128xf32> to vector<9x128xf32>
    %351 = arith.mulf %349, %350 : vector<9x128xf32>
    %352 = vector.broadcast %331 : vector<1x128xf32> to vector<9x128xf32>
    %353 = arith.addf %351, %352 : vector<9x128xf32>
    %354 = vector.extract_strided_slice %353 {offsets = [0, 0], sizes = [1, 128], strides = [1, 1]} : vector<9x128xf32> to vector<1x128xf32>
    %cst_157 = arith.constant dense<0.000000e+00> : vector<128xf32>
    %355 = vector.multi_reduction <add>, %353, %cst_157 [0] : vector<9x128xf32> to vector<128xf32>
    %356 = vector.shape_cast %355 : vector<128xf32> to vector<1x128xf32>
    %c0_158 = arith.constant 0 : index
    %c0_159 = arith.constant 0 : index
    %c0_160 = arith.constant 0 : index
    %357 = vector.load %arg16[%c0_158, %c0_159, %c0_160] : memref<1x1x128xf32, #tpu.memory_space<vmem>>, vector<1x1x128xf32>
    %358 = vector.shape_cast %357 : vector<1x1x128xf32> to vector<1x128xf32>
    %359 = vector.shape_cast %354 : vector<1x128xf32> to vector<1x1x128xf32>
    tpu.vector_store %arg16[%c0_158, %c0_159, %c0_160], %359 {strides = array<i32>} : memref<1x1x128xf32, #tpu.memory_space<vmem>>, vector<1x1x128xf32>,
    %360 = arith.subf %356, %354 : vector<1x128xf32>
    %cst_161 = arith.constant 1.250000e-01 : f32
    %361 = vector.broadcast %cst_161 : f32 to vector<1x128xf32>
    %362 = arith.mulf %360, %361 : vector<1x128xf32>
    %c0_162 = arith.constant 0 : index
    %c0_163 = arith.constant 0 : index
    %c0_164 = arith.constant 0 : index
    %363 = vector.load %arg17[%c0_162, %c0_163, %c0_164] : memref<1x1x128xf32, #tpu.memory_space<vmem>>, vector<1x1x128xf32>
    %364 = vector.shape_cast %363 : vector<1x1x128xf32> to vector<1x128xf32>
    %365 = vector.shape_cast %362 : vector<1x128xf32> to vector<1x1x128xf32>
    tpu.vector_store %arg17[%c0_162, %c0_163, %c0_164], %365 {strides = array<i32>} : memref<1x1x128xf32, #tpu.memory_space<vmem>>, vector<1x1x128xf32>,
    return
  }
  func.func @transform_0(%arg0: i32) -> (i32, i32, i32) {
    %c0_i32 = arith.constant 0 : i32
    %c0_i32_0 = arith.constant 0 : i32
    %c0_i32_1 = arith.constant 0 : i32
    return %arg0, %c0_i32, %c0_i32_0 : i32, i32, i32
  }
  func.func @transform_1(%arg0: i32) -> (i32, i32, i32) {
    %c0_i32 = arith.constant 0 : i32
    %c0_i32_0 = arith.constant 0 : i32
    %c0_i32_1 = arith.constant 0 : i32
    %c0_i32_2 = arith.constant 0 : i32
    return %c0_i32, %c0_i32_0, %c0_i32_1 : i32, i32, i32
  }
  func.func @transform_2(%arg0: i32) -> (i32, i32, i32) {
    %c0_i32 = arith.constant 0 : i32
    %c0_i32_0 = arith.constant 0 : i32
    %c0_i32_1 = arith.constant 0 : i32
    %c0_i32_2 = arith.constant 0 : i32
    return %c0_i32, %c0_i32_0, %c0_i32_1 : i32, i32, i32
  }
  func.func @transform_3(%arg0: i32) -> (i32, i32, i32) {
    %c0_i32 = arith.constant 0 : i32
    %c0_i32_0 = arith.constant 0 : i32
    %c0_i32_1 = arith.constant 0 : i32
    %c0_i32_2 = arith.constant 0 : i32
    return %c0_i32, %c0_i32_0, %c0_i32_1 : i32, i32, i32
  }
  func.func @transform_4(%arg0: i32) -> (i32, i32, i32) {
    %c0_i32 = arith.constant 0 : i32
    %c0_i32_0 = arith.constant 0 : i32
    %c0_i32_1 = arith.constant 0 : i32
    %c0_i32_2 = arith.constant 0 : i32
    return %c0_i32, %c0_i32_0, %c0_i32_1 : i32, i32, i32
  }
  func.func @transform_5(%arg0: i32) -> (i32, i32, i32) {
    %c0_i32 = arith.constant 0 : i32
    %c0_i32_0 = arith.constant 0 : i32
    %c0_i32_1 = arith.constant 0 : i32
    %c0_i32_2 = arith.constant 0 : i32
    return %c0_i32, %c0_i32_0, %c0_i32_1 : i32, i32, i32
  }
  func.func @transform_6(%arg0: i32) -> (i32, i32, i32) {
    %c0_i32 = arith.constant 0 : i32
    %c0_i32_0 = arith.constant 0 : i32
    %c0_i32_1 = arith.constant 0 : i32
    %c0_i32_2 = arith.constant 0 : i32
    return %c0_i32, %c0_i32_0, %c0_i32_1 : i32, i32, i32
  }
  func.func @transform_7(%arg0: i32) -> (i32, i32, i32) {
    %c0_i32 = arith.constant 0 : i32
    %c0_i32_0 = arith.constant 0 : i32
    %c0_i32_1 = arith.constant 0 : i32
    %c0_i32_2 = arith.constant 0 : i32
    return %c0_i32, %c0_i32_0, %c0_i32_1 : i32, i32, i32
  }
  func.func @transform_8(%arg0: i32) -> (i32, i32, i32) {
    %c0_i32 = arith.constant 0 : i32
    %c0_i32_0 = arith.constant 0 : i32
    %c0_i32_1 = arith.constant 0 : i32
    %c0_i32_2 = arith.constant 0 : i32
    return %c0_i32, %c0_i32_0, %c0_i32_1 : i32, i32, i32
  }
  func.func @transform_9(%arg0: i32) -> (i32, i32, i32) {
    %c0_i32 = arith.constant 0 : i32
    %c0_i32_0 = arith.constant 0 : i32
    %c0_i32_1 = arith.constant 0 : i32
    %c0_i32_2 = arith.constant 0 : i32
    return %c0_i32, %c0_i32_0, %c0_i32_1 : i32, i32, i32
  }
  func.func @transform_10(%arg0: i32) -> (i32, i32, i32) {
    %c0_i32 = arith.constant 0 : i32
    %c0_i32_0 = arith.constant 0 : i32
    %c0_i32_1 = arith.constant 0 : i32
    %c0_i32_2 = arith.constant 0 : i32
    return %c0_i32, %c0_i32_0, %c0_i32_1 : i32, i32, i32
  }
  func.func @transform_11(%arg0: i32) -> (i32, i32, i32) {
    %c0_i32 = arith.constant 0 : i32
    %c0_i32_0 = arith.constant 0 : i32
    %c0_i32_1 = arith.constant 0 : i32
    %c0_i32_2 = arith.constant 0 : i32
    return %c0_i32, %c0_i32_0, %c0_i32_1 : i32, i32, i32
  }
  func.func @transform_12(%arg0: i32) -> (i32, i32, i32) {
    %c0_i32 = arith.constant 0 : i32
    %c0_i32_0 = arith.constant 0 : i32
    %c0_i32_1 = arith.constant 0 : i32
    %c0_i32_2 = arith.constant 0 : i32
    return %c0_i32, %c0_i32_0, %c0_i32_1 : i32, i32, i32
  }
  func.func @transform_13(%arg0: i32) -> (i32, i32) {
    %c0_i32 = arith.constant 0 : i32
    %c0_i32_0 = arith.constant 0 : i32
    %c0_i32_1 = arith.constant 0 : i32
    return %c0_i32, %c0_i32_0 : i32, i32
  }
  func.func @transform_14(%arg0: i32) -> (i32, i32) {
    %c0_i32 = arith.constant 0 : i32
    %c0_i32_0 = arith.constant 0 : i32
    %c0_i32_1 = arith.constant 0 : i32
    return %c0_i32, %c0_i32_0 : i32, i32
  }
  func.func @transform_15(%arg0: i32) -> (i32, i32, i32) {
    %c0_i32 = arith.constant 0 : i32
    %c0_i32_0 = arith.constant 0 : i32
    %c0_i32_1 = arith.constant 0 : i32
    return %arg0, %c0_i32, %c0_i32_0 : i32, i32, i32
  }
  func.func @transform_16(%arg0: i32) -> (i32, i32, i32) {
    %c0_i32 = arith.constant 0 : i32
    %c0_i32_0 = arith.constant 0 : i32
    %c0_i32_1 = arith.constant 0 : i32
    return %arg0, %c0_i32, %c0_i32_0 : i32, i32, i32
  }
}

</mosaic_0001>

<llo_original>
// kernel: model_forward.2
$region0: #{model_forward.2}
  #allocation0 [shape = 'u32[]', space=smem, size = 0x4, offset = 0x4, fixed_abs, tag = 'smem constant byte address 0x4 - core index']
  #allocation1 [shape = 'u32[144,128]{1,0:T(1,128)}', space=vmem, size = 0x12000, scoped, tag = 'internal scratch']
  %s0 = inlined_call_operand.vmem [shape: bf16[16,1024], index: 0, kind: input, shape index: {}]
  %s1 = inlined_call_operand.vmem [shape: bf16[1024,128], index: 1, kind: input, shape index: {}]
  %s2 = inlined_call_operand.vmem [shape: f32[1,128], index: 2, kind: input, shape index: {}]
  %s3 = inlined_call_operand.vmem [shape: f32[16,128], index: 3, kind: output, shape index: {}]
  %s4 = sld [smem:[#allocation0]]
  $region22: #{model_forward.2} parent=0
    _
  %s6 = ssub.s32 1, %s4
  %s7 = scalar_select 0, %s6, %s4
  // Predicated region
  $region2: #{model_forward.2} parent=0 // pred_check
    _
  $region3: #{model_forward.2} parent=0 // pred_check_branch
    %9 = sbr.rel (0) target = $region5
  $region4: #{model_forward.2} parent=0 // pred_region
    _
  $region5: #{model_forward.2} parent=0 // pred_fallthru
    _
  // Predicated region
  $region6: #{model_forward.2} parent=0 // pred_check
    _
  $region7: #{model_forward.2} parent=0 // pred_check_branch
    %11 = sbr.rel (0) target = $region9
  $region8: #{model_forward.2} parent=0 // pred_region
    _
  $region9: #{model_forward.2} parent=0 // pred_fallthru
    _
  // Predicated region
  $region10: #{model_forward.2} parent=0 // pred_check
    _
  $region11: #{model_forward.2} parent=0 // pred_check_branch
    %13 = sbr.rel (0) target = $region13
  $region12: #{model_forward.2} parent=0 // pred_region
    _
  $region13: #{model_forward.2} parent=0 // pred_fallthru
    _
  %v15 = vld [vmem:[%s0] sm:$0xff]
  %v16 = vld [vmem:[%s0 + $0x8] sm:$0xff]
  %v17 = vld [vmem:[%s0 + $0x10] sm:$0xff]
  %v18 = vld [vmem:[%s0 + $0x18] sm:$0xff]
  %v19 = vld [vmem:[%s0 + $0x20] sm:$0xff]
  %v20 = vld [vmem:[%s0 + $0x28] sm:$0xff]
  %v21 = vld [vmem:[%s0 + $0x30] sm:$0xff]
  %v22 = vld [vmem:[%s0 + $0x38] sm:$0xff]
  %v23 = vld [vmem:[%s1] sm:$0xf]
  %v24 = vld [vmem:[%s1 + $0x4] sm:$0xf]
  %v25 = vld [vmem:[%s1 + $0x8] sm:$0xf]
  %v26 = vld [vmem:[%s1 + $0xc] sm:$0xf]
  %v27 = vld [vmem:[%s1 + $0x10] sm:$0xf]
  %v28 = vld [vmem:[%s1 + $0x14] sm:$0xf]
  %v29 = vld [vmem:[%s1 + $0x18] sm:$0xf]
  %v30 = vld [vmem:[%s1 + $0x1c] sm:$0xf]
  %v31 = vld [vmem:[%s1 + $0x20] sm:$0xf]
  %v32 = vld [vmem:[%s1 + $0x24] sm:$0xf]
  %v33 = vld [vmem:[%s1 + $0x28] sm:$0xf]
  %v34 = vld [vmem:[%s1 + $0x2c] sm:$0xf]
  %v35 = vld [vmem:[%s1 + $0x30] sm:$0xf]
  %v36 = vld [vmem:[%s1 + $0x34] sm:$0xf]
  %v37 = vld [vmem:[%s1 + $0x38] sm:$0xf]
  %v38 = vld [vmem:[%s1 + $0x3c] sm:$0xf]
  %v39 = vld [vmem:[%s1 + $0x40] sm:$0xf]
  %v40 = vld [vmem:[%s1 + $0x44] sm:$0xf]
  %v41 = vld [vmem:[%s1 + $0x48] sm:$0xf]
  %v42 = vld [vmem:[%s1 + $0x4c] sm:$0xf]
  %v43 = vld [vmem:[%s1 + $0x50] sm:$0xf]
  %v44 = vld [vmem:[%s1 + $0x54] sm:$0xf]
  %v45 = vld [vmem:[%s1 + $0x58] sm:$0xf]
  %v46 = vld [vmem:[%s1 + $0x5c] sm:$0xf]
  %v47 = vld [vmem:[%s1 + $0x60] sm:$0xf]
  %v48 = vld [vmem:[%s1 + $0x64] sm:$0xf]
  %v49 = vld [vmem:[%s1 + $0x68] sm:$0xf]
  %v50 = vld [vmem:[%s1 + $0x6c] sm:$0xf]
  %v51 = vld [vmem:[%s1 + $0x70] sm:$0xf]
  %v52 = vld [vmem:[%s1 + $0x74] sm:$0xf]
  %v53 = vld [vmem:[%s1 + $0x78] sm:$0xf]
  %v54 = vld [vmem:[%s1 + $0x7c] sm:$0xf]
  %v55 = vld [vmem:[%s1 + $0x80] sm:$0xf]
  %v56 = vld [vmem:[%s1 + $0x84] sm:$0xf]
  %v57 = vld [vmem:[%s1 + $0x88] sm:$0xf]
  %v58 = vld [vmem:[%s1 + $0x8c] sm:$0xf]
  %v59 = vld [vmem:[%s1 + $0x90] sm:$0xf]
  %v60 = vld [vmem:[%s1 + $0x94] sm:$0xf]
  %v61 = vld [vmem:[%s1 + $0x98] sm:$0xf]
  %v62 = vld [vmem:[%s1 + $0x9c] sm:$0xf]
  %v63 = vld [vmem:[%s1 + $0xa0] sm:$0xf]
  %v64 = vld [vmem:[%s1 + $0xa4] sm:$0xf]
  %v65 = vld [vmem:[%s1 + $0xa8] sm:$0xf]
  %v66 = vld [vmem:[%s1 + $0xac] sm:$0xf]
  %v67 = vld [vmem:[%s1 + $0xb0] sm:$0xf]
  %v68 = vld [vmem:[%s1 + $0xb4] sm:$0xf]
  %v69 = vld [vmem:[%s1 + $0xb8] sm:$0xf]
  %v70 = vld [vmem:[%s1 + $0xbc] sm:$0xf]
  %v71 = vld [vmem:[%s1 + $0xc0] sm:$0xf]
  %v72 = vld [vmem:[%s1 + $0xc4] sm:$0xf]
  %v73 = vld [vmem:[%s1 + $0xc8] sm:$0xf]
  %v74 = vld [vmem:[%s1 + $0xcc] sm:$0xf]
  %v75 = vld [vmem:[%s1 + $0xd0] sm:$0xf]
  %v76 = vld [vmem:[%s1 + $0xd4] sm:$0xf]
  %v77 = vld [vmem:[%s1 + $0xd8] sm:$0xf]
  %v78 = vld [vmem:[%s1 + $0xdc] sm:$0xf]
  %v79 = vld [vmem:[%s1 + $0xe0] sm:$0xf]
  %v80 = vld [vmem:[%s1 + $0xe4] sm:$0xf]
  %v81 = vld [vmem:[%s1 + $0xe8] sm:$0xf]
  %v82 = vld [vmem:[%s1 + $0xec] sm:$0xf]
  %v83 = vld [vmem:[%s1 + $0xf0] sm:$0xf]
  %v84 = vld [vmem:[%s1 + $0xf4] sm:$0xf]
  %v85 = vld [vmem:[%s1 + $0xf8] sm:$0xf]
  %v86 = vld [vmem:[%s1 + $0xfc] sm:$0xf]
  %v87 = vld [vmem:[%s1 + $0x100] sm:$0xf]
  %v88 = vld [vmem:[%s1 + $0x104] sm:$0xf]
  %v89 = vld [vmem:[%s1 + $0x108] sm:$0xf]
  %v90 = vld [vmem:[%s1 + $0x10c] sm:$0xf]
  %v91 = vld [vmem:[%s1 + $0x110] sm:$0xf]
  %v92 = vld [vmem:[%s1 + $0x114] sm:$0xf]
  %v93 = vld [vmem:[%s1 + $0x118] sm:$0xf]
  %v94 = vld [vmem:[%s1 + $0x11c] sm:$0xf]
  %v95 = vld [vmem:[%s1 + $0x120] sm:$0xf]
  %v96 = vld [vmem:[%s1 + $0x124] sm:$0xf]
  %v97 = vld [vmem:[%s1 + $0x128] sm:$0xf]
  %v98 = vld [vmem:[%s1 + $0x12c] sm:$0xf]
  %v99 = vld [vmem:[%s1 + $0x130] sm:$0xf]
  %v100 = vld [vmem:[%s1 + $0x134] sm:$0xf]
  %v101 = vld [vmem:[%s1 + $0x138] sm:$0xf]
  %v102 = vld [vmem:[%s1 + $0x13c] sm:$0xf]
  %v103 = vld [vmem:[%s1 + $0x140] sm:$0xf]
  %v104 = vld [vmem:[%s1 + $0x144] sm:$0xf]
  %v105 = vld [vmem:[%s1 + $0x148] sm:$0xf]
  %v106 = vld [vmem:[%s1 + $0x14c] sm:$0xf]
  %v107 = vld [vmem:[%s1 + $0x150] sm:$0xf]
  %v108 = vld [vmem:[%s1 + $0x154] sm:$0xf]
  %v109 = vld [vmem:[%s1 + $0x158] sm:$0xf]
  %v110 = vld [vmem:[%s1 + $0x15c] sm:$0xf]
  %v111 = vld [vmem:[%s1 + $0x160] sm:$0xf]
  %v112 = vld [vmem:[%s1 + $0x164] sm:$0xf]
  %v113 = vld [vmem:[%s1 + $0x168] sm:$0xf]
  %v114 = vld [vmem:[%s1 + $0x16c] sm:$0xf]
  %v115 = vld [vmem:[%s1 + $0x170] sm:$0xf]
  %v116 = vld [vmem:[%s1 + $0x174] sm:$0xf]
  %v117 = vld [vmem:[%s1 + $0x178] sm:$0xf]
  %v118 = vld [vmem:[%s1 + $0x17c] sm:$0xf]
  %v119 = vld [vmem:[%s1 + $0x180] sm:$0xf]
  %v120 = vld [vmem:[%s1 + $0x184] sm:$0xf]
  %v121 = vld [vmem:[%s1 + $0x188] sm:$0xf]
  %v122 = vld [vmem:[%s1 + $0x18c] sm:$0xf]
  %v123 = vld [vmem:[%s1 + $0x190] sm:$0xf]
  %v124 = vld [vmem:[%s1 + $0x194] sm:$0xf]
  %v125 = vld [vmem:[%s1 + $0x198] sm:$0xf]
  %v126 = vld [vmem:[%s1 + $0x19c] sm:$0xf]
  %v127 = vld [vmem:[%s1 + $0x1a0] sm:$0xf]
  %v128 = vld [vmem:[%s1 + $0x1a4] sm:$0xf]
  %v129 = vld [vmem:[%s1 + $0x1a8] sm:$0xf]
  %v130 = vld [vmem:[%s1 + $0x1ac] sm:$0xf]
  %v131 = vld [vmem:[%s1 + $0x1b0] sm:$0xf]
  %v132 = vld [vmem:[%s1 + $0x1b4] sm:$0xf]
  %v133 = vld [vmem:[%s1 + $0x1b8] sm:$0xf]
  %v134 = vld [vmem:[%s1 + $0x1bc] sm:$0xf]
  %v135 = vld [vmem:[%s1 + $0x1c0] sm:$0xf]
  %v136 = vld [vmem:[%s1 + $0x1c4] sm:$0xf]
  %v137 = vld [vmem:[%s1 + $0x1c8] sm:$0xf]
  %v138 = vld [vmem:[%s1 + $0x1cc] sm:$0xf]
  %v139 = vld [vmem:[%s1 + $0x1d0] sm:$0xf]
  %v140 = vld [vmem:[%s1 + $0x1d4] sm:$0xf]
  %v141 = vld [vmem:[%s1 + $0x1d8] sm:$0xf]
  %v142 = vld [vmem:[%s1 + $0x1dc] sm:$0xf]
  %v143 = vld [vmem:[%s1 + $0x1e0] sm:$0xf]
  %v144 = vld [vmem:[%s1 + $0x1e4] sm:$0xf]
  %v145 = vld [vmem:[%s1 + $0x1e8] sm:$0xf]
  %v146 = vld [vmem:[%s1 + $0x1ec] sm:$0xf]
  %v147 = vld [vmem:[%s1 + $0x1f0] sm:$0xf]
  %v148 = vld [vmem:[%s1 + $0x1f4] sm:$0xf]
  %v149 = vld [vmem:[%s1 + $0x1f8] sm:$0xf]
  %v150 = vld [vmem:[%s1 + $0x1fc] sm:$0xf]
  %v151 = vld [vmem:[%s2] sm:$0x1]
  %v153 = vlaneseq
  %v154 = vshrl.u32 %v153, 7
  %v155 = vsub.s32 0, %v154
  %v156 = vrot.slane %v151, %v155
  %v166 = vunpack.c.l.b16 %v15
  %v167 = vunpack.c.h.b16 %v15
  %v168 = vunpack.c.l.b16 %v16
  %v169 = vunpack.c.h.b16 %v16
  %v170 = vunpack.c.l.b16 %v17
  %v171 = vunpack.c.h.b16 %v17
  %v172 = vunpack.c.l.b16 %v18
  %v173 = vunpack.c.h.b16 %v18
  %v174 = vunpack.c.l.b16 %v19
  %v175 = vunpack.c.h.b16 %v19
  %v176 = vunpack.c.l.b16 %v20
  %v177 = vunpack.c.h.b16 %v20
  %v178 = vunpack.c.l.b16 %v21
  %v179 = vunpack.c.h.b16 %v21
  %v180 = vunpack.c.l.b16 %v22
  %v181 = vunpack.c.h.b16 %v22
  %v182 = vpack.c.b16 %v174, %v166
  %v183 = vpack.c.b16 %v175, %v167
  %v184 = vpack.c.b16 %v176, %v168
  %v185 = vpack.c.b16 %v177, %v169
  %v186 = vpack.c.b16 %v178, %v170
  %v187 = vpack.c.b16 %v179, %v171
  %v188 = vpack.c.b16 %v180, %v172
  %v189 = vpack.c.b16 %v181, %v173
  %v326 = vunpack.c.l.b16 %v23
  %v327 = vunpack.c.l.b16 %v24
  %v328 = vunpack.c.l.b16 %v25
  %v329 = vunpack.c.l.b16 %v26
  %v330 = vunpack.c.l.b16 %v27
  %v331 = vunpack.c.l.b16 %v28
  %v332 = vunpack.c.l.b16 %v29
  %v333 = vunpack.c.l.b16 %v30
  %v334 = vunpack.c.l.b16 %v31
  %v335 = vunpack.c.l.b16 %v32
  %v336 = vunpack.c.l.b16 %v33
  %v337 = vunpack.c.l.b16 %v34
  %v338 = vunpack.c.l.b16 %v35
  %v339 = vunpack.c.l.b16 %v36
  %v340 = vunpack.c.l.b16 %v37
  %v341 = vunpack.c.l.b16 %v38
  %v342 = vunpack.c.l.b16 %v39
  %v343 = vunpack.c.l.b16 %v40
  %v344 = vunpack.c.l.b16 %v41
  %v345 = vunpack.c.l.b16 %v42
  %v346 = vunpack.c.l.b16 %v43
  %v347 = vunpack.c.l.b16 %v44
  %v348 = vunpack.c.l.b16 %v45
  %v349 = vunpack.c.l.b16 %v46
  %v350 = vunpack.c.l.b16 %v47
  %v351 = vunpack.c.l.b16 %v48
  %v352 = vunpack.c.l.b16 %v49
  %v353 = vunpack.c.l.b16 %v50
  %v354 = vunpack.c.l.b16 %v51
  %v355 = vunpack.c.l.b16 %v52
  %v356 = vunpack.c.l.b16 %v53
  %v357 = vunpack.c.l.b16 %v54
  %v358 = vunpack.c.l.b16 %v55
  %v359 = vunpack.c.l.b16 %v56
  %v360 = vunpack.c.l.b16 %v57
  %v361 = vunpack.c.l.b16 %v58
  %v362 = vunpack.c.l.b16 %v59
  %v363 = vunpack.c.l.b16 %v60
  %v364 = vunpack.c.l.b16 %v61
  %v365 = vunpack.c.l.b16 %v62
  %v366 = vunpack.c.l.b16 %v63
  %v367 = vunpack.c.l.b16 %v64
  %v368 = vunpack.c.l.b16 %v65
  %v369 = vunpack.c.l.b16 %v66
  %v370 = vunpack.c.l.b16 %v67
  %v371 = vunpack.c.l.b16 %v68
  %v372 = vunpack.c.l.b16 %v69
  %v373 = vunpack.c.l.b16 %v70
  %v374 = vunpack.c.l.b16 %v71
  %v375 = vunpack.c.l.b16 %v72
  %v376 = vunpack.c.l.b16 %v73
  %v377 = vunpack.c.l.b16 %v74
  %v378 = vunpack.c.l.b16 %v75
  %v379 = vunpack.c.l.b16 %v76
  %v380 = vunpack.c.l.b16 %v77
  %v381 = vunpack.c.l.b16 %v78
  %v382 = vunpack.c.l.b16 %v79
  %v383 = vunpack.c.l.b16 %v80
  %v384 = vunpack.c.l.b16 %v81
  %v385 = vunpack.c.l.b16 %v82
  %v386 = vunpack.c.l.b16 %v83
  %v387 = vunpack.c.l.b16 %v84
  %v388 = vunpack.c.l.b16 %v85
  %v389 = vunpack.c.l.b16 %v86
  %v390 = vunpack.c.l.b16 %v87
  %v391 = vunpack.c.l.b16 %v88
  %v392 = vunpack.c.l.b16 %v89
  %v393 = vunpack.c.l.b16 %v90
  %v394 = vunpack.c.l.b16 %v91
  %v395 = vunpack.c.l.b16 %v92
  %v396 = vunpack.c.l.b16 %v93
  %v397 = vunpack.c.l.b16 %v94
  %v398 = vunpack.c.l.b16 %v95
  %v399 = vunpack.c.l.b16 %v96
  %v400 = vunpack.c.l.b16 %v97
  %v401 = vunpack.c.l.b16 %v98
  %v402 = vunpack.c.l.b16 %v99
  %v403 = vunpack.c.l.b16 %v100
  %v404 = vunpack.c.l.b16 %v101
  %v405 = vunpack.c.l.b16 %v102
  %v406 = vunpack.c.l.b16 %v103
  %v407 = vunpack.c.l.b16 %v104
  %v408 = vunpack.c.l.b16 %v105
  %v409 = vunpack.c.l.b16 %v106
  %v410 = vunpack.c.l.b16 %v107
  %v411 = vunpack.c.l.b16 %v108
  %v412 = vunpack.c.l.b16 %v109
  %v413 = vunpack.c.l.b16 %v110
  %v414 = vunpack.c.l.b16 %v111
  %v415 = vunpack.c.l.b16 %v112
  %v416 = vunpack.c.l.b16 %v113
  %v417 = vunpack.c.l.b16 %v114
  %v418 = vunpack.c.l.b16 %v115
  %v419 = vunpack.c.l.b16 %v116
  %v420 = vunpack.c.l.b16 %v117
  %v421 = vunpack.c.l.b16 %v118
  %v422 = vunpack.c.l.b16 %v119
  %v423 = vunpack.c.l.b16 %v120
  %v424 = vunpack.c.l.b16 %v121
  %v425 = vunpack.c.l.b16 %v122
  %v426 = vunpack.c.l.b16 %v123
  %v427 = vunpack.c.l.b16 %v124
  %v428 = vunpack.c.l.b16 %v125
  %v429 = vunpack.c.l.b16 %v126
  %v430 = vunpack.c.l.b16 %v127
  %v431 = vunpack.c.l.b16 %v128
  %v432 = vunpack.c.l.b16 %v129
  %v433 = vunpack.c.l.b16 %v130
  %v434 = vunpack.c.l.b16 %v131
  %v435 = vunpack.c.l.b16 %v132
  %v436 = vunpack.c.l.b16 %v133
  %v437 = vunpack.c.l.b16 %v134
  %v438 = vunpack.c.l.b16 %v135
  %v439 = vunpack.c.l.b16 %v136
  %v440 = vunpack.c.l.b16 %v137
  %v441 = vunpack.c.l.b16 %v138
  %v442 = vunpack.c.l.b16 %v139
  %v443 = vunpack.c.l.b16 %v140
  %v444 = vunpack.c.l.b16 %v141
  %v445 = vunpack.c.l.b16 %v142
  %v446 = vunpack.c.l.b16 %v143
  %v447 = vunpack.c.l.b16 %v144
  %v448 = vunpack.c.l.b16 %v145
  %v449 = vunpack.c.l.b16 %v146
  %v450 = vunpack.c.l.b16 %v147
  %v451 = vunpack.c.l.b16 %v148
  %v452 = vunpack.c.l.b16 %v149
  %v453 = vunpack.c.l.b16 %v150
  %v454 = vpack.c.b16 %v327, %v326
  %v455 = vpack.c.b16 %v329, %v328
  %v456 = vpack.c.b16 %v331, %v330
  %v457 = vpack.c.b16 %v333, %v332
  %v458 = vpack.c.b16 %v335, %v334
  %v459 = vpack.c.b16 %v337, %v336
  %v460 = vpack.c.b16 %v339, %v338
  %v461 = vpack.c.b16 %v341, %v340
  %v462 = vpack.c.b16 %v343, %v342
  %v463 = vpack.c.b16 %v345, %v344
  %v464 = vpack.c.b16 %v347, %v346
  %v465 = vpack.c.b16 %v349, %v348
  %v466 = vpack.c.b16 %v351, %v350
  %v467 = vpack.c.b16 %v353, %v352
  %v468 = vpack.c.b16 %v355, %v354
  %v469 = vpack.c.b16 %v357, %v356
  %v470 = vpack.c.b16 %v359, %v358
  %v471 = vpack.c.b16 %v361, %v360
  %v472 = vpack.c.b16 %v363, %v362
  %v473 = vpack.c.b16 %v365, %v364
  %v474 = vpack.c.b16 %v367, %v366
  %v475 = vpack.c.b16 %v369, %v368
  %v476 = vpack.c.b16 %v371, %v370
  %v477 = vpack.c.b16 %v373, %v372
  %v478 = vpack.c.b16 %v375, %v374
  %v479 = vpack.c.b16 %v377, %v376
  %v480 = vpack.c.b16 %v379, %v378
  %v481 = vpack.c.b16 %v381, %v380
  %v482 = vpack.c.b16 %v383, %v382
  %v483 = vpack.c.b16 %v385, %v384
  %v484 = vpack.c.b16 %v387, %v386
  %v485 = vpack.c.b16 %v389, %v388
  %v486 = vpack.c.b16 %v391, %v390
  %v487 = vpack.c.b16 %v393, %v392
  %v488 = vpack.c.b16 %v395, %v394
  %v489 = vpack.c.b16 %v397, %v396
  %v490 = vpack.c.b16 %v399, %v398
  %v491 = vpack.c.b16 %v401, %v400
  %v492 = vpack.c.b16 %v403, %v402
  %v493 = vpack.c.b16 %v405, %v404
  %v494 = vpack.c.b16 %v407, %v406
  %v495 = vpack.c.b16 %v409, %v408
  %v496 = vpack.c.b16 %v411, %v410
  %v497 = vpack.c.b16 %v413, %v412
  %v498 = vpack.c.b16 %v415, %v414
  %v499 = vpack.c.b16 %v417, %v416
  %v500 = vpack.c.b16 %v419, %v418
  %v501 = vpack.c.b16 %v421, %v420
  %v502 = vpack.c.b16 %v423, %v422
  %v503 = vpack.c.b16 %v425, %v424
  %v504 = vpack.c.b16 %v427, %v426
  %v505 = vpack.c.b16 %v429, %v428
  %v506 = vpack.c.b16 %v431, %v430
  %v507 = vpack.c.b16 %v433, %v432
  %v508 = vpack.c.b16 %v435, %v434
  %v509 = vpack.c.b16 %v437, %v436
  %v510 = vpack.c.b16 %v439, %v438
  %v511 = vpack.c.b16 %v441, %v440
  %v512 = vpack.c.b16 %v443, %v442
  %v513 = vpack.c.b16 %v445, %v444
  %v514 = vpack.c.b16 %v447, %v446
  %v515 = vpack.c.b16 %v449, %v448
  %v516 = vpack.c.b16 %v451, %v450
  %v517 = vpack.c.b16 %v453, %v452
  %582 = vmatprep.subr.bf16.mxu0 0
  %583 = vmatpush1.bf16.msra.mxu0 %v461
  %584 = vmatprep.subr.bf16.mxu0 0
  %585 = vmatpush1.bf16.msra.mxu0 %v460
  %586 = vmatprep.subr.bf16.mxu0 0
  %587 = vmatpush1.bf16.msra.mxu0 %v459
  %588 = vmatprep.subr.bf16.mxu0 0
  %589 = vmatpush1.bf16.msra.mxu0 %v458
  %590 = vmatprep.subr.bf16.mxu0 0
  %591 = vmatpush1.bf16.msra.mxu0 %v457
  %592 = vmatprep.subr.bf16.mxu0 0
  %593 = vmatpush1.bf16.msra.mxu0 %v456
  %594 = vmatprep.subr.bf16.mxu0 0
  %595 = vmatpush1.bf16.msra.mxu0 %v455
  %596 = vmatprep.subr.bf16.mxu0 0
  %597 = vmatpush1.bf16.msra.mxu0 %v454
  %598 = vmatprep.subr.bf16.mxu0 0
  %599 = vmatpush2.bf16.msra.mxu0 %v469
  %600 = vmatprep.subr.bf16.mxu0 0
  %601 = vmatpush2.bf16.msra.mxu0 %v468
  %602 = vmatprep.subr.bf16.mxu0 0
  %603 = vmatpush2.bf16.msra.mxu0 %v467
  %604 = vmatprep.subr.bf16.mxu0 0
  %605 = vmatpush2.bf16.msra.mxu0 %v466
  %606 = vmatprep.subr.bf16.mxu0 0
  %607 = vmatpush2.bf16.msra.mxu0 %v465
  %608 = vmatprep.subr.bf16.mxu0 0
  %609 = vmatpush2.bf16.msra.mxu0 %v464
  %610 = vmatprep.subr.bf16.mxu0 0
  %611 = vmatpush2.bf16.msra.mxu0 %v463
  %612 = vmatprep.subr.bf16.mxu0 0
  %613 = vmatpush2.bf16.msra.mxu0 %v462
  %614 = vmatprep.mubr.bf16.mxu0 %v183
  %615 = vmatmul.mubr.bf16.gmra.mxu0 %v182
  %v616 = vpop.f32.mrf.mxu0
  %v617 = vadd.f32 %v156, %v616
  %v618 = vpop.f32.mrf.mxu0
  %v619 = vpop.f32.mrf.mxu0
  %v620 = vadd.f32 %v156, %v619
  %v621 = vpop.f32.mrf.mxu0
  %622 = vdwg.mxu0
  %623 = vmatprep.subr.bf16.mxu0 0
  %624 = vmatpush1.bf16.msra.mxu0 %v477
  %625 = vmatprep.subr.bf16.mxu0 0
  %626 = vmatpush1.bf16.msra.mxu0 %v476
  %627 = vmatprep.subr.bf16.mxu0 0
  %628 = vmatpush1.bf16.msra.mxu0 %v475
  %629 = vmatprep.subr.bf16.mxu0 0
  %630 = vmatpush1.bf16.msra.mxu0 %v474
  %631 = vmatprep.subr.bf16.mxu0 0
  %632 = vmatpush1.bf16.msra.mxu0 %v473
  %633 = vmatprep.subr.bf16.mxu0 0
  %634 = vmatpush1.bf16.msra.mxu0 %v472
  %635 = vmatprep.subr.bf16.mxu0 0
  %636 = vmatpush1.bf16.msra.mxu0 %v471
  %637 = vmatprep.subr.bf16.mxu0 0
  %638 = vmatpush1.bf16.msra.mxu0 %v470
  %639 = vmatprep.subr.bf16.mxu0 0
  %640 = vmatpush2.bf16.msra.mxu0 %v485
  %641 = vmatprep.subr.bf16.mxu0 0
  %642 = vmatpush2.bf16.msra.mxu0 %v484
  %643 = vmatprep.subr.bf16.mxu0 0
  %644 = vmatpush2.bf16.msra.mxu0 %v483
  %645 = vmatprep.subr.bf16.mxu0 0
  %646 = vmatpush2.bf16.msra.mxu0 %v482
  %647 = vmatprep.subr.bf16.mxu0 0
  %648 = vmatpush2.bf16.msra.mxu0 %v481
  %649 = vmatprep.subr.bf16.mxu0 0
  %650 = vmatpush2.bf16.msra.mxu0 %v480
  %651 = vmatprep.subr.bf16.mxu0 0
  %652 = vmatpush2.bf16.msra.mxu0 %v479
  %653 = vmatprep.subr.bf16.mxu0 0
  %654 = vmatpush2.bf16.msra.mxu0 %v478
  %655 = vmatprep.mubr.bf16.mxu0 %v185
  %656 = vmatmul.mubr.bf16.gmra.mxu0 %v184
  %v657 = vpop.f32.mrf.mxu0
  %v658 = vadd.f32 %v617, %v657
  %v659 = vpop.f32.mrf.mxu0
  %v660 = vpop.f32.mrf.mxu0
  %v661 = vadd.f32 %v620, %v660
  %v662 = vpop.f32.mrf.mxu0
  %663 = vdwg.mxu0
  %664 = vmatprep.subr.bf16.mxu0 0
  %665 = vmatpush1.bf16.msra.mxu0 %v493
  %666 = vmatprep.subr.bf16.mxu0 0
  %667 = vmatpush1.bf16.msra.mxu0 %v492
  %668 = vmatprep.subr.bf16.mxu0 0
  %669 = vmatpush1.bf16.msra.mxu0 %v491
  %670 = vmatprep.subr.bf16.mxu0 0
  %671 = vmatpush1.bf16.msra.mxu0 %v490
  %672 = vmatprep.subr.bf16.mxu0 0
  %673 = vmatpush1.bf16.msra.mxu0 %v489
  %674 = vmatprep.subr.bf16.mxu0 0
  %675 = vmatpush1.bf16.msra.mxu0 %v488
  %676 = vmatprep.subr.bf16.mxu0 0
  %677 = vmatpush1.bf16.msra.mxu0 %v487
  %678 = vmatprep.subr.bf16.mxu0 0
  %679 = vmatpush1.bf16.msra.mxu0 %v486
  %680 = vmatprep.subr.bf16.mxu0 0
  %681 = vmatpush2.bf16.msra.mxu0 %v501
  %682 = vmatprep.subr.bf16.mxu0 0
  %683 = vmatpush2.bf16.msra.mxu0 %v500
  %684 = vmatprep.subr.bf16.mxu0 0
  %685 = vmatpush2.bf16.msra.mxu0 %v499
  %686 = vmatprep.subr.bf16.mxu0 0
  %687 = vmatpush2.bf16.msra.mxu0 %v498
  %688 = vmatprep.subr.bf16.mxu0 0
  %689 = vmatpush2.bf16.msra.mxu0 %v497
  %690 = vmatprep.subr.bf16.mxu0 0
  %691 = vmatpush2.bf16.msra.mxu0 %v496
  %692 = vmatprep.subr.bf16.mxu0 0
  %693 = vmatpush2.bf16.msra.mxu0 %v495
  %694 = vmatprep.subr.bf16.mxu0 0
  %695 = vmatpush2.bf16.msra.mxu0 %v494
  %696 = vmatprep.mubr.bf16.mxu0 %v187
  %697 = vmatmul.mubr.bf16.gmra.mxu0 %v186
  %v698 = vpop.f32.mrf.mxu0
  %v699 = vadd.f32 %v658, %v698
  %v700 = vpop.f32.mrf.mxu0
  %v701 = vpop.f32.mrf.mxu0
  %v702 = vadd.f32 %v661, %v701
  %v703 = vpop.f32.mrf.mxu0
  %704 = vdwg.mxu0
  %705 = vmatprep.subr.bf16.mxu0 0
  %706 = vmatpush1.bf16.msra.mxu0 %v509
  %707 = vmatprep.subr.bf16.mxu0 0
  %708 = vmatpush1.bf16.msra.mxu0 %v508
  %709 = vmatprep.subr.bf16.mxu0 0
  %710 = vmatpush1.bf16.msra.mxu0 %v507
  %711 = vmatprep.subr.bf16.mxu0 0
  %712 = vmatpush1.bf16.msra.mxu0 %v506
  %713 = vmatprep.subr.bf16.mxu0 0
  %714 = vmatpush1.bf16.msra.mxu0 %v505
  %715 = vmatprep.subr.bf16.mxu0 0
  %716 = vmatpush1.bf16.msra.mxu0 %v504
  %717 = vmatprep.subr.bf16.mxu0 0
  %718 = vmatpush1.bf16.msra.mxu0 %v503
  %719 = vmatprep.subr.bf16.mxu0 0
  %720 = vmatpush1.bf16.msra.mxu0 %v502
  %721 = vmatprep.subr.bf16.mxu0 0
  %722 = vmatpush2.bf16.msra.mxu0 %v517
  %723 = vmatprep.subr.bf16.mxu0 0
  %724 = vmatpush2.bf16.msra.mxu0 %v516
  %725 = vmatprep.subr.bf16.mxu0 0
  %726 = vmatpush2.bf16.msra.mxu0 %v515
  %727 = vmatprep.subr.bf16.mxu0 0
  %728 = vmatpush2.bf16.msra.mxu0 %v514
  %729 = vmatprep.subr.bf16.mxu0 0
  %730 = vmatpush2.bf16.msra.mxu0 %v513
  %731 = vmatprep.subr.bf16.mxu0 0
  %732 = vmatpush2.bf16.msra.mxu0 %v512
  %733 = vmatprep.subr.bf16.mxu0 0
  %734 = vmatpush2.bf16.msra.mxu0 %v511
  %735 = vmatprep.subr.bf16.mxu0 0
  %736 = vmatpush2.bf16.msra.mxu0 %v510
  %737 = vmatprep.mubr.bf16.mxu0 %v189
  %738 = vmatmul.mubr.bf16.gmra.mxu0 %v188
  %v739 = vpop.f32.mrf.mxu0
  %v740 = vadd.f32 %v699, %v739
  %v741 = vpop.f32.mrf.mxu0
  %v742 = vpop.f32.mrf.mxu0
  %v743 = vadd.f32 %v702, %v742
  %v744 = vpop.f32.mrf.mxu0
  %745 = vdwg.mxu0
  %v746 = vmul.f32 %v740, 0.999995
  %v747 = vmul.f32 %v743, 0.999995
  %vm748 = vcmp.gt.f32.partialorder %v746, 0.0
  %vm749 = vcmp.gt.f32.partialorder %v747, 0.0
  %v750 = vmul.f32 %v746, 1.442695
  %v751 = vpow.pop %v750
  %v752 = vmul.f32 %v747, 1.442695
  %v753 = vpow.pop %v752
  %v754 = vsub.f32 %v751, 1.0
  %v755 = vsub.f32 %v753, 1.0
  %v756 = vmul.f32 %v754, 1.6732632
  %v757 = vmul.f32 %v755, 1.6732632
  %v758 = vsel %vm748, %v746, %v756
  %v759 = vsel %vm749, %v747, %v757
  %v760 = vmul.f32 %v758, 1.050701
  %v761 = vmul.f32 %v759, 1.050701
  %762 = vst [vmem:[%s3] sm:$0xff] %v760
  %763 = vst [vmem:[%s3 + $0x8] sm:$0xff] %v761
  // Predicated region
  $region14: #{model_forward.2} parent=0 // pred_check
    _
  $region15: #{model_forward.2} parent=0 // pred_check_branch
    %765 = sbr.rel (0) target = $region17
  $region16: #{model_forward.2} parent=0 // pred_region
    _
  $region17: #{model_forward.2} parent=0 // pred_fallthru
    _
  // Predicated region
  $region18: #{model_forward.2} parent=0 // pred_check
    _
  $region19: #{model_forward.2} parent=0 // pred_check_branch
    %767 = sbr.rel (0) target = $region21
  $region20: #{model_forward.2} parent=0 // pred_region
    _
  $region21: #{model_forward.2} parent=0 // pred_fallthru
    _

// kernel: model_forward.3
$region0: #{model_forward.3}
  #allocation0 [shape = 'u32[]', space=smem, size = 0x4, offset = 0x4, fixed_abs, tag = 'smem constant byte address 0x4 - core index']
  #allocation1 [shape = 'u32[144,128]{1,0:T(1,128)}', space=vmem, size = 0x12000, scoped, tag = 'internal scratch']
  %s0 = inlined_call_operand.vmem [shape: f32[2,9,128], index: 0, kind: input, shape index: {}]
  %s1 = inlined_call_operand.vmem [shape: f32[2,1,128], index: 1, kind: input, shape index: {}]
  %s2 = inlined_call_operand.vmem [shape: f32[2,1,128], index: 2, kind: input, shape index: {}]
  %s3 = inlined_call_operand.hbm [shape: f32[2,128,384], index: 3, kind: input, shape index: {}]
  %s4 = inlined_call_operand.vmem [shape: f32[2,1,384], index: 4, kind: input, shape index: {}]
  %s5 = inlined_call_operand.vmem [shape: f32[2,128,128], index: 5, kind: input, shape index: {}]
  %s6 = inlined_call_operand.vmem [shape: f32[2,1,128], index: 6, kind: input, shape index: {}]
  %s7 = inlined_call_operand.hbm [shape: f32[2,1,128], index: 7, kind: input, shape index: {}]
  %s8 = inlined_call_operand.hbm [shape: f32[2,1,128], index: 8, kind: input, shape index: {}]
  %s9 = inlined_call_operand.vmem [shape: f32[2,128,512], index: 9, kind: input, shape index: {}]
  %s10 = inlined_call_operand.vmem [shape: f32[2,1,512], index: 10, kind: input, shape index: {}]
  %s11 = inlined_call_operand.vmem [shape: f32[2,512,128], index: 11, kind: input, shape index: {}]
  %s12 = inlined_call_operand.hbm [shape: f32[2,1,128], index: 12, kind: input, shape index: {}]
  %s13 = inlined_call_operand.vmem [shape: f32[1,128], index: 13, kind: input, shape index: {}]
  %s14 = inlined_call_operand.vmem [shape: f32[1,128], index: 14, kind: input, shape index: {}]
  %s15 = inlined_call_operand.vmem [shape: f32[2,1,128], index: 15, kind: output, shape index: {0}]
  %s16 = inlined_call_operand.vmem [shape: f32[2,1,128], index: 16, kind: output, shape index: {1}]
  %17 = xla_tuple %s15, %s16
  %s18 = sld [smem:[#allocation0]]
  $region117: #{model_forward.3} parent=0
    _
  %s20 = ssub.s32 1, %s18
  %s21 = scalar_select 0, %s20, %s18
  $region1: #{model_forward.3} parent=0
    #allocation2 [shape = 'u8[393216]{0}', space=vmem, size = 0x60000, scoped, tag = 'input window, operand 3, single buffered']
    #allocation3 [shape = 's32[2]{0}', space=sflag, size = 0x8, scoped, tag = 'scoped memory for model_forward.3']
    #allocation4 [shape = 'u8[1024]{0}', space=vmem, size = 0x400, scoped, tag = 'input window, operand 7, single buffered']
    #allocation5 [shape = 's32[1]{0}', space=sflag, size = 0x4, scoped, tag = 'scoped memory for model_forward.3']
    #allocation6 [shape = 'u8[1024]{0}', space=vmem, size = 0x400, scoped, tag = 'input window, operand 8, single buffered']
    #allocation7 [shape = 'u8[1024]{0}', space=vmem, size = 0x400, scoped, tag = 'input window, operand 12, single buffered']
    #allocation8 [shape = 's32[1]{0}', space=sflag, size = 0x4, scoped, tag = 'scoped memory for model_forward.3']
    %22 = vsyncpa [#allocation3], 0
    %23 = vsyncpa [#allocation5], 0
    %24 = vsyncpa [#allocation8], 0
    loop: start=0, step=1, limit=4
    $region2: #{model_forward.3} parent=1 // loop_pre_header
      _
    $region3: #{model_forward.3} parent=1 // loop_header
      %s26 = sphi 0, %s30
      %p27 = scmp.ge.s32.totalorder %s26, 4
      %s36 = sphi 0, %s38
      %s39 = sphi 0, %s36
      %s40 = sphi 0, %s39
      %s56 = sphi 0, %s40
      %s60 = sphi 0, %s60
      %s62 = sphi 0, %s60
      %s63 = sphi 0, %s62
      %s77 = sphi 0, %s63
      %s81 = sphi 0, %s81
      %s83 = sphi 0, %s81
      %s84 = sphi 0, %s83
      %s98 = sphi 0, %s84
      %s102 = sphi 0, %s102
      %s104 = sphi 0, %s102
      %s105 = sphi 0, %s104
      %s119 = sphi 0, %s105
      %s123 = sphi 0, %s123
      %s125 = sphi 0, %s123
      %s126 = sphi 0, %s125
      %s140 = sphi 0, %s126
      %s144 = sphi 0, %s144
      %s146 = sphi 0, %s144
      %s147 = sphi 0, %s146
      %s161 = sphi 0, %s147
      %s165 = sphi 0, %s165
      %s167 = sphi 0, %s165
      %s168 = sphi 0, %s167
      %s182 = sphi 0, %s168
      %s186 = sphi 0, %s186
      %s188 = sphi 0, %s186
      %s189 = sphi 0, %s188
      %s203 = sphi 0, %s189
      %s207 = sphi 0, %s207
      %s209 = sphi 0, %s207
      %s210 = sphi 0, %s209
      %s224 = sphi 0, %s210
      %s228 = sphi 0, %s228
      %s230 = sphi 0, %s228
      %s231 = sphi 0, %s230
      %s245 = sphi 0, %s231
      %s249 = sphi 0, %s249
      %s251 = sphi 0, %s249
      %s252 = sphi 0, %s251
      %s266 = sphi 0, %s252
      %s270 = sphi 0, %s270
      %s272 = sphi 0, %s270
      %s273 = sphi 0, %s272
      %s287 = sphi 0, %s273
      %s291 = sphi 0, %s291
      %s293 = sphi 0, %s291
      %s294 = sphi 0, %s293
      %s308 = sphi 0, %s294
      %s312 = sphi 0, %s312
      %s314 = sphi 0, %s312
      %s315 = sphi 0, %s314
      %s329 = sphi 0, %s315
      %s333 = sphi 0, %s333
      %s335 = sphi 0, %s333
      %s336 = sphi 0, %s335
      %s350 = sphi 0, %s336
      %s356 = sphi 0, %s358
      %s359 = sphi 0, %s356
      %s360 = sphi 0, %s359
      %s376 = sphi 0, %s360
      %s382 = sphi 0, %s384
      %s385 = sphi 0, %s382
      %s386 = sphi 0, %s385
      %s402 = sphi 0, %s386
    $region4: #{model_forward.3} parent=1 // loop_header_branch
      %29 = sbr.rel (%p27) target = $region8
    $region5: #{model_forward.3} parent=1 // loop_body
      %s31 = ssub.s32 %s26, 1
      %s32 = ssub.s32 %s26, 2
      %s33 = sadd.s32 %s26, 1
      %s34 = ssub.s32 %s26, %s33
      %p35 = scmp.eq.s32.totalorder %s34, 0
      %s37 = sadd.s32 %s36, 1
      %s38 = scalar_select %p35, %s36, %s37
      %p41 = pneg %p35
      %p42 = scmp.eq.s32.totalorder %s26, 1
      %p43 = por %p41, %p42
      %p44 = scmp.ne.s32.totalorder %s36, %s39
      %p45 = scmp.eq.s32.totalorder %s26, 0
      %p46 = por %p44, %p45
      %p47 = scmp.ne.s32.totalorder %s36, %s39
      %p48 = scmp.eq.s32.totalorder %s31, 1
      %p49 = por %p47, %p48
      %p50 = scmp.ne.s32.totalorder %s39, %s40
      %p51 = scmp.eq.s32.totalorder %s31, 0
      %p52 = por %p50, %p51
      %p53 = scmp.ne.s32.totalorder %s39, %s40
      %p54 = scmp.eq.s32.totalorder %s32, 1
      %p55 = por %p53, %p54
      %p57 = scmp.ne.s32.totalorder %s40, %s56
      %p58 = scmp.eq.s32.totalorder %s32, 0
      %p59 = por %p57, %p58
      %s61 = sadd.s32 %s60, 1
      %p64 = scmp.eq.s32.totalorder %s26, 1
      %p65 = scmp.ne.s32.totalorder %s60, %s62
      %p66 = scmp.eq.s32.totalorder %s26, 0
      %p67 = por %p65, %p66
      %p68 = scmp.ne.s32.totalorder %s60, %s62
      %p69 = scmp.eq.s32.totalorder %s31, 1
      %p70 = por %p68, %p69
      %p71 = scmp.ne.s32.totalorder %s62, %s63
      %p72 = scmp.eq.s32.totalorder %s31, 0
      %p73 = por %p71, %p72
      %p74 = scmp.ne.s32.totalorder %s62, %s63
      %p75 = scmp.eq.s32.totalorder %s32, 1
      %p76 = por %p74, %p75
      %p78 = scmp.ne.s32.totalorder %s63, %s77
      %p79 = scmp.eq.s32.totalorder %s32, 0
      %p80 = por %p78, %p79
      %s82 = sadd.s32 %s81, 1
      %p85 = scmp.eq.s32.totalorder %s26, 1
      %p86 = scmp.ne.s32.totalorder %s81, %s83
      %p87 = scmp.eq.s32.totalorder %s26, 0
      %p88 = por %p86, %p87
      %p89 = scmp.ne.s32.totalorder %s81, %s83
      %p90 = scmp.eq.s32.totalorder %s31, 1
      %p91 = por %p89, %p90
      %p92 = scmp.ne.s32.totalorder %s83, %s84
      %p93 = scmp.eq.s32.totalorder %s31, 0
      %p94 = por %p92, %p93
      %p95 = scmp.ne.s32.totalorder %s83, %s84
      %p96 = scmp.eq.s32.totalorder %s32, 1
      %p97 = por %p95, %p96
      %p99 = scmp.ne.s32.totalorder %s84, %s98
      %p100 = scmp.eq.s32.totalorder %s32, 0
      %p101 = por %p99, %p100
      %s103 = sadd.s32 %s102, 1
      %p106 = scmp.eq.s32.totalorder %s26, 1
      %p107 = scmp.ne.s32.totalorder %s102, %s104
      %p108 = scmp.eq.s32.totalorder %s26, 0
      %p109 = por %p107, %p108
      %p110 = scmp.ne.s32.totalorder %s102, %s104
      %p111 = scmp.eq.s32.totalorder %s31, 1
      %p112 = por %p110, %p111
      %p113 = scmp.ne.s32.totalorder %s104, %s105
      %p114 = scmp.eq.s32.totalorder %s31, 0
      %p115 = por %p113, %p114
      %p116 = scmp.ne.s32.totalorder %s104, %s105
      %p117 = scmp.eq.s32.totalorder %s32, 1
      %p118 = por %p116, %p117
      %p120 = scmp.ne.s32.totalorder %s105, %s119
      %p121 = scmp.eq.s32.totalorder %s32, 0
      %p122 = por %p120, %p121
      %s124 = sadd.s32 %s123, 1
      %p127 = scmp.eq.s32.totalorder %s26, 1
      %p128 = scmp.ne.s32.totalorder %s123, %s125
      %p129 = scmp.eq.s32.totalorder %s26, 0
      %p130 = por %p128, %p129
      %p131 = scmp.ne.s32.totalorder %s123, %s125
      %p132 = scmp.eq.s32.totalorder %s31, 1
      %p133 = por %p131, %p132
      %p134 = scmp.ne.s32.totalorder %s125, %s126
      %p135 = scmp.eq.s32.totalorder %s31, 0
      %p136 = por %p134, %p135
      %p137 = scmp.ne.s32.totalorder %s125, %s126
      %p138 = scmp.eq.s32.totalorder %s32, 1
      %p139 = por %p137, %p138
      %p141 = scmp.ne.s32.totalorder %s126, %s140
      %p142 = scmp.eq.s32.totalorder %s32, 0
      %p143 = por %p141, %p142
      %s145 = sadd.s32 %s144, 1
      %p148 = scmp.eq.s32.totalorder %s26, 1
      %p149 = scmp.ne.s32.totalorder %s144, %s146
      %p150 = scmp.eq.s32.totalorder %s26, 0
      %p151 = por %p149, %p150
      %p152 = scmp.ne.s32.totalorder %s144, %s146
      %p153 = scmp.eq.s32.totalorder %s31, 1
      %p154 = por %p152, %p153
      %p155 = scmp.ne.s32.totalorder %s146, %s147
      %p156 = scmp.eq.s32.totalorder %s31, 0
      %p157 = por %p155, %p156
      %p158 = scmp.ne.s32.totalorder %s146, %s147
      %p159 = scmp.eq.s32.totalorder %s32, 1
      %p160 = por %p158, %p159
      %p162 = scmp.ne.s32.totalorder %s147, %s161
      %p163 = scmp.eq.s32.totalorder %s32, 0
      %p164 = por %p162, %p163
      %s166 = sadd.s32 %s165, 1
      %p169 = scmp.eq.s32.totalorder %s26, 1
      %p170 = scmp.ne.s32.totalorder %s165, %s167
      %p171 = scmp.eq.s32.totalorder %s26, 0
      %p172 = por %p170, %p171
      %p173 = scmp.ne.s32.totalorder %s165, %s167
      %p174 = scmp.eq.s32.totalorder %s31, 1
      %p175 = por %p173, %p174
      %p176 = scmp.ne.s32.totalorder %s167, %s168
      %p177 = scmp.eq.s32.totalorder %s31, 0
      %p178 = por %p176, %p177
      %p179 = scmp.ne.s32.totalorder %s167, %s168
      %p180 = scmp.eq.s32.totalorder %s32, 1
      %p181 = por %p179, %p180
      %p183 = scmp.ne.s32.totalorder %s168, %s182
      %p184 = scmp.eq.s32.totalorder %s32, 0
      %p185 = por %p183, %p184
      %s187 = sadd.s32 %s186, 1
      %p190 = scmp.eq.s32.totalorder %s26, 1
      %p191 = scmp.ne.s32.totalorder %s186, %s188
      %p192 = scmp.eq.s32.totalorder %s26, 0
      %p193 = por %p191, %p192
      %p194 = scmp.ne.s32.totalorder %s186, %s188
      %p195 = scmp.eq.s32.totalorder %s31, 1
      %p196 = por %p194, %p195
      %p197 = scmp.ne.s32.totalorder %s188, %s189
      %p198 = scmp.eq.s32.totalorder %s31, 0
      %p199 = por %p197, %p198
      %p200 = scmp.ne.s32.totalorder %s188, %s189
      %p201 = scmp.eq.s32.totalorder %s32, 1
      %p202 = por %p200, %p201
      %p204 = scmp.ne.s32.totalorder %s189, %s203
      %p205 = scmp.eq.s32.totalorder %s32, 0
      %p206 = por %p204, %p205
      %s208 = sadd.s32 %s207, 1
      %p211 = scmp.eq.s32.totalorder %s26, 1
      %p212 = scmp.ne.s32.totalorder %s207, %s209
      %p213 = scmp.eq.s32.totalorder %s26, 0
      %p214 = por %p212, %p213
      %p215 = scmp.ne.s32.totalorder %s207, %s209
      %p216 = scmp.eq.s32.totalorder %s31, 1
      %p217 = por %p215, %p216
      %p218 = scmp.ne.s32.totalorder %s209, %s210
      %p219 = scmp.eq.s32.totalorder %s31, 0
      %p220 = por %p218, %p219
      %p221 = scmp.ne.s32.totalorder %s209, %s210
      %p222 = scmp.eq.s32.totalorder %s32, 1
      %p223 = por %p221, %p222
      %p225 = scmp.ne.s32.totalorder %s210, %s224
      %p226 = scmp.eq.s32.totalorder %s32, 0
      %p227 = por %p225, %p226
      %s229 = sadd.s32 %s228, 1
      %p232 = scmp.eq.s32.totalorder %s26, 1
      %p233 = scmp.ne.s32.totalorder %s228, %s230
      %p234 = scmp.eq.s32.totalorder %s26, 0
      %p235 = por %p233, %p234
      %p236 = scmp.ne.s32.totalorder %s228, %s230
      %p237 = scmp.eq.s32.totalorder %s31, 1
      %p238 = por %p236, %p237
      %p239 = scmp.ne.s32.totalorder %s230, %s231
      %p240 = scmp.eq.s32.totalorder %s31, 0
      %p241 = por %p239, %p240
      %p242 = scmp.ne.s32.totalorder %s230, %s231
      %p243 = scmp.eq.s32.totalorder %s32, 1
      %p244 = por %p242, %p243
      %p246 = scmp.ne.s32.totalorder %s231, %s245
      %p247 = scmp.eq.s32.totalorder %s32, 0
      %p248 = por %p246, %p247
      %s250 = sadd.s32 %s249, 1
      %p253 = scmp.eq.s32.totalorder %s26, 1
      %p254 = scmp.ne.s32.totalorder %s249, %s251
      %p255 = scmp.eq.s32.totalorder %s26, 0
      %p256 = por %p254, %p255
      %p257 = scmp.ne.s32.totalorder %s249, %s251
      %p258 = scmp.eq.s32.totalorder %s31, 1
      %p259 = por %p257, %p258
      %p260 = scmp.ne.s32.totalorder %s251, %s252
      %p261 = scmp.eq.s32.totalorder %s31, 0
      %p262 = por %p260, %p261
      %p263 = scmp.ne.s32.totalorder %s251, %s252
      %p264 = scmp.eq.s32.totalorder %s32, 1
      %p265 = por %p263, %p264
      %p267 = scmp.ne.s32.totalorder %s252, %s266
      %p268 = scmp.eq.s32.totalorder %s32, 0
      %p269 = por %p267, %p268
      %s271 = sadd.s32 %s270, 1
      %p274 = scmp.eq.s32.totalorder %s26, 1
      %p275 = scmp.ne.s32.totalorder %s270, %s272
      %p276 = scmp.eq.s32.totalorder %s26, 0
      %p277 = por %p275, %p276
      %p278 = scmp.ne.s32.totalorder %s270, %s272
      %p279 = scmp.eq.s32.totalorder %s31, 1
      %p280 = por %p278, %p279
      %p281 = scmp.ne.s32.totalorder %s272, %s273
      %p282 = scmp.eq.s32.totalorder %s31, 0
      %p283 = por %p281, %p282
      %p284 = scmp.ne.s32.totalorder %s272, %s273
      %p285 = scmp.eq.s32.totalorder %s32, 1
      %p286 = por %p284, %p285
      %p288 = scmp.ne.s32.totalorder %s273, %s287
      %p289 = scmp.eq.s32.totalorder %s32, 0
      %p290 = por %p288, %p289
      %s292 = sadd.s32 %s291, 1
      %p295 = scmp.eq.s32.totalorder %s26, 1
      %p296 = scmp.ne.s32.totalorder %s291, %s293
      %p297 = scmp.eq.s32.totalorder %s26, 0
      %p298 = por %p296, %p297
      %p299 = scmp.ne.s32.totalorder %s291, %s293
      %p300 = scmp.eq.s32.totalorder %s31, 1
      %p301 = por %p299, %p300
      %p302 = scmp.ne.s32.totalorder %s293, %s294
      %p303 = scmp.eq.s32.totalorder %s31, 0
      %p304 = por %p302, %p303
      %p305 = scmp.ne.s32.totalorder %s293, %s294
      %p306 = scmp.eq.s32.totalorder %s32, 1
      %p307 = por %p305, %p306
      %p309 = scmp.ne.s32.totalorder %s294, %s308
      %p310 = scmp.eq.s32.totalorder %s32, 0
      %p311 = por %p309, %p310
      %s313 = sadd.s32 %s312, 1
      %p316 = scmp.eq.s32.totalorder %s26, 1
      %p317 = scmp.ne.s32.totalorder %s312, %s314
      %p318 = scmp.eq.s32.totalorder %s26, 0
      %p319 = por %p317, %p318
      %p320 = scmp.ne.s32.totalorder %s312, %s314
      %p321 = scmp.eq.s32.totalorder %s31, 1
      %p322 = por %p320, %p321
      %p323 = scmp.ne.s32.totalorder %s314, %s315
      %p324 = scmp.eq.s32.totalorder %s31, 0
      %p325 = por %p323, %p324
      %p326 = scmp.ne.s32.totalorder %s314, %s315
      %p327 = scmp.eq.s32.totalorder %s32, 1
      %p328 = por %p326, %p327
      %p330 = scmp.ne.s32.totalorder %s315, %s329
      %p331 = scmp.eq.s32.totalorder %s32, 0
      %p332 = por %p330, %p331
      %s334 = sadd.s32 %s333, 1
      %p337 = scmp.eq.s32.totalorder %s26, 1
      %p338 = scmp.ne.s32.totalorder %s333, %s335
      %p339 = scmp.eq.s32.totalorder %s26, 0
      %p340 = por %p338, %p339
      %p341 = scmp.ne.s32.totalorder %s333, %s335
      %p342 = scmp.eq.s32.totalorder %s31, 1
      %p343 = por %p341, %p342
      %p344 = scmp.ne.s32.totalorder %s335, %s336
      %p345 = scmp.eq.s32.totalorder %s31, 0
      %p346 = por %p344, %p345
      %p347 = scmp.ne.s32.totalorder %s335, %s336
      %p348 = scmp.eq.s32.totalorder %s32, 1
      %p349 = por %p347, %p348
      %p351 = scmp.ne.s32.totalorder %s336, %s350
      %p352 = scmp.eq.s32.totalorder %s32, 0
      %p353 = por %p351, %p352
      %s354 = ssub.s32 %s26, %s33
      %p355 = scmp.eq.s32.totalorder %s354, 0
      %s357 = sadd.s32 %s356, 1
      %s358 = scalar_select %p355, %s356, %s357
      %p361 = pneg %p355
      %p362 = scmp.eq.s32.totalorder %s26, 1
      %p363 = por %p361, %p362
      %p364 = scmp.ne.s32.totalorder %s356, %s359
      %p365 = scmp.eq.s32.totalorder %s26, 0
      %p366 = por %p364, %p365
      %p367 = scmp.ne.s32.totalorder %s356, %s359
      %p368 = scmp.eq.s32.totalorder %s31, 1
      %p369 = por %p367, %p368
      %p370 = scmp.ne.s32.totalorder %s359, %s360
      %p371 = scmp.eq.s32.totalorder %s31, 0
      %p372 = por %p370, %p371
      %p373 = scmp.ne.s32.totalorder %s359, %s360
      %p374 = scmp.eq.s32.totalorder %s32, 1
      %p375 = por %p373, %p374
      %p377 = scmp.ne.s32.totalorder %s360, %s376
      %p378 = scmp.eq.s32.totalorder %s32, 0
      %p379 = por %p377, %p378
      %s380 = ssub.s32 %s26, %s33
      %p381 = scmp.eq.s32.totalorder %s380, 0
      %s383 = sadd.s32 %s382, 1
      %s384 = scalar_select %p381, %s382, %s383
      %p387 = pneg %p381
      %p388 = scmp.eq.s32.totalorder %s26, 1
      %p389 = por %p387, %p388
      %p390 = scmp.ne.s32.totalorder %s382, %s385
      %p391 = scmp.eq.s32.totalorder %s26, 0
      %p392 = por %p390, %p391
      %p393 = scmp.ne.s32.totalorder %s382, %s385
      %p394 = scmp.eq.s32.totalorder %s31, 1
      %p395 = por %p393, %p394
      %p396 = scmp.ne.s32.totalorder %s385, %s386
      %p397 = scmp.eq.s32.totalorder %s31, 0
      %p398 = por %p396, %p397
      %p399 = scmp.ne.s32.totalorder %s385, %s386
      %p400 = scmp.eq.s32.totalorder %s32, 1
      %p401 = por %p399, %p400
      %p403 = scmp.ne.s32.totalorder %s386, %s402
      %p404 = scmp.eq.s32.totalorder %s32, 0
      %p405 = por %p403, %p404
      %p406 = scmp.le.s32.totalorder 1, %s26
      %p407 = scmp.lt.s32.totalorder %s26, 3
      %p408 = pnand %p406, %p407
      %p409 = pneg %p408
      // Predicated region
      $region9: #{model_forward.3} parent=5 // pred_check
        _
      $region10: #{model_forward.3} parent=5 // pred_check_branch
        %411 = sbr.rel (%p408) target = $region12
      $region11: #{model_forward.3} parent=5 // pred_region
        %s412 = ssub.s32 %s26, 1
        // Predicated region
        $region13: #{model_forward.3} parent=11 // pred_check
          %p413 = pneg %p73
        $region14: #{model_forward.3} parent=11 // pred_check_branch
          %415 = sbr.rel (%p413) target = $region16
        $region15: #{model_forward.3} parent=11 // pred_region
          _
        $region16: #{model_forward.3} parent=11 // pred_fallthru
          _
        // Predicated region
        $region17: #{model_forward.3} parent=11 // pred_check
          %p416 = pneg %p94
        $region18: #{model_forward.3} parent=11 // pred_check_branch
          %418 = sbr.rel (%p416) target = $region20
        $region19: #{model_forward.3} parent=11 // pred_region
          _
        $region20: #{model_forward.3} parent=11 // pred_fallthru
          _
        // Predicated region
        $region21: #{model_forward.3} parent=11 // pred_check
          %p419 = pneg %p115
        $region22: #{model_forward.3} parent=11 // pred_check_branch
          %421 = sbr.rel (%p419) target = $region24
        $region23: #{model_forward.3} parent=11 // pred_region
          %s423 = ssub.s32 12288, 12288
          %424 = vsyncadd [#allocation3], %s423
          %s425 = sshll.u32 [#allocation2], 4
          %s426 = int_to_ptr.vmem [resolvable:$true] %s425
          %431 = dma.hbm_to_vmem [thread:$0]  %s3, 12288, %s426, [#allocation3], 384, 384, 24
        $region24: #{model_forward.3} parent=11 // pred_fallthru
          _
        // Predicated region
        $region25: #{model_forward.3} parent=11 // pred_check
          %p432 = pneg %p136
        $region26: #{model_forward.3} parent=11 // pred_check_branch
          %434 = sbr.rel (%p432) target = $region28
        $region27: #{model_forward.3} parent=11 // pred_region
          _
        $region28: #{model_forward.3} parent=11 // pred_fallthru
          _
        // Predicated region
        $region29: #{model_forward.3} parent=11 // pred_check
          %p435 = pneg %p157
        $region30: #{model_forward.3} parent=11 // pred_check_branch
          %437 = sbr.rel (%p435) target = $region32
        $region31: #{model_forward.3} parent=11 // pred_region
          _
        $region32: #{model_forward.3} parent=11 // pred_fallthru
          _
        // Predicated region
        $region33: #{model_forward.3} parent=11 // pred_check
          %p438 = pneg %p178
        $region34: #{model_forward.3} parent=11 // pred_check_branch
          %440 = sbr.rel (%p438) target = $region36
        $region35: #{model_forward.3} parent=11 // pred_region
          _
        $region36: #{model_forward.3} parent=11 // pred_fallthru
          _
        // Predicated region
        $region37: #{model_forward.3} parent=11 // pred_check
          %p441 = pneg %p199
        $region38: #{model_forward.3} parent=11 // pred_check_branch
          %443 = sbr.rel (%p441) target = $region40
        $region39: #{model_forward.3} parent=11 // pred_region
          %s445 = ssub.s32 32, 32
          %446 = vsyncadd [#allocation5], %s445
          %s447 = sshll.u32 [#allocation4], 4
          %s448 = int_to_ptr.vmem [resolvable:$true] %s447
          %453 = dma.hbm_to_vmem [thread:$0]  %s7, 32, %s448, [#allocation5], 16, 16, 1
        $region40: #{model_forward.3} parent=11 // pred_fallthru
          _
        // Predicated region
        $region41: #{model_forward.3} parent=11 // pred_check
          %p454 = pneg %p220
        $region42: #{model_forward.3} parent=11 // pred_check_branch
          %456 = sbr.rel (%p454) target = $region44
        $region43: #{model_forward.3} parent=11 // pred_region
          %s458 = ssub.s32 32, 32
          %459 = vsyncadd [#allocation5], %s458
          %s460 = sshll.u32 [#allocation6], 4
          %s461 = int_to_ptr.vmem [resolvable:$true] %s460
          %466 = dma.hbm_to_vmem [thread:$0]  %s8, 32, %s461, [#allocation5], 16, 16, 1
        $region44: #{model_forward.3} parent=11 // pred_fallthru
          _
        // Predicated region
        $region45: #{model_forward.3} parent=11 // pred_check
          %p467 = pneg %p241
        $region46: #{model_forward.3} parent=11 // pred_check_branch
          %469 = sbr.rel (%p467) target = $region48
        $region47: #{model_forward.3} parent=11 // pred_region
          _
        $region48: #{model_forward.3} parent=11 // pred_fallthru
          _
        // Predicated region
        $region49: #{model_forward.3} parent=11 // pred_check
          %p470 = pneg %p262
        $region50: #{model_forward.3} parent=11 // pred_check_branch
          %472 = sbr.rel (%p470) target = $region52
        $region51: #{model_forward.3} parent=11 // pred_region
          _
        $region52: #{model_forward.3} parent=11 // pred_fallthru
          _
        // Predicated region
        $region53: #{model_forward.3} parent=11 // pred_check
          %p473 = pneg %p283
        $region54: #{model_forward.3} parent=11 // pred_check_branch
          %475 = sbr.rel (%p473) target = $region56
        $region55: #{model_forward.3} parent=11 // pred_region
          _
        $region56: #{model_forward.3} parent=11 // pred_fallthru
          _
        // Predicated region
        $region57: #{model_forward.3} parent=11 // pred_check
          %p476 = pneg %p304
        $region58: #{model_forward.3} parent=11 // pred_check_branch
          %478 = sbr.rel (%p476) target = $region60
        $region59: #{model_forward.3} parent=11 // pred_region
          %s480 = ssub.s32 32, 32
          %481 = vsyncadd [#allocation8], %s480
          %s482 = sshll.u32 [#allocation7], 4
          %s483 = int_to_ptr.vmem [resolvable:$true] %s482
          %488 = dma.hbm_to_vmem [thread:$0]  %s12, 32, %s483, [#allocation8], 16, 16, 1
        $region60: #{model_forward.3} parent=11 // pred_fallthru
          _
        // Predicated region
        $region61: #{model_forward.3} parent=11 // pred_check
          %p489 = pneg %p325
        $region62: #{model_forward.3} parent=11 // pred_check_branch
          %491 = sbr.rel (%p489) target = $region64
        $region63: #{model_forward.3} parent=11 // pred_region
          _
        $region64: #{model_forward.3} parent=11 // pred_fallthru
          _
        // Predicated region
        $region65: #{model_forward.3} parent=11 // pred_check
          %p492 = pneg %p346
        $region66: #{model_forward.3} parent=11 // pred_check_branch
          %494 = sbr.rel (%p492) target = $region68
        $region67: #{model_forward.3} parent=11 // pred_region
          _
        $region68: #{model_forward.3} parent=11 // pred_fallthru
          _
      $region12: #{model_forward.3} parent=5 // pred_fallthru
        _
      %p495 = scmp.lt.s32.totalorder %s26, 2
      // Predicated region
      $region69: #{model_forward.3} parent=5 // pred_check
        %p496 = pneg %p495
      $region70: #{model_forward.3} parent=5 // pred_check_branch
        %498 = sbr.rel (%p496) target = $region72
      $region71: #{model_forward.3} parent=5 // pred_region
        // Predicated region
        $region73: #{model_forward.3} parent=71 // pred_check
          %p499 = pneg %p46
        $region74: #{model_forward.3} parent=71 // pred_check_branch
          %501 = sbr.rel (%p499) target = $region76
        $region75: #{model_forward.3} parent=71 // pred_region
          %p502 = scmp.lt.s32.totalorder %s26, 1
          %s503 = scalar_select %p502, %s26, 1
          %s504 = smul.addr %s503, 2
          %s505 = smul.addr %s504, 8
          %s506 = scalar_lea.vmem %s0, %s505
        $region76: #{model_forward.3} parent=71 // pred_fallthru
          _
      $region72: #{model_forward.3} parent=5 // pred_fallthru
        _
      %p507 = scmp.le.s32.totalorder 1, %s26
      %p508 = scmp.lt.s32.totalorder %s26, 3
      %p509 = pnand %p507, %p508
      %p510 = pneg %p509
      // Predicated region
      $region77: #{model_forward.3} parent=5 // pred_check
        _
      $region78: #{model_forward.3} parent=5 // pred_check_branch
        %512 = sbr.rel (%p509) target = $region80
      $region79: #{model_forward.3} parent=5 // pred_region
        %s513 = ssub.s32 %s26, 1
        // Predicated region
        $region81: #{model_forward.3} parent=79 // pred_check
          %p514 = pneg %p115
        $region82: #{model_forward.3} parent=79 // pred_check_branch
          %516 = sbr.rel (%p514) target = $region84
        $region83: #{model_forward.3} parent=79 // pred_region
          %517 = dma.done [#allocation3], 12288
        $region84: #{model_forward.3} parent=79 // pred_fallthru
          _
        // Predicated region
        $region85: #{model_forward.3} parent=79 // pred_check
          %p518 = pneg %p199
        $region86: #{model_forward.3} parent=79 // pred_check_branch
          %520 = sbr.rel (%p518) target = $region88
        $region87: #{model_forward.3} parent=79 // pred_region
          %521 = dma.done [#allocation5], 32
        $region88: #{model_forward.3} parent=79 // pred_fallthru
          _
        // Predicated region
        $region89: #{model_forward.3} parent=79 // pred_check
          %p522 = pneg %p220
        $region90: #{model_forward.3} parent=79 // pred_check_branch
          %524 = sbr.rel (%p522) target = $region92
        $region91: #{model_forward.3} parent=79 // pred_region
          %525 = dma.done [#allocation5], 32
        $region92: #{model_forward.3} parent=79 // pred_fallthru
          _
        // Predicated region
        $region93: #{model_forward.3} parent=79 // pred_check
          %p526 = pneg %p304
        $region94: #{model_forward.3} parent=79 // pred_check_branch
          %528 = sbr.rel (%p526) target = $region96
        $region95: #{model_forward.3} parent=79 // pred_region
          %529 = dma.done [#allocation8], 32
        $region96: #{model_forward.3} parent=79 // pred_fallthru
          _
        %p530 = scmp.lt.s32.totalorder %s31, 1
        %s531 = scalar_select %p530, %s31, 1
        %s532 = smul.addr %s531, 2
        %s533 = smul.addr %s532, 8
        %s534 = scalar_lea.vmem %s0, %s533
        %p535 = pneg %p52
        %p536 = pneg %p49
        %p537 = pneg %p73
        %p538 = pneg %p70
        %p539 = pneg %p94
        %p540 = pneg %p91
        %p541 = pneg %p115
        %p542 = pneg %p112
        %p543 = pneg %p136
        %p544 = pneg %p133
        %p545 = pneg %p157
        %p546 = pneg %p154
        %p547 = pneg %p178
        %p548 = pneg %p175
        %p549 = pneg %p199
        %p550 = pneg %p196
        %p551 = pneg %p220
        %p552 = pneg %p217
        %p553 = pneg %p241
        %p554 = pneg %p238
        %p555 = pneg %p262
        %p556 = pneg %p259
        %p557 = pneg %p283
        %p558 = pneg %p280
        %p559 = pneg %p304
        %p560 = pneg %p301
        %p561 = pneg %p325
        %p562 = pneg %p322
        %p563 = pneg %p346
        %p564 = pneg %p343
        %p565 = pneg %p372
        %p566 = pneg %p369
        %p567 = scmp.lt.s32.totalorder %s31, 1
        %s568 = scalar_select %p567, %s31, 1
        %s569 = scalar_lea.vmem %s15, %s568
        %p570 = pneg %p398
        %p571 = pneg %p395
        %p572 = scmp.lt.s32.totalorder %s31, 1
        %s573 = scalar_select %p572, %s31, 1
        %s574 = scalar_lea.vmem %s16, %s573
        %p575 = scmp.lt.s32.totalorder %s31, 1
        %s576 = scalar_select %p575, %s31, 1
        %s577 = smul.addr %s576, 2
        %s578 = smul.addr %s577, 8
        %s579 = scalar_lea.vmem %s0, %s578
        %p580 = scmp.lt.s32.totalorder %s31, 1
        %s581 = scalar_select %p580, %s31, 1
        %s582 = scalar_lea.vmem %s15, %s581
        %p583 = scmp.lt.s32.totalorder %s31, 1
        %s584 = scalar_select %p583, %s31, 1
        %s585 = scalar_lea.vmem %s16, %s584
        %v586 = vld [vmem:[%s579] sm:$0xff]
        %v587 = vld [vmem:[%s579 + $0x8] sm:$0x1]
        %v588 = vld [vmem:[%s1] sm:$0x1]
        %v589 = vld [vmem:[%s2] sm:$0x1]
        %590 = vadd.xlane.f32.xlu0 %v586
        %v591 = vpop.xlane.xlu0 %590
        %vm592 = vcmask 1040384
        %v593 = vsel %vm592, %v587, 0.0
        %594 = vadd.xlane.f32.xlu0 %v593
        %v595 = vpop.xlane.xlu0 %594
        %v596 = vrcp.pop 128.0
        %v597 = vmul.f32 %v591, %v596
        %v598 = vmul.f32 %v595, %v596
        %v599 = vsub.f32 %v586, %v597
        %v600 = vsub.f32 %v587, %v598
        %v601 = vmul.f32 %v599, %v599
        %v602 = vmul.f32 %v600, %v600
        %603 = vadd.xlane.f32.xlu0 %v601
        %v604 = vpop.xlane.xlu0 %603
        %v605 = vsel %vm592, %v602, 0.0
        %606 = vadd.xlane.f32.xlu0 %v605
        %v607 = vpop.xlane.xlu0 %606
        %v608 = vmul.f32 %v604, %v596
        %v609 = vmul.f32 %v607, %v596
        %v610 = vadd.f32 %v608, 1e-06
        %v611 = vadd.f32 %v609, 1e-06
        %v612 = vrsqrt.pop %v610
        %v613 = vrsqrt.pop %v611
        %v614 = vmul.f32 %v599, %v612
        %v615 = vmul.f32 %v600, %v613
        %v617 = vlaneseq
        %v618 = vshrl.u32 %v617, 7
        %v619 = vsub.s32 0, %v618
        %v620 = vrot.slane %v588, %v619
        %v622 = vmul.f32 %v614, %v620
        %v623 = vmul.f32 %v615, %v620
        %v625 = vlaneseq
        %v626 = vshrl.u32 %v625, 7
        %v627 = vsub.s32 0, %v626
        %v628 = vrot.slane %v589, %v627
        %v630 = vadd.f32 %v622, %v628
        %v631 = vadd.f32 %v623, %v628
        %v632 = vld [vmem:[#allocation2] sm:$0xff]
        %v633 = vld [vmem:[#allocation2 + $0x8] sm:$0xff]
        %v634 = vld [vmem:[#allocation2 + $0x10] sm:$0xff]
        %v635 = vld [vmem:[#allocation2 + $0x18] sm:$0xff]
        %v636 = vld [vmem:[#allocation2 + $0x20] sm:$0xff]
        %v637 = vld [vmem:[#allocation2 + $0x28] sm:$0xff]
        %v638 = vld [vmem:[#allocation2 + $0x30] sm:$0xff]
        %v639 = vld [vmem:[#allocation2 + $0x38] sm:$0xff]
        %v640 = vld [vmem:[#allocation2 + $0x40] sm:$0xff]
        %v641 = vld [vmem:[#allocation2 + $0x48] sm:$0xff]
        %v642 = vld [vmem:[#allocation2 + $0x50] sm:$0xff]
        %v643 = vld [vmem:[#allocation2 + $0x58] sm:$0xff]
        %v644 = vld [vmem:[#allocation2 + $0x60] sm:$0xff]
        %v645 = vld [vmem:[#allocation2 + $0x68] sm:$0xff]
        %v646 = vld [vmem:[#allocation2 + $0x70] sm:$0xff]
        %v647 = vld [vmem:[#allocation2 + $0x78] sm:$0xff]
        %v648 = vld [vmem:[#allocation2 + $0x80] sm:$0xff]
        %v649 = vld [vmem:[#allocation2 + $0x88] sm:$0xff]
        %v650 = vld [vmem:[#allocation2 + $0x90] sm:$0xff]
        %v651 = vld [vmem:[#allocation2 + $0x98] sm:$0xff]
        %v652 = vld [vmem:[#allocation2 + $0xa0] sm:$0xff]
        %v653 = vld [vmem:[#allocation2 + $0xa8] sm:$0xff]
        %v654 = vld [vmem:[#allocation2 + $0xb0] sm:$0xff]
        %v655 = vld [vmem:[#allocation2 + $0xb8] sm:$0xff]
        %v656 = vld [vmem:[#allocation2 + $0xc0] sm:$0xff]
        %v657 = vld [vmem:[#allocation2 + $0xc8] sm:$0xff]
        %v658 = vld [vmem:[#allocation2 + $0xd0] sm:$0xff]
        %v659 = vld [vmem:[#allocation2 + $0xd8] sm:$0xff]
        %v660 = vld [vmem:[#allocation2 + $0xe0] sm:$0xff]
        %v661 = vld [vmem:[#allocation2 + $0xe8] sm:$0xff]
        %v662 = vld [vmem:[#allocation2 + $0xf0] sm:$0xff]
        %v663 = vld [vmem:[#allocation2 + $0xf8] sm:$0xff]
        %v664 = vld [vmem:[#allocation2 + $0x100] sm:$0xff]
        %v665 = vld [vmem:[#allocation2 + $0x108] sm:$0xff]
        %v666 = vld [vmem:[#allocation2 + $0x110] sm:$0xff]
        %v667 = vld [vmem:[#allocation2 + $0x118] sm:$0xff]
        %v668 = vld [vmem:[#allocation2 + $0x120] sm:$0xff]
        %v669 = vld [vmem:[#allocation2 + $0x128] sm:$0xff]
        %v670 = vld [vmem:[#allocation2 + $0x130] sm:$0xff]
        %v671 = vld [vmem:[#allocation2 + $0x138] sm:$0xff]
        %v672 = vld [vmem:[#allocation2 + $0x140] sm:$0xff]
        %v673 = vld [vmem:[#allocation2 + $0x148] sm:$0xff]
        %v674 = vld [vmem:[#allocation2 + $0x150] sm:$0xff]
        %v675 = vld [vmem:[#allocation2 + $0x158] sm:$0xff]
        %v676 = vld [vmem:[#allocation2 + $0x160] sm:$0xff]
        %v677 = vld [vmem:[#allocation2 + $0x168] sm:$0xff]
        %v678 = vld [vmem:[#allocation2 + $0x170] sm:$0xff]
        %v679 = vld [vmem:[#allocation2 + $0x178] sm:$0xff]
        %v680 = vld [vmem:[%s4] sm:$0x7]
        %v682 = vlaneseq
        %v683 = vshrl.u32 %v682, 7
        %v684 = vsub.s32 0, %v683
        %v685 = vrot.slane %v680, %v684
        %v686 = vlaneseq
        %v687 = vshrl.u32 %v686, 7
        %v688 = vsub.s32 1, %v687
        %v689 = vrot.slane %v680, %v688
        %v690 = vlaneseq
        %v691 = vshrl.u32 %v690, 7
        %v692 = vsub.s32 2, %v691
        %v693 = vrot.slane %v680, %v692
        %697 = vmatprep.subr.mxu0 %v678
        %698 = vmatpush1.msra.mxu0 %v677
        %699 = vmatprep.subr.mxu0 %v675
        %700 = vmatpush1.msra.mxu0 %v674
        %701 = vmatprep.subr.mxu0 %v672
        %702 = vmatpush1.msra.mxu0 %v671
        %703 = vmatprep.subr.mxu0 %v669
        %704 = vmatpush1.msra.mxu0 %v668
        %705 = vmatprep.subr.mxu0 %v666
        %706 = vmatpush1.msra.mxu0 %v665
        %707 = vmatprep.subr.mxu0 %v663
        %708 = vmatpush1.msra.mxu0 %v662
        %709 = vmatprep.subr.mxu0 %v660
        %710 = vmatpush1.msra.mxu0 %v659
        %711 = vmatprep.subr.mxu0 %v657
        %712 = vmatpush1.msra.mxu0 %v656
        %713 = vmatprep.subr.mxu0 %v654
        %714 = vmatpush1.msra.mxu0 %v653
        %715 = vmatprep.subr.mxu0 %v651
        %716 = vmatpush1.msra.mxu0 %v650
        %717 = vmatprep.subr.mxu0 %v648
        %718 = vmatpush1.msra.mxu0 %v647
        %719 = vmatprep.subr.mxu0 %v645
        %720 = vmatpush1.msra.mxu0 %v644
        %721 = vmatprep.subr.mxu0 %v642
        %722 = vmatpush1.msra.mxu0 %v641
        %723 = vmatprep.subr.mxu0 %v639
        %724 = vmatpush1.msra.mxu0 %v638
        %725 = vmatprep.subr.mxu0 %v636
        %726 = vmatpush1.msra.mxu0 %v635
        %727 = vmatprep.subr.mxu0 %v633
        %728 = vmatpush1.msra.mxu0 %v632
        %729 = vmatprep.subr.mxu0 0.0
        %730 = vmatpush2.msra.mxu0 0.0
        %731 = vmatprep.subr.mxu0 0.0
        %732 = vmatpush2.msra.mxu0 0.0
        %733 = vmatprep.subr.mxu0 0.0
        %734 = vmatpush2.msra.mxu0 0.0
        %735 = vmatprep.subr.mxu0 0.0
        %736 = vmatpush2.msra.mxu0 0.0
        %737 = vmatprep.subr.mxu0 0.0
        %738 = vmatpush2.msra.mxu0 0.0
        %739 = vmatprep.subr.mxu0 0.0
        %740 = vmatpush2.msra.mxu0 0.0
        %741 = vmatprep.subr.mxu0 0.0
        %742 = vmatpush2.msra.mxu0 0.0
        %743 = vmatprep.subr.mxu0 0.0
        %744 = vmatpush2.msra.mxu0 0.0
        %745 = vmatprep.subr.mxu0 0.0
        %746 = vmatpush2.msra.mxu0 0.0
        %747 = vmatprep.subr.mxu0 0.0
        %748 = vmatpush2.msra.mxu0 0.0
        %749 = vmatprep.subr.mxu0 0.0
        %750 = vmatpush2.msra.mxu0 0.0
        %751 = vmatprep.subr.mxu0 0.0
        %752 = vmatpush2.msra.mxu0 0.0
        %753 = vmatprep.subr.mxu0 0.0
        %754 = vmatpush2.msra.mxu0 0.0
        %755 = vmatprep.subr.mxu0 0.0
        %756 = vmatpush2.msra.mxu0 0.0
        %757 = vmatprep.subr.mxu0 0.0
        %758 = vmatpush2.msra.mxu0 0.0
        %759 = vmatprep.subr.mxu0 0.0
        %760 = vmatpush2.msra.mxu0 0.0
        %761 = vmatprep.mubr.f32.mxu0 0.0
        %762 = vmatmul.mubr.f32.gmra.mxu0 %v630
        %v763 = vpop.f32.mrf.mxu0
        %v764 = vadd.f32 %v685, %v763
        %v765 = vpop.f32.mrf.mxu0
        %v766 = vadd.f32 %v689, %v765
        %767 = vmatprep.mubr.f32.mxu0 0.0
        %768 = vmatmul.mubr.f32.gmra.mxu0 %v631
        %v769 = vpop.f32.mrf.mxu0
        %v770 = vadd.f32 %v685, %v769
        %v771 = vpop.f32.mrf.mxu0
        %v772 = vadd.f32 %v689, %v771
        %773 = vdwg.mxu0
        %774 = vmatprep.subr.mxu0 0.0
        %775 = vmatpush1.msra.mxu0 %v679
        %776 = vmatprep.subr.mxu0 0.0
        %777 = vmatpush1.msra.mxu0 %v676
        %778 = vmatprep.subr.mxu0 0.0
        %779 = vmatpush1.msra.mxu0 %v673
        %780 = vmatprep.subr.mxu0 0.0
        %781 = vmatpush1.msra.mxu0 %v670
        %782 = vmatprep.subr.mxu0 0.0
        %783 = vmatpush1.msra.mxu0 %v667
        %784 = vmatprep.subr.mxu0 0.0
        %785 = vmatpush1.msra.mxu0 %v664
        %786 = vmatprep.subr.mxu0 0.0
        %787 = vmatpush1.msra.mxu0 %v661
        %788 = vmatprep.subr.mxu0 0.0
        %789 = vmatpush1.msra.mxu0 %v658
        %790 = vmatprep.subr.mxu0 0.0
        %791 = vmatpush1.msra.mxu0 %v655
        %792 = vmatprep.subr.mxu0 0.0
        %793 = vmatpush1.msra.mxu0 %v652
        %794 = vmatprep.subr.mxu0 0.0
        %795 = vmatpush1.msra.mxu0 %v649
        %796 = vmatprep.subr.mxu0 0.0
        %797 = vmatpush1.msra.mxu0 %v646
        %798 = vmatprep.subr.mxu0 0.0
        %799 = vmatpush1.msra.mxu0 %v643
        %800 = vmatprep.subr.mxu0 0.0
        %801 = vmatpush1.msra.mxu0 %v640
        %802 = vmatprep.subr.mxu0 0.0
        %803 = vmatpush1.msra.mxu0 %v637
        %804 = vmatprep.subr.mxu0 0.0
        %805 = vmatpush1.msra.mxu0 %v634
        %806 = vmatprep.subr.mxu0 0.0
        %807 = vmatpush2.msra.mxu0 0.0
        %808 = vmatprep.subr.mxu0 0.0
        %809 = vmatpush2.msra.mxu0 0.0
        %810 = vmatprep.subr.mxu0 0.0
        %811 = vmatpush2.msra.mxu0 0.0
        %812 = vmatprep.subr.mxu0 0.0
        %813 = vmatpush2.msra.mxu0 0.0
        %814 = vmatprep.subr.mxu0 0.0
        %815 = vmatpush2.msra.mxu0 0.0
        %816 = vmatprep.subr.mxu0 0.0
        %817 = vmatpush2.msra.mxu0 0.0
        %818 = vmatprep.subr.mxu0 0.0
        %819 = vmatpush2.msra.mxu0 0.0
        %820 = vmatprep.subr.mxu0 0.0
        %821 = vmatpush2.msra.mxu0 0.0
        %822 = vmatprep.subr.mxu0 0.0
        %823 = vmatpush2.msra.mxu0 0.0
        %824 = vmatprep.subr.mxu0 0.0
        %825 = vmatpush2.msra.mxu0 0.0
        %826 = vmatprep.subr.mxu0 0.0
        %827 = vmatpush2.msra.mxu0 0.0
        %828 = vmatprep.subr.mxu0 0.0
        %829 = vmatpush2.msra.mxu0 0.0
        %830 = vmatprep.subr.mxu0 0.0
        %831 = vmatpush2.msra.mxu0 0.0
        %832 = vmatprep.subr.mxu0 0.0
        %833 = vmatpush2.msra.mxu0 0.0
        %834 = vmatprep.subr.mxu0 0.0
        %835 = vmatpush2.msra.mxu0 0.0
        %836 = vmatprep.subr.mxu0 0.0
        %837 = vmatpush2.msra.mxu0 0.0
        %838 = vmatprep.mubr.f32.mxu0 0.0
        %839 = vmatmul.mubr.f32.gmra.mxu0 %v630
        %v840 = vpop.f32.mrf.mxu0
        %v841 = vadd.f32 %v693, %v840
        %v842 = vpop.f32.mrf.mxu0
        %843 = vmatprep.mubr.f32.mxu0 0.0
        %844 = vmatmul.mubr.f32.gmra.mxu0 %v631
        %v845 = vpop.f32.mrf.mxu0
        %v846 = vadd.f32 %v693, %v845
        %v847 = vpop.f32.mrf.mxu0
        %848 = vdwg.mxu0
        %vm849 = vcmask 261120
        %v851 = vsel %vm849, %v764, 0
        %v854 = vsel %vm849, %v770, 0
        %v857 = vsel %vm849, %v766, 0
        %v860 = vsel %vm849, %v772, 0
        %862 = vmatprep.subr.mxu0 0.0
        %863 = vmatpush1.xpose.msra.mxu0 0.0
        %864 = vmatprep.subr.mxu0 0.0
        %865 = vmatpush1.xpose.msra.mxu0 0.0
        %866 = vmatprep.subr.mxu0 0.0
        %867 = vmatpush1.xpose.msra.mxu0 0.0
        %868 = vmatprep.subr.mxu0 0.0
        %869 = vmatpush1.xpose.msra.mxu0 0.0
        %870 = vmatprep.subr.mxu0 0.0
        %871 = vmatpush1.xpose.msra.mxu0 0.0
        %872 = vmatprep.subr.mxu0 0.0
        %873 = vmatpush1.xpose.msra.mxu0 0.0
        %874 = vmatprep.subr.mxu0 0.0
        %875 = vmatpush1.xpose.msra.mxu0 0.0
        %876 = vmatprep.subr.mxu0 0.0
        %877 = vmatpush1.xpose.msra.mxu0 0.0
        %878 = vmatprep.subr.mxu0 0.0
        %879 = vmatpush1.xpose.msra.mxu0 0.0
        %880 = vmatprep.subr.mxu0 0.0
        %881 = vmatpush1.xpose.msra.mxu0 0.0
        %882 = vmatprep.subr.mxu0 0.0
        %883 = vmatpush1.xpose.msra.mxu0 0.0
        %884 = vmatprep.subr.mxu0 0.0
        %885 = vmatpush1.xpose.msra.mxu0 0.0
        %886 = vmatprep.subr.mxu0 0.0
        %887 = vmatpush1.xpose.msra.mxu0 0.0
        %888 = vmatprep.subr.mxu0 0.0
        %889 = vmatpush1.xpose.msra.mxu0 0.0
        %890 = vmatprep.subr.mxu0 0.0
        %891 = vmatpush1.xpose.msra.mxu0 %v860
        %892 = vmatprep.subr.mxu0 0.0
        %893 = vmatpush1.xpose.msra.mxu0 %v857
        %894 = vmatprep.subr.mxu0 0.0
        %895 = vmatpush2.xpose.msra.mxu0 0.0
        %896 = vmatprep.subr.mxu0 0.0
        %897 = vmatpush2.xpose.msra.mxu0 0.0
        %898 = vmatprep.subr.mxu0 0.0
        %899 = vmatpush2.xpose.msra.mxu0 0.0
        %900 = vmatprep.subr.mxu0 0.0
        %901 = vmatpush2.xpose.msra.mxu0 0.0
        %902 = vmatprep.subr.mxu0 0.0
        %903 = vmatpush2.xpose.msra.mxu0 0.0
        %904 = vmatprep.subr.mxu0 0.0
        %905 = vmatpush2.xpose.msra.mxu0 0.0
        %906 = vmatprep.subr.mxu0 0.0
        %907 = vmatpush2.xpose.msra.mxu0 0.0
        %908 = vmatprep.subr.mxu0 0.0
        %909 = vmatpush2.xpose.msra.mxu0 0.0
        %910 = vmatprep.subr.mxu0 0.0
        %911 = vmatpush2.xpose.msra.mxu0 0.0
        %912 = vmatprep.subr.mxu0 0.0
        %913 = vmatpush2.xpose.msra.mxu0 0.0
        %914 = vmatprep.subr.mxu0 0.0
        %915 = vmatpush2.xpose.msra.mxu0 0.0
        %916 = vmatprep.subr.mxu0 0.0
        %917 = vmatpush2.xpose.msra.mxu0 0.0
        %918 = vmatprep.subr.mxu0 0.0
        %919 = vmatpush2.xpose.msra.mxu0 0.0
        %920 = vmatprep.subr.mxu0 0.0
        %921 = vmatpush2.xpose.msra.mxu0 0.0
        %922 = vmatprep.subr.mxu0 0.0
        %923 = vmatpush2.xpose.msra.mxu0 0.0
        %924 = vmatprep.subr.mxu0 0.0
        %925 = vmatpush2.xpose.msra.mxu0 0.0
        %926 = vmatprep.mubr.f32.mxu0 0.0
        %927 = vmatmul.mubr.f32.gmra.mxu0 %v851
        %v928 = vpop.f32.mrf.mxu0
        %v929 = vadd.f32 0.0, %v928
        %v930 = vpop.f32.mrf.mxu0
        %931 = vmatprep.mubr.f32.mxu0 0.0
        %932 = vmatmul.mubr.f32.gmra.mxu0 %v854
        %v933 = vpop.f32.mrf.mxu0
        %v934 = vadd.f32 0.0, %v933
        %v935 = vpop.f32.mrf.mxu0
        %936 = vdwg.mxu0
        %v937 = vmul.f32 %v929, 0.17677669
        %v938 = vmul.f32 %v934, 0.17677669
        %vm939 = vcmask 72704
        %v940 = vsel %vm939, %v937, -inf
        %941 = vmax.xlane.f32.xlu0 %v940
        %v942 = vpop.xlane.xlu0 %941
        %vm943 = vcmask 65536
        %v944 = vsel %vm943, %v938, -inf
        %945 = vmax.xlane.f32.xlu0 %v944
        %v946 = vpop.xlane.xlu0 %945
        %v947 = vsub.f32 %v937, %v942
        %v948 = vsub.f32 %v938, %v946
        %v949 = vmul.f32 %v947, 1.442695
        %v950 = vpow.pop %v949
        %v951 = vmul.f32 %v948, 1.442695
        %v952 = vpow.pop %v951
        %v953 = vsel %vm939, %v950, 0.0
        %954 = vadd.xlane.f32.xlu0 %v953
        %v955 = vpop.xlane.xlu0 %954
        %v956 = vsel %vm943, %v952, 0.0
        %957 = vadd.xlane.f32.xlu0 %v956
        %v958 = vpop.xlane.xlu0 %957
        %v959 = vrcp.pop %v955
        %v960 = vrcp.pop %v958
        %v961 = vmul.f32 %v950, %v959
        %v962 = vmul.f32 %v952, %v960
        %v964 = vsel %vm939, %v961, 0
        %v967 = vsel %vm939, %v962, 0
        %v970 = vsel %vm592, %v846, 0
        %972 = vmatprep.subr.mxu0 0.0
        %973 = vmatpush1.msra.mxu0 0.0
        %974 = vmatprep.subr.mxu0 0.0
        %975 = vmatpush1.msra.mxu0 0.0
        %976 = vmatprep.subr.mxu0 0.0
        %977 = vmatpush1.msra.mxu0 0.0
        %978 = vmatprep.subr.mxu0 0.0
        %979 = vmatpush1.msra.mxu0 0.0
        %980 = vmatprep.subr.mxu0 0.0
        %981 = vmatpush1.msra.mxu0 0.0
        %982 = vmatprep.subr.mxu0 0.0
        %983 = vmatpush1.msra.mxu0 0.0
        %984 = vmatprep.subr.mxu0 0.0
        %985 = vmatpush1.msra.mxu0 0.0
        %986 = vmatprep.subr.mxu0 0.0
        %987 = vmatpush1.msra.mxu0 0.0
        %988 = vmatprep.subr.mxu0 0.0
        %989 = vmatpush1.msra.mxu0 0.0
        %990 = vmatprep.subr.mxu0 0.0
        %991 = vmatpush1.msra.mxu0 0.0
        %992 = vmatprep.subr.mxu0 0.0
        %993 = vmatpush1.msra.mxu0 0.0
        %994 = vmatprep.subr.mxu0 0.0
        %995 = vmatpush1.msra.mxu0 0.0
        %996 = vmatprep.subr.mxu0 0.0
        %997 = vmatpush1.msra.mxu0 0.0
        %998 = vmatprep.subr.mxu0 0.0
        %999 = vmatpush1.msra.mxu0 0.0
        %1000 = vmatprep.subr.mxu0 0.0
        %1001 = vmatpush1.msra.mxu0 %v970
        %1002 = vmatprep.subr.mxu0 0.0
        %1003 = vmatpush1.msra.mxu0 %v841
        %1004 = vmatprep.subr.mxu0 0.0
        %1005 = vmatpush2.msra.mxu0 0.0
        %1006 = vmatprep.subr.mxu0 0.0
        %1007 = vmatpush2.msra.mxu0 0.0
        %1008 = vmatprep.subr.mxu0 0.0
        %1009 = vmatpush2.msra.mxu0 0.0
        %1010 = vmatprep.subr.mxu0 0.0
        %1011 = vmatpush2.msra.mxu0 0.0
        %1012 = vmatprep.subr.mxu0 0.0
        %1013 = vmatpush2.msra.mxu0 0.0
        %1014 = vmatprep.subr.mxu0 0.0
        %1015 = vmatpush2.msra.mxu0 0.0
        %1016 = vmatprep.subr.mxu0 0.0
        %1017 = vmatpush2.msra.mxu0 0.0
        %1018 = vmatprep.subr.mxu0 0.0
        %1019 = vmatpush2.msra.mxu0 0.0
        %1020 = vmatprep.subr.mxu0 0.0
        %1021 = vmatpush2.msra.mxu0 0.0
        %1022 = vmatprep.subr.mxu0 0.0
        %1023 = vmatpush2.msra.mxu0 0.0
        %1024 = vmatprep.subr.mxu0 0.0
        %1025 = vmatpush2.msra.mxu0 0.0
        %1026 = vmatprep.subr.mxu0 0.0
        %1027 = vmatpush2.msra.mxu0 0.0
        %1028 = vmatprep.subr.mxu0 0.0
        %1029 = vmatpush2.msra.mxu0 0.0
        %1030 = vmatprep.subr.mxu0 0.0
        %1031 = vmatpush2.msra.mxu0 0.0
        %1032 = vmatprep.subr.mxu0 0.0
        %1033 = vmatpush2.msra.mxu0 0.0
        %1034 = vmatprep.subr.mxu0 0.0
        %1035 = vmatpush2.msra.mxu0 0.0
        %1036 = vmatprep.mubr.f32.mxu0 0.0
        %1037 = vmatmul.mubr.f32.gmra.mxu0 %v964
        %v1038 = vpop.f32.mrf.mxu0
        %v1039 = vadd.f32 0.0, %v1038
        %v1040 = vpop.f32.mrf.mxu0
        %1041 = vmatprep.mubr.f32.mxu0 0.0
        %1042 = vmatmul.mubr.f32.gmra.mxu0 %v967
        %v1043 = vpop.f32.mrf.mxu0
        %v1044 = vadd.f32 0.0, %v1043
        %v1045 = vpop.f32.mrf.mxu0
        %1046 = vdwg.mxu0
        %1047 = vrot.lane.b32.xlu0 %v764, 96
        %v1048 = vpop.permute.xlu0 %1047
        %1049 = vrot.lane.b32.xlu0 %v770, 96
        %v1050 = vpop.permute.xlu0 %1049
        %1051 = vrot.lane.b32.xlu0 %v766, 96
        %v1052 = vpop.permute.xlu0 %1051
        %1053 = vrot.lane.b32.xlu0 %v772, 96
        %v1054 = vpop.permute.xlu0 %1053
        %v1055 = vsel %vm849, %v1048, 0
        %v1057 = vsel %vm849, %v1050, 0
        %v1059 = vsel %vm849, %v1052, 0
        %v1061 = vsel %vm849, %v1054, 0
        %1063 = vmatprep.subr.mxu0 0.0
        %1064 = vmatpush1.xpose.msra.mxu0 0.0
        %1065 = vmatprep.subr.mxu0 0.0
        %1066 = vmatpush1.xpose.msra.mxu0 0.0
        %1067 = vmatprep.subr.mxu0 0.0
        %1068 = vmatpush1.xpose.msra.mxu0 0.0
        %1069 = vmatprep.subr.mxu0 0.0
        %1070 = vmatpush1.xpose.msra.mxu0 0.0
        %1071 = vmatprep.subr.mxu0 0.0
        %1072 = vmatpush1.xpose.msra.mxu0 0.0
        %1073 = vmatprep.subr.mxu0 0.0
        %1074 = vmatpush1.xpose.msra.mxu0 0.0
        %1075 = vmatprep.subr.mxu0 0.0
        %1076 = vmatpush1.xpose.msra.mxu0 0.0
        %1077 = vmatprep.subr.mxu0 0.0
        %1078 = vmatpush1.xpose.msra.mxu0 0.0
        %1079 = vmatprep.subr.mxu0 0.0
        %1080 = vmatpush1.xpose.msra.mxu0 0.0
        %1081 = vmatprep.subr.mxu0 0.0
        %1082 = vmatpush1.xpose.msra.mxu0 0.0
        %1083 = vmatprep.subr.mxu0 0.0
        %1084 = vmatpush1.xpose.msra.mxu0 0.0
        %1085 = vmatprep.subr.mxu0 0.0
        %1086 = vmatpush1.xpose.msra.mxu0 0.0
        %1087 = vmatprep.subr.mxu0 0.0
        %1088 = vmatpush1.xpose.msra.mxu0 0.0
        %1089 = vmatprep.subr.mxu0 0.0
        %1090 = vmatpush1.xpose.msra.mxu0 0.0
        %1091 = vmatprep.subr.mxu0 0.0
        %1092 = vmatpush1.xpose.msra.mxu0 %v1061
        %1093 = vmatprep.subr.mxu0 0.0
        %1094 = vmatpush1.xpose.msra.mxu0 %v1059
        %1095 = vmatprep.subr.mxu0 0.0
        %1096 = vmatpush2.xpose.msra.mxu0 0.0
        %1097 = vmatprep.subr.mxu0 0.0
        %1098 = vmatpush2.xpose.msra.mxu0 0.0
        %1099 = vmatprep.subr.mxu0 0.0
        %1100 = vmatpush2.xpose.msra.mxu0 0.0
        %1101 = vmatprep.subr.mxu0 0.0
        %1102 = vmatpush2.xpose.msra.mxu0 0.0
        %1103 = vmatprep.subr.mxu0 0.0
        %1104 = vmatpush2.xpose.msra.mxu0 0.0
        %1105 = vmatprep.subr.mxu0 0.0
        %1106 = vmatpush2.xpose.msra.mxu0 0.0
        %1107 = vmatprep.subr.mxu0 0.0
        %1108 = vmatpush2.xpose.msra.mxu0 0.0
        %1109 = vmatprep.subr.mxu0 0.0
        %1110 = vmatpush2.xpose.msra.mxu0 0.0
        %1111 = vmatprep.subr.mxu0 0.0
        %1112 = vmatpush2.xpose.msra.mxu0 0.0
        %1113 = vmatprep.subr.mxu0 0.0
        %1114 = vmatpush2.xpose.msra.mxu0 0.0
        %1115 = vmatprep.subr.mxu0 0.0
        %1116 = vmatpush2.xpose.msra.mxu0 0.0
        %1117 = vmatprep.subr.mxu0 0.0
        %1118 = vmatpush2.xpose.msra.mxu0 0.0
        %1119 = vmatprep.subr.mxu0 0.0
        %1120 = vmatpush2.xpose.msra.mxu0 0.0
        %1121 = vmatprep.subr.mxu0 0.0
        %1122 = vmatpush2.xpose.msra.mxu0 0.0
        %1123 = vmatprep.subr.mxu0 0.0
        %1124 = vmatpush2.xpose.msra.mxu0 0.0
        %1125 = vmatprep.subr.mxu0 0.0
        %1126 = vmatpush2.xpose.msra.mxu0 0.0
        %1127 = vmatprep.mubr.f32.mxu0 0.0
        %1128 = vmatmul.mubr.f32.gmra.mxu0 %v1055
        %v1129 = vpop.f32.mrf.mxu0
        %v1130 = vadd.f32 0.0, %v1129
        %v1131 = vpop.f32.mrf.mxu0
        %1132 = vmatprep.mubr.f32.mxu0 0.0
        %1133 = vmatmul.mubr.f32.gmra.mxu0 %v1057
        %v1134 = vpop.f32.mrf.mxu0
        %v1135 = vadd.f32 0.0, %v1134
        %v1136 = vpop.f32.mrf.mxu0
        %1137 = vdwg.mxu0
        %v1138 = vmul.f32 %v1130, 0.17677669
        %v1139 = vmul.f32 %v1135, 0.17677669
        %v1140 = vsel %vm939, %v1138, -inf
        %1141 = vmax.xlane.f32.xlu0 %v1140
        %v1142 = vpop.xlane.xlu0 %1141
        %v1143 = vsel %vm943, %v1139, -inf
        %1144 = vmax.xlane.f32.xlu0 %v1143
        %v1145 = vpop.xlane.xlu0 %1144
        %v1146 = vsub.f32 %v1138, %v1142
        %v1147 = vsub.f32 %v1139, %v1145
        %v1148 = vmul.f32 %v1146, 1.442695
        %v1149 = vpow.pop %v1148
        %v1150 = vmul.f32 %v1147, 1.442695
        %v1151 = vpow.pop %v1150
        %v1152 = vsel %vm939, %v1149, 0.0
        %1153 = vadd.xlane.f32.xlu0 %v1152
        %v1154 = vpop.xlane.xlu0 %1153
        %v1155 = vsel %vm943, %v1151, 0.0
        %1156 = vadd.xlane.f32.xlu0 %v1155
        %v1157 = vpop.xlane.xlu0 %1156
        %v1158 = vrcp.pop %v1154
        %v1159 = vrcp.pop %v1157
        %v1160 = vmul.f32 %v1149, %v1158
        %v1161 = vmul.f32 %v1151, %v1159
        %1163 = vrot.lane.b32.xlu0 %v841, 96
        %v1164 = vpop.permute.xlu0 %1163
        %1165 = vrot.lane.b32.xlu0 %v846, 96
        %v1166 = vpop.permute.xlu0 %1165
        %v1169 = vsel %vm939, %v1160, 0
        %v1172 = vsel %vm939, %v1161, 0
        %v1174 = vsel %vm592, %v1166, 0
        %1176 = vmatprep.subr.mxu0 0.0
        %1177 = vmatpush1.msra.mxu0 0.0
        %1178 = vmatprep.subr.mxu0 0.0
        %1179 = vmatpush1.msra.mxu0 0.0
        %1180 = vmatprep.subr.mxu0 0.0
        %1181 = vmatpush1.msra.mxu0 0.0
        %1182 = vmatprep.subr.mxu0 0.0
        %1183 = vmatpush1.msra.mxu0 0.0
        %1184 = vmatprep.subr.mxu0 0.0
        %1185 = vmatpush1.msra.mxu0 0.0
        %1186 = vmatprep.subr.mxu0 0.0
        %1187 = vmatpush1.msra.mxu0 0.0
        %1188 = vmatprep.subr.mxu0 0.0
        %1189 = vmatpush1.msra.mxu0 0.0
        %1190 = vmatprep.subr.mxu0 0.0
        %1191 = vmatpush1.msra.mxu0 0.0
        %1192 = vmatprep.subr.mxu0 0.0
        %1193 = vmatpush1.msra.mxu0 0.0
        %1194 = vmatprep.subr.mxu0 0.0
        %1195 = vmatpush1.msra.mxu0 0.0
        %1196 = vmatprep.subr.mxu0 0.0
        %1197 = vmatpush1.msra.mxu0 0.0
        %1198 = vmatprep.subr.mxu0 0.0
        %1199 = vmatpush1.msra.mxu0 0.0
        %1200 = vmatprep.subr.mxu0 0.0
        %1201 = vmatpush1.msra.mxu0 0.0
        %1202 = vmatprep.subr.mxu0 0.0
        %1203 = vmatpush1.msra.mxu0 0.0
        %1204 = vmatprep.subr.mxu0 0.0
        %1205 = vmatpush1.msra.mxu0 %v1174
        %1206 = vmatprep.subr.mxu0 0.0
        %1207 = vmatpush1.msra.mxu0 %v1164
        %1208 = vmatprep.subr.mxu0 0.0
        %1209 = vmatpush2.msra.mxu0 0.0
        %1210 = vmatprep.subr.mxu0 0.0
        %1211 = vmatpush2.msra.mxu0 0.0
        %1212 = vmatprep.subr.mxu0 0.0
        %1213 = vmatpush2.msra.mxu0 0.0
        %1214 = vmatprep.subr.mxu0 0.0
        %1215 = vmatpush2.msra.mxu0 0.0
        %1216 = vmatprep.subr.mxu0 0.0
        %1217 = vmatpush2.msra.mxu0 0.0
        %1218 = vmatprep.subr.mxu0 0.0
        %1219 = vmatpush2.msra.mxu0 0.0
        %1220 = vmatprep.subr.mxu0 0.0
        %1221 = vmatpush2.msra.mxu0 0.0
        %1222 = vmatprep.subr.mxu0 0.0
        %1223 = vmatpush2.msra.mxu0 0.0
        %1224 = vmatprep.subr.mxu0 0.0
        %1225 = vmatpush2.msra.mxu0 0.0
        %1226 = vmatprep.subr.mxu0 0.0
        %1227 = vmatpush2.msra.mxu0 0.0
        %1228 = vmatprep.subr.mxu0 0.0
        %1229 = vmatpush2.msra.mxu0 0.0
        %1230 = vmatprep.subr.mxu0 0.0
        %1231 = vmatpush2.msra.mxu0 0.0
        %1232 = vmatprep.subr.mxu0 0.0
        %1233 = vmatpush2.msra.mxu0 0.0
        %1234 = vmatprep.subr.mxu0 0.0
        %1235 = vmatpush2.msra.mxu0 0.0
        %1236 = vmatprep.subr.mxu0 0.0
        %1237 = vmatpush2.msra.mxu0 0.0
        %1238 = vmatprep.subr.mxu0 0.0
        %1239 = vmatpush2.msra.mxu0 0.0
        %1240 = vmatprep.mubr.f32.mxu0 0.0
        %1241 = vmatmul.mubr.f32.gmra.mxu0 %v1169
        %v1242 = vpop.f32.mrf.mxu0
        %v1243 = vadd.f32 0.0, %v1242
        %v1244 = vpop.f32.mrf.mxu0
        %1245 = vmatprep.mubr.f32.mxu0 0.0
        %1246 = vmatmul.mubr.f32.gmra.mxu0 %v1172
        %v1247 = vpop.f32.mrf.mxu0
        %v1248 = vadd.f32 0.0, %v1247
        %v1249 = vpop.f32.mrf.mxu0
        %1250 = vdwg.mxu0
        %1251 = vrot.lane.b32.xlu0 %v764, 64
        %v1252 = vpop.permute.xlu0 %1251
        %1253 = vrot.lane.b32.xlu0 %v770, 64
        %v1254 = vpop.permute.xlu0 %1253
        %1255 = vrot.lane.b32.xlu0 %v766, 64
        %v1256 = vpop.permute.xlu0 %1255
        %1257 = vrot.lane.b32.xlu0 %v772, 64
        %v1258 = vpop.permute.xlu0 %1257
        %v1259 = vsel %vm849, %v1252, 0
        %v1261 = vsel %vm849, %v1254, 0
        %v1263 = vsel %vm849, %v1256, 0
        %v1265 = vsel %vm849, %v1258, 0
        %1267 = vmatprep.subr.mxu0 0.0
        %1268 = vmatpush1.xpose.msra.mxu0 0.0
        %1269 = vmatprep.subr.mxu0 0.0
        %1270 = vmatpush1.xpose.msra.mxu0 0.0
        %1271 = vmatprep.subr.mxu0 0.0
        %1272 = vmatpush1.xpose.msra.mxu0 0.0
        %1273 = vmatprep.subr.mxu0 0.0
        %1274 = vmatpush1.xpose.msra.mxu0 0.0
        %1275 = vmatprep.subr.mxu0 0.0
        %1276 = vmatpush1.xpose.msra.mxu0 0.0
        %1277 = vmatprep.subr.mxu0 0.0
        %1278 = vmatpush1.xpose.msra.mxu0 0.0
        %1279 = vmatprep.subr.mxu0 0.0
        %1280 = vmatpush1.xpose.msra.mxu0 0.0
        %1281 = vmatprep.subr.mxu0 0.0
        %1282 = vmatpush1.xpose.msra.mxu0 0.0
        %1283 = vmatprep.subr.mxu0 0.0
        %1284 = vmatpush1.xpose.msra.mxu0 0.0
        %1285 = vmatprep.subr.mxu0 0.0
        %1286 = vmatpush1.xpose.msra.mxu0 0.0
        %1287 = vmatprep.subr.mxu0 0.0
        %1288 = vmatpush1.xpose.msra.mxu0 0.0
        %1289 = vmatprep.subr.mxu0 0.0
        %1290 = vmatpush1.xpose.msra.mxu0 0.0
        %1291 = vmatprep.subr.mxu0 0.0
        %1292 = vmatpush1.xpose.msra.mxu0 0.0
        %1293 = vmatprep.subr.mxu0 0.0
        %1294 = vmatpush1.xpose.msra.mxu0 0.0
        %1295 = vmatprep.subr.mxu0 0.0
        %1296 = vmatpush1.xpose.msra.mxu0 %v1265
        %1297 = vmatprep.subr.mxu0 0.0
        %1298 = vmatpush1.xpose.msra.mxu0 %v1263
        %1299 = vmatprep.subr.mxu0 0.0
        %1300 = vmatpush2.xpose.msra.mxu0 0.0
        %1301 = vmatprep.subr.mxu0 0.0
        %1302 = vmatpush2.xpose.msra.mxu0 0.0
        %1303 = vmatprep.subr.mxu0 0.0
        %1304 = vmatpush2.xpose.msra.mxu0 0.0
        %1305 = vmatprep.subr.mxu0 0.0
        %1306 = vmatpush2.xpose.msra.mxu0 0.0
        %1307 = vmatprep.subr.mxu0 0.0
        %1308 = vmatpush2.xpose.msra.mxu0 0.0
        %1309 = vmatprep.subr.mxu0 0.0
        %1310 = vmatpush2.xpose.msra.mxu0 0.0
        %1311 = vmatprep.subr.mxu0 0.0
        %1312 = vmatpush2.xpose.msra.mxu0 0.0
        %1313 = vmatprep.subr.mxu0 0.0
        %1314 = vmatpush2.xpose.msra.mxu0 0.0
        %1315 = vmatprep.subr.mxu0 0.0
        %1316 = vmatpush2.xpose.msra.mxu0 0.0
        %1317 = vmatprep.subr.mxu0 0.0
        %1318 = vmatpush2.xpose.msra.mxu0 0.0
        %1319 = vmatprep.subr.mxu0 0.0
        %1320 = vmatpush2.xpose.msra.mxu0 0.0
        %1321 = vmatprep.subr.mxu0 0.0
        %1322 = vmatpush2.xpose.msra.mxu0 0.0
        %1323 = vmatprep.subr.mxu0 0.0
        %1324 = vmatpush2.xpose.msra.mxu0 0.0
        %1325 = vmatprep.subr.mxu0 0.0
        %1326 = vmatpush2.xpose.msra.mxu0 0.0
        %1327 = vmatprep.subr.mxu0 0.0
        %1328 = vmatpush2.xpose.msra.mxu0 0.0
        %1329 = vmatprep.subr.mxu0 0.0
        %1330 = vmatpush2.xpose.msra.mxu0 0.0
        %1331 = vmatprep.mubr.f32.mxu0 0.0
        %1332 = vmatmul.mubr.f32.gmra.mxu0 %v1259
        %v1333 = vpop.f32.mrf.mxu0
        %v1334 = vadd.f32 0.0, %v1333
        %v1335 = vpop.f32.mrf.mxu0
        %1336 = vmatprep.mubr.f32.mxu0 0.0
        %1337 = vmatmul.mubr.f32.gmra.mxu0 %v1261
        %v1338 = vpop.f32.mrf.mxu0
        %v1339 = vadd.f32 0.0, %v1338
        %v1340 = vpop.f32.mrf.mxu0
        %1341 = vdwg.mxu0
        %v1342 = vmul.f32 %v1334, 0.17677669
        %v1343 = vmul.f32 %v1339, 0.17677669
        %v1344 = vsel %vm939, %v1342, -inf
        %1345 = vmax.xlane.f32.xlu0 %v1344
        %v1346 = vpop.xlane.xlu0 %1345
        %v1347 = vsel %vm943, %v1343, -inf
        %1348 = vmax.xlane.f32.xlu0 %v1347
        %v1349 = vpop.xlane.xlu0 %1348
        %v1350 = vsub.f32 %v1342, %v1346
        %v1351 = vsub.f32 %v1343, %v1349
        %v1352 = vmul.f32 %v1350, 1.442695
        %v1353 = vpow.pop %v1352
        %v1354 = vmul.f32 %v1351, 1.442695
        %v1355 = vpow.pop %v1354
        %v1356 = vsel %vm939, %v1353, 0.0
        %1357 = vadd.xlane.f32.xlu0 %v1356
        %v1358 = vpop.xlane.xlu0 %1357
        %v1359 = vsel %vm943, %v1355, 0.0
        %1360 = vadd.xlane.f32.xlu0 %v1359
        %v1361 = vpop.xlane.xlu0 %1360
        %v1362 = vrcp.pop %v1358
        %v1363 = vrcp.pop %v1361
        %v1364 = vmul.f32 %v1353, %v1362
        %v1365 = vmul.f32 %v1355, %v1363
        %1366 = vrot.lane.b32.xlu0 %v841, 64
        %v1367 = vpop.permute.xlu0 %1366
        %1368 = vrot.lane.b32.xlu0 %v846, 64
        %v1369 = vpop.permute.xlu0 %1368
        %v1372 = vsel %vm939, %v1364, 0
        %v1375 = vsel %vm939, %v1365, 0
        %v1377 = vsel %vm592, %v1369, 0
        %1379 = vmatprep.subr.mxu0 0.0
        %1380 = vmatpush1.msra.mxu0 0.0
        %1381 = vmatprep.subr.mxu0 0.0
        %1382 = vmatpush1.msra.mxu0 0.0
        %1383 = vmatprep.subr.mxu0 0.0
        %1384 = vmatpush1.msra.mxu0 0.0
        %1385 = vmatprep.subr.mxu0 0.0
        %1386 = vmatpush1.msra.mxu0 0.0
        %1387 = vmatprep.subr.mxu0 0.0
        %1388 = vmatpush1.msra.mxu0 0.0
        %1389 = vmatprep.subr.mxu0 0.0
        %1390 = vmatpush1.msra.mxu0 0.0
        %1391 = vmatprep.subr.mxu0 0.0
        %1392 = vmatpush1.msra.mxu0 0.0
        %1393 = vmatprep.subr.mxu0 0.0
        %1394 = vmatpush1.msra.mxu0 0.0
        %1395 = vmatprep.subr.mxu0 0.0
        %1396 = vmatpush1.msra.mxu0 0.0
        %1397 = vmatprep.subr.mxu0 0.0
        %1398 = vmatpush1.msra.mxu0 0.0
        %1399 = vmatprep.subr.mxu0 0.0
        %1400 = vmatpush1.msra.mxu0 0.0
        %1401 = vmatprep.subr.mxu0 0.0
        %1402 = vmatpush1.msra.mxu0 0.0
        %1403 = vmatprep.subr.mxu0 0.0
        %1404 = vmatpush1.msra.mxu0 0.0
        %1405 = vmatprep.subr.mxu0 0.0
        %1406 = vmatpush1.msra.mxu0 0.0
        %1407 = vmatprep.subr.mxu0 0.0
        %1408 = vmatpush1.msra.mxu0 %v1377
        %1409 = vmatprep.subr.mxu0 0.0
        %1410 = vmatpush1.msra.mxu0 %v1367
        %1411 = vmatprep.subr.mxu0 0.0
        %1412 = vmatpush2.msra.mxu0 0.0
        %1413 = vmatprep.subr.mxu0 0.0
        %1414 = vmatpush2.msra.mxu0 0.0
        %1415 = vmatprep.subr.mxu0 0.0
        %1416 = vmatpush2.msra.mxu0 0.0
        %1417 = vmatprep.subr.mxu0 0.0
        %1418 = vmatpush2.msra.mxu0 0.0
        %1419 = vmatprep.subr.mxu0 0.0
        %1420 = vmatpush2.msra.mxu0 0.0
        %1421 = vmatprep.subr.mxu0 0.0
        %1422 = vmatpush2.msra.mxu0 0.0
        %1423 = vmatprep.subr.mxu0 0.0
        %1424 = vmatpush2.msra.mxu0 0.0
        %1425 = vmatprep.subr.mxu0 0.0
        %1426 = vmatpush2.msra.mxu0 0.0
        %1427 = vmatprep.subr.mxu0 0.0
        %1428 = vmatpush2.msra.mxu0 0.0
        %1429 = vmatprep.subr.mxu0 0.0
        %1430 = vmatpush2.msra.mxu0 0.0
        %1431 = vmatprep.subr.mxu0 0.0
        %1432 = vmatpush2.msra.mxu0 0.0
        %1433 = vmatprep.subr.mxu0 0.0
        %1434 = vmatpush2.msra.mxu0 0.0
        %1435 = vmatprep.subr.mxu0 0.0
        %1436 = vmatpush2.msra.mxu0 0.0
        %1437 = vmatprep.subr.mxu0 0.0
        %1438 = vmatpush2.msra.mxu0 0.0
        %1439 = vmatprep.subr.mxu0 0.0
        %1440 = vmatpush2.msra.mxu0 0.0
        %1441 = vmatprep.subr.mxu0 0.0
        %1442 = vmatpush2.msra.mxu0 0.0
        %1443 = vmatprep.mubr.f32.mxu0 0.0
        %1444 = vmatmul.mubr.f32.gmra.mxu0 %v1372
        %v1445 = vpop.f32.mrf.mxu0
        %v1446 = vadd.f32 0.0, %v1445
        %v1447 = vpop.f32.mrf.mxu0
        %1448 = vmatprep.mubr.f32.mxu0 0.0
        %1449 = vmatmul.mubr.f32.gmra.mxu0 %v1375
        %v1450 = vpop.f32.mrf.mxu0
        %v1451 = vadd.f32 0.0, %v1450
        %v1452 = vpop.f32.mrf.mxu0
        %1453 = vdwg.mxu0
        %1454 = vrot.lane.b32.xlu0 %v764, 32
        %v1455 = vpop.permute.xlu0 %1454
        %1456 = vrot.lane.b32.xlu0 %v770, 32
        %v1457 = vpop.permute.xlu0 %1456
        %1458 = vrot.lane.b32.xlu0 %v766, 32
        %v1459 = vpop.permute.xlu0 %1458
        %1460 = vrot.lane.b32.xlu0 %v772, 32
        %v1461 = vpop.permute.xlu0 %1460
        %v1462 = vsel %vm849, %v1455, 0
        %v1464 = vsel %vm849, %v1457, 0
        %v1466 = vsel %vm849, %v1459, 0
        %v1468 = vsel %vm849, %v1461, 0
        %1470 = vmatprep.subr.mxu0 0.0
        %1471 = vmatpush1.xpose.msra.mxu0 0.0
        %1472 = vmatprep.subr.mxu0 0.0
        %1473 = vmatpush1.xpose.msra.mxu0 0.0
        %1474 = vmatprep.subr.mxu0 0.0
        %1475 = vmatpush1.xpose.msra.mxu0 0.0
        %1476 = vmatprep.subr.mxu0 0.0
        %1477 = vmatpush1.xpose.msra.mxu0 0.0
        %1478 = vmatprep.subr.mxu0 0.0
        %1479 = vmatpush1.xpose.msra.mxu0 0.0
        %1480 = vmatprep.subr.mxu0 0.0
        %1481 = vmatpush1.xpose.msra.mxu0 0.0
        %1482 = vmatprep.subr.mxu0 0.0
        %1483 = vmatpush1.xpose.msra.mxu0 0.0
        %1484 = vmatprep.subr.mxu0 0.0
        %1485 = vmatpush1.xpose.msra.mxu0 0.0
        %1486 = vmatprep.subr.mxu0 0.0
        %1487 = vmatpush1.xpose.msra.mxu0 0.0
        %1488 = vmatprep.subr.mxu0 0.0
        %1489 = vmatpush1.xpose.msra.mxu0 0.0
        %1490 = vmatprep.subr.mxu0 0.0
        %1491 = vmatpush1.xpose.msra.mxu0 0.0
        %1492 = vmatprep.subr.mxu0 0.0
        %1493 = vmatpush1.xpose.msra.mxu0 0.0
        %1494 = vmatprep.subr.mxu0 0.0
        %1495 = vmatpush1.xpose.msra.mxu0 0.0
        %1496 = vmatprep.subr.mxu0 0.0
        %1497 = vmatpush1.xpose.msra.mxu0 0.0
        %1498 = vmatprep.subr.mxu0 0.0
        %1499 = vmatpush1.xpose.msra.mxu0 %v1468
        %1500 = vmatprep.subr.mxu0 0.0
        %1501 = vmatpush1.xpose.msra.mxu0 %v1466
        %1502 = vmatprep.subr.mxu0 0.0
        %1503 = vmatpush2.xpose.msra.mxu0 0.0
        %1504 = vmatprep.subr.mxu0 0.0
        %1505 = vmatpush2.xpose.msra.mxu0 0.0
        %1506 = vmatprep.subr.mxu0 0.0
        %1507 = vmatpush2.xpose.msra.mxu0 0.0
        %1508 = vmatprep.subr.mxu0 0.0
        %1509 = vmatpush2.xpose.msra.mxu0 0.0
        %1510 = vmatprep.subr.mxu0 0.0
        %1511 = vmatpush2.xpose.msra.mxu0 0.0
        %1512 = vmatprep.subr.mxu0 0.0
        %1513 = vmatpush2.xpose.msra.mxu0 0.0
        %1514 = vmatprep.subr.mxu0 0.0
        %1515 = vmatpush2.xpose.msra.mxu0 0.0
        %1516 = vmatprep.subr.mxu0 0.0
        %1517 = vmatpush2.xpose.msra.mxu0 0.0
        %1518 = vmatprep.subr.mxu0 0.0
        %1519 = vmatpush2.xpose.msra.mxu0 0.0
        %1520 = vmatprep.subr.mxu0 0.0
        %1521 = vmatpush2.xpose.msra.mxu0 0.0
        %1522 = vmatprep.subr.mxu0 0.0
        %1523 = vmatpush2.xpose.msra.mxu0 0.0
        %1524 = vmatprep.subr.mxu0 0.0
        %1525 = vmatpush2.xpose.msra.mxu0 0.0
        %1526 = vmatprep.subr.mxu0 0.0
        %1527 = vmatpush2.xpose.msra.mxu0 0.0
        %1528 = vmatprep.subr.mxu0 0.0
        %1529 = vmatpush2.xpose.msra.mxu0 0.0
        %1530 = vmatprep.subr.mxu0 0.0
        %1531 = vmatpush2.xpose.msra.mxu0 0.0
        %1532 = vmatprep.subr.mxu0 0.0
        %1533 = vmatpush2.xpose.msra.mxu0 0.0
        %1534 = vmatprep.mubr.f32.mxu0 0.0
        %1535 = vmatmul.mubr.f32.gmra.mxu0 %v1462
        %v1536 = vpop.f32.mrf.mxu0
        %v1537 = vadd.f32 0.0, %v1536
        %v1538 = vpop.f32.mrf.mxu0
        %1539 = vmatprep.mubr.f32.mxu0 0.0
        %1540 = vmatmul.mubr.f32.gmra.mxu0 %v1464
        %v1541 = vpop.f32.mrf.mxu0
        %v1542 = vadd.f32 0.0, %v1541
        %v1543 = vpop.f32.mrf.mxu0
        %1544 = vdwg.mxu0
        %v1545 = vmul.f32 %v1537, 0.17677669
        %v1546 = vmul.f32 %v1542, 0.17677669
        %v1547 = vsel %vm939, %v1545, -inf
        %1548 = vmax.xlane.f32.xlu0 %v1547
        %v1549 = vpop.xlane.xlu0 %1548
        %v1550 = vsel %vm943, %v1546, -inf
        %1551 = vmax.xlane.f32.xlu0 %v1550
        %v1552 = vpop.xlane.xlu0 %1551
        %v1553 = vsub.f32 %v1545, %v1549
        %v1554 = vsub.f32 %v1546, %v1552
        %v1555 = vmul.f32 %v1553, 1.442695
        %v1556 = vpow.pop %v1555
        %v1557 = vmul.f32 %v1554, 1.442695
        %v1558 = vpow.pop %v1557
        %v1559 = vsel %vm939, %v1556, 0.0
        %1560 = vadd.xlane.f32.xlu0 %v1559
        %v1561 = vpop.xlane.xlu0 %1560
        %v1562 = vsel %vm943, %v1558, 0.0
        %1563 = vadd.xlane.f32.xlu0 %v1562
        %v1564 = vpop.xlane.xlu0 %1563
        %v1565 = vrcp.pop %v1561
        %v1566 = vrcp.pop %v1564
        %v1567 = vmul.f32 %v1556, %v1565
        %v1568 = vmul.f32 %v1558, %v1566
        %1569 = vrot.lane.b32.xlu0 %v841, 32
        %v1570 = vpop.permute.xlu0 %1569
        %1571 = vrot.lane.b32.xlu0 %v846, 32
        %v1572 = vpop.permute.xlu0 %1571
        %v1575 = vsel %vm939, %v1567, 0
        %v1578 = vsel %vm939, %v1568, 0
        %v1580 = vsel %vm592, %v1572, 0
        %1582 = vmatprep.subr.mxu0 0.0
        %1583 = vmatpush1.msra.mxu0 0.0
        %1584 = vmatprep.subr.mxu0 0.0
        %1585 = vmatpush1.msra.mxu0 0.0
        %1586 = vmatprep.subr.mxu0 0.0
        %1587 = vmatpush1.msra.mxu0 0.0
        %1588 = vmatprep.subr.mxu0 0.0
        %1589 = vmatpush1.msra.mxu0 0.0
        %1590 = vmatprep.subr.mxu0 0.0
        %1591 = vmatpush1.msra.mxu0 0.0
        %1592 = vmatprep.subr.mxu0 0.0
        %1593 = vmatpush1.msra.mxu0 0.0
        %1594 = vmatprep.subr.mxu0 0.0
        %1595 = vmatpush1.msra.mxu0 0.0
        %1596 = vmatprep.subr.mxu0 0.0
        %1597 = vmatpush1.msra.mxu0 0.0
        %1598 = vmatprep.subr.mxu0 0.0
        %1599 = vmatpush1.msra.mxu0 0.0
        %1600 = vmatprep.subr.mxu0 0.0
        %1601 = vmatpush1.msra.mxu0 0.0
        %1602 = vmatprep.subr.mxu0 0.0
        %1603 = vmatpush1.msra.mxu0 0.0
        %1604 = vmatprep.subr.mxu0 0.0
        %1605 = vmatpush1.msra.mxu0 0.0
        %1606 = vmatprep.subr.mxu0 0.0
        %1607 = vmatpush1.msra.mxu0 0.0
        %1608 = vmatprep.subr.mxu0 0.0
        %1609 = vmatpush1.msra.mxu0 0.0
        %1610 = vmatprep.subr.mxu0 0.0
        %1611 = vmatpush1.msra.mxu0 %v1580
        %1612 = vmatprep.subr.mxu0 0.0
        %1613 = vmatpush1.msra.mxu0 %v1570
        %1614 = vmatprep.subr.mxu0 0.0
        %1615 = vmatpush2.msra.mxu0 0.0
        %1616 = vmatprep.subr.mxu0 0.0
        %1617 = vmatpush2.msra.mxu0 0.0
        %1618 = vmatprep.subr.mxu0 0.0
        %1619 = vmatpush2.msra.mxu0 0.0
        %1620 = vmatprep.subr.mxu0 0.0
        %1621 = vmatpush2.msra.mxu0 0.0
        %1622 = vmatprep.subr.mxu0 0.0
        %1623 = vmatpush2.msra.mxu0 0.0
        %1624 = vmatprep.subr.mxu0 0.0
        %1625 = vmatpush2.msra.mxu0 0.0
        %1626 = vmatprep.subr.mxu0 0.0
        %1627 = vmatpush2.msra.mxu0 0.0
        %1628 = vmatprep.subr.mxu0 0.0
        %1629 = vmatpush2.msra.mxu0 0.0
        %1630 = vmatprep.subr.mxu0 0.0
        %1631 = vmatpush2.msra.mxu0 0.0
        %1632 = vmatprep.subr.mxu0 0.0
        %1633 = vmatpush2.msra.mxu0 0.0
        %1634 = vmatprep.subr.mxu0 0.0
        %1635 = vmatpush2.msra.mxu0 0.0
        %1636 = vmatprep.subr.mxu0 0.0
        %1637 = vmatpush2.msra.mxu0 0.0
        %1638 = vmatprep.subr.mxu0 0.0
        %1639 = vmatpush2.msra.mxu0 0.0
        %1640 = vmatprep.subr.mxu0 0.0
        %1641 = vmatpush2.msra.mxu0 0.0
        %1642 = vmatprep.subr.mxu0 0.0
        %1643 = vmatpush2.msra.mxu0 0.0
        %1644 = vmatprep.subr.mxu0 0.0
        %1645 = vmatpush2.msra.mxu0 0.0
        %1646 = vmatprep.mubr.f32.mxu0 0.0
        %1647 = vmatmul.mubr.f32.gmra.mxu0 %v1575
        %v1648 = vpop.f32.mrf.mxu0
        %v1649 = vadd.f32 0.0, %v1648
        %v1650 = vpop.f32.mrf.mxu0
        %1651 = vmatprep.mubr.f32.mxu0 0.0
        %1652 = vmatmul.mubr.f32.gmra.mxu0 %v1578
        %v1653 = vpop.f32.mrf.mxu0
        %v1654 = vadd.f32 0.0, %v1653
        %v1655 = vpop.f32.mrf.mxu0
        %1656 = vdwg.mxu0
        %1659 = vrot.lane.b32.xlu0 %v1243, 32
        %v1660 = vpop.permute.xlu0 %1659
        %1661 = vrot.lane.b32.xlu0 %v1248, 32
        %v1662 = vpop.permute.xlu0 %1661
        %1667 = vrot.lane.b32.xlu0 %v1446, 64
        %v1668 = vpop.permute.xlu0 %1667
        %1669 = vrot.lane.b32.xlu0 %v1451, 64
        %v1670 = vpop.permute.xlu0 %1669
        %1675 = vrot.lane.b32.xlu0 %v1649, 96
        %v1676 = vpop.permute.xlu0 %1675
        %1677 = vrot.lane.b32.xlu0 %v1654, 96
        %v1678 = vpop.permute.xlu0 %1677
        %v1681 = vsel %vm849, %v1039, %v1660
        %v1682 = vsel %vm849, %v1044, %v1662
        %vm1683 = vcmask 523264
        %v1684 = vsel %vm1683, %v1681, %v1668
        %v1685 = vsel %vm1683, %v1682, %v1670
        %vm1686 = vcmask 785408
        %v1687 = vsel %vm1686, %v1684, %v1676
        %v1688 = vsel %vm1686, %v1685, %v1678
        %v1689 = vld [vmem:[%s5] sm:$0xff]
        %v1690 = vld [vmem:[%s5 + $0x8] sm:$0xff]
        %v1691 = vld [vmem:[%s5 + $0x10] sm:$0xff]
        %v1692 = vld [vmem:[%s5 + $0x18] sm:$0xff]
        %v1693 = vld [vmem:[%s5 + $0x20] sm:$0xff]
        %v1694 = vld [vmem:[%s5 + $0x28] sm:$0xff]
        %v1695 = vld [vmem:[%s5 + $0x30] sm:$0xff]
        %v1696 = vld [vmem:[%s5 + $0x38] sm:$0xff]
        %v1697 = vld [vmem:[%s5 + $0x40] sm:$0xff]
        %v1698 = vld [vmem:[%s5 + $0x48] sm:$0xff]
        %v1699 = vld [vmem:[%s5 + $0x50] sm:$0xff]
        %v1700 = vld [vmem:[%s5 + $0x58] sm:$0xff]
        %v1701 = vld [vmem:[%s5 + $0x60] sm:$0xff]
        %v1702 = vld [vmem:[%s5 + $0x68] sm:$0xff]
        %v1703 = vld [vmem:[%s5 + $0x70] sm:$0xff]
        %v1704 = vld [vmem:[%s5 + $0x78] sm:$0xff]
        %1705 = vmatprep.subr.mxu0 0.0
        %1706 = vmatpush1.msra.mxu0 %v1704
        %1707 = vmatprep.subr.mxu0 0.0
        %1708 = vmatpush1.msra.mxu0 %v1703
        %1709 = vmatprep.subr.mxu0 0.0
        %1710 = vmatpush1.msra.mxu0 %v1702
        %1711 = vmatprep.subr.mxu0 0.0
        %1712 = vmatpush1.msra.mxu0 %v1701
        %1713 = vmatprep.subr.mxu0 0.0
        %1714 = vmatpush1.msra.mxu0 %v1700
        %1715 = vmatprep.subr.mxu0 0.0
        %1716 = vmatpush1.msra.mxu0 %v1699
        %1717 = vmatprep.subr.mxu0 0.0
        %1718 = vmatpush1.msra.mxu0 %v1698
        %1719 = vmatprep.subr.mxu0 0.0
        %1720 = vmatpush1.msra.mxu0 %v1697
        %1721 = vmatprep.subr.mxu0 0.0
        %1722 = vmatpush1.msra.mxu0 %v1696
        %1723 = vmatprep.subr.mxu0 0.0
        %1724 = vmatpush1.msra.mxu0 %v1695
        %1725 = vmatprep.subr.mxu0 0.0
        %1726 = vmatpush1.msra.mxu0 %v1694
        %1727 = vmatprep.subr.mxu0 0.0
        %1728 = vmatpush1.msra.mxu0 %v1693
        %1729 = vmatprep.subr.mxu0 0.0
        %1730 = vmatpush1.msra.mxu0 %v1692
        %1731 = vmatprep.subr.mxu0 0.0
        %1732 = vmatpush1.msra.mxu0 %v1691
        %1733 = vmatprep.subr.mxu0 0.0
        %1734 = vmatpush1.msra.mxu0 %v1690
        %1735 = vmatprep.subr.mxu0 0.0
        %1736 = vmatpush1.msra.mxu0 %v1689
        %1737 = vmatprep.subr.mxu0 0.0
        %1738 = vmatpush2.msra.mxu0 0.0
        %1739 = vmatprep.subr.mxu0 0.0
        %1740 = vmatpush2.msra.mxu0 0.0
        %1741 = vmatprep.subr.mxu0 0.0
        %1742 = vmatpush2.msra.mxu0 0.0
        %1743 = vmatprep.subr.mxu0 0.0
        %1744 = vmatpush2.msra.mxu0 0.0
        %1745 = vmatprep.subr.mxu0 0.0
        %1746 = vmatpush2.msra.mxu0 0.0
        %1747 = vmatprep.subr.mxu0 0.0
        %1748 = vmatpush2.msra.mxu0 0.0
        %1749 = vmatprep.subr.mxu0 0.0
        %1750 = vmatpush2.msra.mxu0 0.0
        %1751 = vmatprep.subr.mxu0 0.0
        %1752 = vmatpush2.msra.mxu0 0.0
        %1753 = vmatprep.subr.mxu0 0.0
        %1754 = vmatpush2.msra.mxu0 0.0
        %1755 = vmatprep.subr.mxu0 0.0
        %1756 = vmatpush2.msra.mxu0 0.0
        %1757 = vmatprep.subr.mxu0 0.0
        %1758 = vmatpush2.msra.mxu0 0.0
        %1759 = vmatprep.subr.mxu0 0.0
        %1760 = vmatpush2.msra.mxu0 0.0
        %1761 = vmatprep.subr.mxu0 0.0
        %1762 = vmatpush2.msra.mxu0 0.0
        %1763 = vmatprep.subr.mxu0 0.0
        %1764 = vmatpush2.msra.mxu0 0.0
        %1765 = vmatprep.subr.mxu0 0.0
        %1766 = vmatpush2.msra.mxu0 0.0
        %1767 = vmatprep.subr.mxu0 0.0
        %1768 = vmatpush2.msra.mxu0 0.0
        %1769 = vmatprep.mubr.f32.mxu0 0.0
        %1770 = vmatmul.mubr.f32.gmra.mxu0 %v1687
        %v1771 = vpop.f32.mrf.mxu0
        %v1772 = vadd.f32 0.0, %v1771
        %v1773 = vpop.f32.mrf.mxu0
        %1774 = vmatprep.mubr.f32.mxu0 0.0
        %1775 = vmatmul.mubr.f32.gmra.mxu0 %v1688
        %v1776 = vpop.f32.mrf.mxu0
        %v1777 = vadd.f32 0.0, %v1776
        %v1778 = vpop.f32.mrf.mxu0
        %1779 = vdwg.mxu0
        %v1780 = vadd.f32 %v586, %v1772
        %v1781 = vadd.f32 %v587, %v1777
        %v1782 = vld [vmem:[%s6] sm:$0x1]
        %v1784 = vlaneseq
        %v1785 = vshrl.u32 %v1784, 7
        %v1786 = vsub.s32 0, %v1785
        %v1787 = vrot.slane %v1782, %v1786
        %v1789 = vadd.f32 %v1780, %v1787
        %v1790 = vadd.f32 %v1781, %v1787
        %v1791 = vld [vmem:[#allocation4] sm:$0x1]
        %v1792 = vld [vmem:[#allocation6] sm:$0x1]
        %1793 = vadd.xlane.f32.xlu0 %v1789
        %v1794 = vpop.xlane.xlu0 %1793
        %v1795 = vsel %vm592, %v1790, 0.0
        %1796 = vadd.xlane.f32.xlu0 %v1795
        %v1797 = vpop.xlane.xlu0 %1796
        %v1798 = vmul.f32 %v1794, %v596
        %v1799 = vmul.f32 %v1797, %v596
        %v1800 = vsub.f32 %v1789, %v1798
        %v1801 = vsub.f32 %v1790, %v1799
        %v1802 = vmul.f32 %v1800, %v1800
        %v1803 = vmul.f32 %v1801, %v1801
        %1804 = vadd.xlane.f32.xlu0 %v1802
        %v1805 = vpop.xlane.xlu0 %1804
        %v1806 = vsel %vm592, %v1803, 0.0
        %1807 = vadd.xlane.f32.xlu0 %v1806
        %v1808 = vpop.xlane.xlu0 %1807
        %v1809 = vmul.f32 %v1805, %v596
        %v1810 = vmul.f32 %v1808, %v596
        %v1811 = vadd.f32 %v1809, 1e-06
        %v1812 = vadd.f32 %v1810, 1e-06
        %v1813 = vrsqrt.pop %v1811
        %v1814 = vrsqrt.pop %v1812
        %v1815 = vmul.f32 %v1800, %v1813
        %v1816 = vmul.f32 %v1801, %v1814
        %v1818 = vlaneseq
        %v1819 = vshrl.u32 %v1818, 7
        %v1820 = vsub.s32 0, %v1819
        %v1821 = vrot.slane %v1791, %v1820
        %v1823 = vmul.f32 %v1815, %v1821
        %v1824 = vmul.f32 %v1816, %v1821
        %v1826 = vlaneseq
        %v1827 = vshrl.u32 %v1826, 7
        %v1828 = vsub.s32 0, %v1827
        %v1829 = vrot.slane %v1792, %v1828
        %v1831 = vadd.f32 %v1823, %v1829
        %v1832 = vadd.f32 %v1824, %v1829
        %v1833 = vld [vmem:[%s9] sm:$0xff]
        %v1834 = vld [vmem:[%s9 + $0x8] sm:$0xff]
        %v1835 = vld [vmem:[%s9 + $0x10] sm:$0xff]
        %v1836 = vld [vmem:[%s9 + $0x18] sm:$0xff]
        %v1837 = vld [vmem:[%s9 + $0x20] sm:$0xff]
        %v1838 = vld [vmem:[%s9 + $0x28] sm:$0xff]
        %v1839 = vld [vmem:[%s9 + $0x30] sm:$0xff]
        %v1840 = vld [vmem:[%s9 + $0x38] sm:$0xff]
        %v1841 = vld [vmem:[%s9 + $0x40] sm:$0xff]
        %v1842 = vld [vmem:[%s9 + $0x48] sm:$0xff]
        %v1843 = vld [vmem:[%s9 + $0x50] sm:$0xff]
        %v1844 = vld [vmem:[%s9 + $0x58] sm:$0xff]
        %v1845 = vld [vmem:[%s9 + $0x60] sm:$0xff]
        %v1846 = vld [vmem:[%s9 + $0x68] sm:$0xff]
        %v1847 = vld [vmem:[%s9 + $0x70] sm:$0xff]
        %v1848 = vld [vmem:[%s9 + $0x78] sm:$0xff]
        %v1849 = vld [vmem:[%s9 + $0x80] sm:$0xff]
        %v1850 = vld [vmem:[%s9 + $0x88] sm:$0xff]
        %v1851 = vld [vmem:[%s9 + $0x90] sm:$0xff]
        %v1852 = vld [vmem:[%s9 + $0x98] sm:$0xff]
        %v1853 = vld [vmem:[%s9 + $0xa0] sm:$0xff]
        %v1854 = vld [vmem:[%s9 + $0xa8] sm:$0xff]
        %v1855 = vld [vmem:[%s9 + $0xb0] sm:$0xff]
        %v1856 = vld [vmem:[%s9 + $0xb8] sm:$0xff]
        %v1857 = vld [vmem:[%s9 + $0xc0] sm:$0xff]
        %v1858 = vld [vmem:[%s9 + $0xc8] sm:$0xff]
        %v1859 = vld [vmem:[%s9 + $0xd0] sm:$0xff]
        %v1860 = vld [vmem:[%s9 + $0xd8] sm:$0xff]
        %v1861 = vld [vmem:[%s9 + $0xe0] sm:$0xff]
        %v1862 = vld [vmem:[%s9 + $0xe8] sm:$0xff]
        %v1863 = vld [vmem:[%s9 + $0xf0] sm:$0xff]
        %v1864 = vld [vmem:[%s9 + $0xf8] sm:$0xff]
        %v1865 = vld [vmem:[%s9 + $0x100] sm:$0xff]
        %v1866 = vld [vmem:[%s9 + $0x108] sm:$0xff]
        %v1867 = vld [vmem:[%s9 + $0x110] sm:$0xff]
        %v1868 = vld [vmem:[%s9 + $0x118] sm:$0xff]
        %v1869 = vld [vmem:[%s9 + $0x120] sm:$0xff]
        %v1870 = vld [vmem:[%s9 + $0x128] sm:$0xff]
        %v1871 = vld [vmem:[%s9 + $0x130] sm:$0xff]
        %v1872 = vld [vmem:[%s9 + $0x138] sm:$0xff]
        %v1873 = vld [vmem:[%s9 + $0x140] sm:$0xff]
        %v1874 = vld [vmem:[%s9 + $0x148] sm:$0xff]
        %v1875 = vld [vmem:[%s9 + $0x150] sm:$0xff]
        %v1876 = vld [vmem:[%s9 + $0x158] sm:$0xff]
        %v1877 = vld [vmem:[%s9 + $0x160] sm:$0xff]
        %v1878 = vld [vmem:[%s9 + $0x168] sm:$0xff]
        %v1879 = vld [vmem:[%s9 + $0x170] sm:$0xff]
        %v1880 = vld [vmem:[%s9 + $0x178] sm:$0xff]
        %v1881 = vld [vmem:[%s9 + $0x180] sm:$0xff]
        %v1882 = vld [vmem:[%s9 + $0x188] sm:$0xff]
        %v1883 = vld [vmem:[%s9 + $0x190] sm:$0xff]
        %v1884 = vld [vmem:[%s9 + $0x198] sm:$0xff]
        %v1885 = vld [vmem:[%s9 + $0x1a0] sm:$0xff]
        %v1886 = vld [vmem:[%s9 + $0x1a8] sm:$0xff]
        %v1887 = vld [vmem:[%s9 + $0x1b0] sm:$0xff]
        %v1888 = vld [vmem:[%s9 + $0x1b8] sm:$0xff]
        %v1889 = vld [vmem:[%s9 + $0x1c0] sm:$0xff]
        %v1890 = vld [vmem:[%s9 + $0x1c8] sm:$0xff]
        %v1891 = vld [vmem:[%s9 + $0x1d0] sm:$0xff]
        %v1892 = vld [vmem:[%s9 + $0x1d8] sm:$0xff]
        %v1893 = vld [vmem:[%s9 + $0x1e0] sm:$0xff]
        %v1894 = vld [vmem:[%s9 + $0x1e8] sm:$0xff]
        %v1895 = vld [vmem:[%s9 + $0x1f0] sm:$0xff]
        %v1896 = vld [vmem:[%s9 + $0x1f8] sm:$0xff]
        %v1897 = vld [vmem:[%s10] sm:$0xf]
        %v1899 = vlaneseq
        %v1900 = vshrl.u32 %v1899, 7
        %v1901 = vsub.s32 0, %v1900
        %v1902 = vrot.slane %v1897, %v1901
        %v1903 = vlaneseq
        %v1904 = vshrl.u32 %v1903, 7
        %v1905 = vsub.s32 1, %v1904
        %v1906 = vrot.slane %v1897, %v1905
        %v1907 = vlaneseq
        %v1908 = vshrl.u32 %v1907, 7
        %v1909 = vsub.s32 2, %v1908
        %v1910 = vrot.slane %v1897, %v1909
        %v1911 = vlaneseq
        %v1912 = vshrl.u32 %v1911, 7
        %v1913 = vsub.s32 3, %v1912
        %v1914 = vrot.slane %v1897, %v1913
        %1919 = vmatprep.subr.mxu0 %v1894
        %1920 = vmatpush1.msra.mxu0 %v1893
        %1921 = vmatprep.subr.mxu0 %v1890
        %1922 = vmatpush1.msra.mxu0 %v1889
        %1923 = vmatprep.subr.mxu0 %v1886
        %1924 = vmatpush1.msra.mxu0 %v1885
        %1925 = vmatprep.subr.mxu0 %v1882
        %1926 = vmatpush1.msra.mxu0 %v1881
        %1927 = vmatprep.subr.mxu0 %v1878
        %1928 = vmatpush1.msra.mxu0 %v1877
        %1929 = vmatprep.subr.mxu0 %v1874
        %1930 = vmatpush1.msra.mxu0 %v1873
        %1931 = vmatprep.subr.mxu0 %v1870
        %1932 = vmatpush1.msra.mxu0 %v1869
        %1933 = vmatprep.subr.mxu0 %v1866
        %1934 = vmatpush1.msra.mxu0 %v1865
        %1935 = vmatprep.subr.mxu0 %v1862
        %1936 = vmatpush1.msra.mxu0 %v1861
        %1937 = vmatprep.subr.mxu0 %v1858
        %1938 = vmatpush1.msra.mxu0 %v1857
        %1939 = vmatprep.subr.mxu0 %v1854
        %1940 = vmatpush1.msra.mxu0 %v1853
        %1941 = vmatprep.subr.mxu0 %v1850
        %1942 = vmatpush1.msra.mxu0 %v1849
        %1943 = vmatprep.subr.mxu0 %v1846
        %1944 = vmatpush1.msra.mxu0 %v1845
        %1945 = vmatprep.subr.mxu0 %v1842
        %1946 = vmatpush1.msra.mxu0 %v1841
        %1947 = vmatprep.subr.mxu0 %v1838
        %1948 = vmatpush1.msra.mxu0 %v1837
        %1949 = vmatprep.subr.mxu0 %v1834
        %1950 = vmatpush1.msra.mxu0 %v1833
        %1951 = vmatprep.subr.mxu0 0.0
        %1952 = vmatpush2.msra.mxu0 0.0
        %1953 = vmatprep.subr.mxu0 0.0
        %1954 = vmatpush2.msra.mxu0 0.0
        %1955 = vmatprep.subr.mxu0 0.0
        %1956 = vmatpush2.msra.mxu0 0.0
        %1957 = vmatprep.subr.mxu0 0.0
        %1958 = vmatpush2.msra.mxu0 0.0
        %1959 = vmatprep.subr.mxu0 0.0
        %1960 = vmatpush2.msra.mxu0 0.0
        %1961 = vmatprep.subr.mxu0 0.0
        %1962 = vmatpush2.msra.mxu0 0.0
        %1963 = vmatprep.subr.mxu0 0.0
        %1964 = vmatpush2.msra.mxu0 0.0
        %1965 = vmatprep.subr.mxu0 0.0
        %1966 = vmatpush2.msra.mxu0 0.0
        %1967 = vmatprep.subr.mxu0 0.0
        %1968 = vmatpush2.msra.mxu0 0.0
        %1969 = vmatprep.subr.mxu0 0.0
        %1970 = vmatpush2.msra.mxu0 0.0
        %1971 = vmatprep.subr.mxu0 0.0
        %1972 = vmatpush2.msra.mxu0 0.0
        %1973 = vmatprep.subr.mxu0 0.0
        %1974 = vmatpush2.msra.mxu0 0.0
        %1975 = vmatprep.subr.mxu0 0.0
        %1976 = vmatpush2.msra.mxu0 0.0
        %1977 = vmatprep.subr.mxu0 0.0
        %1978 = vmatpush2.msra.mxu0 0.0
        %1979 = vmatprep.subr.mxu0 0.0
        %1980 = vmatpush2.msra.mxu0 0.0
        %1981 = vmatprep.subr.mxu0 0.0
        %1982 = vmatpush2.msra.mxu0 0.0
        %1983 = vmatprep.mubr.f32.mxu0 0.0
        %1984 = vmatmul.mubr.f32.gmra.mxu0 %v1831
        %v1985 = vpop.f32.mrf.mxu0
        %v1986 = vadd.f32 %v1902, %v1985
        %v1987 = vpop.f32.mrf.mxu0
        %v1988 = vadd.f32 %v1906, %v1987
        %1989 = vmatprep.mubr.f32.mxu0 0.0
        %1990 = vmatmul.mubr.f32.gmra.mxu0 %v1832
        %v1991 = vpop.f32.mrf.mxu0
        %v1992 = vadd.f32 %v1902, %v1991
        %v1993 = vpop.f32.mrf.mxu0
        %v1994 = vadd.f32 %v1906, %v1993
        %1995 = vdwg.mxu0
        %1996 = vmatprep.subr.mxu0 %v1896
        %1997 = vmatpush1.msra.mxu0 %v1895
        %1998 = vmatprep.subr.mxu0 %v1892
        %1999 = vmatpush1.msra.mxu0 %v1891
        %2000 = vmatprep.subr.mxu0 %v1888
        %2001 = vmatpush1.msra.mxu0 %v1887
        %2002 = vmatprep.subr.mxu0 %v1884
        %2003 = vmatpush1.msra.mxu0 %v1883
        %2004 = vmatprep.subr.mxu0 %v1880
        %2005 = vmatpush1.msra.mxu0 %v1879
        %2006 = vmatprep.subr.mxu0 %v1876
        %2007 = vmatpush1.msra.mxu0 %v1875
        %2008 = vmatprep.subr.mxu0 %v1872
        %2009 = vmatpush1.msra.mxu0 %v1871
        %2010 = vmatprep.subr.mxu0 %v1868
        %2011 = vmatpush1.msra.mxu0 %v1867
        %2012 = vmatprep.subr.mxu0 %v1864
        %2013 = vmatpush1.msra.mxu0 %v1863
        %2014 = vmatprep.subr.mxu0 %v1860
        %2015 = vmatpush1.msra.mxu0 %v1859
        %2016 = vmatprep.subr.mxu0 %v1856
        %2017 = vmatpush1.msra.mxu0 %v1855
        %2018 = vmatprep.subr.mxu0 %v1852
        %2019 = vmatpush1.msra.mxu0 %v1851
        %2020 = vmatprep.subr.mxu0 %v1848
        %2021 = vmatpush1.msra.mxu0 %v1847
        %2022 = vmatprep.subr.mxu0 %v1844
        %2023 = vmatpush1.msra.mxu0 %v1843
        %2024 = vmatprep.subr.mxu0 %v1840
        %2025 = vmatpush1.msra.mxu0 %v1839
        %2026 = vmatprep.subr.mxu0 %v1836
        %2027 = vmatpush1.msra.mxu0 %v1835
        %2028 = vmatprep.subr.mxu0 0.0
        %2029 = vmatpush2.msra.mxu0 0.0
        %2030 = vmatprep.subr.mxu0 0.0
        %2031 = vmatpush2.msra.mxu0 0.0
        %2032 = vmatprep.subr.mxu0 0.0
        %2033 = vmatpush2.msra.mxu0 0.0
        %2034 = vmatprep.subr.mxu0 0.0
        %2035 = vmatpush2.msra.mxu0 0.0
        %2036 = vmatprep.subr.mxu0 0.0
        %2037 = vmatpush2.msra.mxu0 0.0
        %2038 = vmatprep.subr.mxu0 0.0
        %2039 = vmatpush2.msra.mxu0 0.0
        %2040 = vmatprep.subr.mxu0 0.0
        %2041 = vmatpush2.msra.mxu0 0.0
        %2042 = vmatprep.subr.mxu0 0.0
        %2043 = vmatpush2.msra.mxu0 0.0
        %2044 = vmatprep.subr.mxu0 0.0
        %2045 = vmatpush2.msra.mxu0 0.0
        %2046 = vmatprep.subr.mxu0 0.0
        %2047 = vmatpush2.msra.mxu0 0.0
        %2048 = vmatprep.subr.mxu0 0.0
        %2049 = vmatpush2.msra.mxu0 0.0
        %2050 = vmatprep.subr.mxu0 0.0
        %2051 = vmatpush2.msra.mxu0 0.0
        %2052 = vmatprep.subr.mxu0 0.0
        %2053 = vmatpush2.msra.mxu0 0.0
        %2054 = vmatprep.subr.mxu0 0.0
        %2055 = vmatpush2.msra.mxu0 0.0
        %2056 = vmatprep.subr.mxu0 0.0
        %2057 = vmatpush2.msra.mxu0 0.0
        %2058 = vmatprep.subr.mxu0 0.0
        %2059 = vmatpush2.msra.mxu0 0.0
        %2060 = vmatprep.mubr.f32.mxu0 0.0
        %2061 = vmatmul.mubr.f32.gmra.mxu0 %v1831
        %v2062 = vpop.f32.mrf.mxu0
        %v2063 = vadd.f32 %v1910, %v2062
        %v2064 = vpop.f32.mrf.mxu0
        %v2065 = vadd.f32 %v1914, %v2064
        %2066 = vmatprep.mubr.f32.mxu0 0.0
        %2067 = vmatmul.mubr.f32.gmra.mxu0 %v1832
        %v2068 = vpop.f32.mrf.mxu0
        %v2069 = vadd.f32 %v1910, %v2068
        %v2070 = vpop.f32.mrf.mxu0
        %v2071 = vadd.f32 %v1914, %v2070
        %2072 = vdwg.mxu0
        %v2073 = vmul.f32 %v1986, %v1986
        %v2074 = vmul.f32 %v1988, %v1988
        %v2075 = vmul.f32 %v2063, %v2063
        %v2076 = vmul.f32 %v2065, %v2065
        %v2077 = vmul.f32 %v1992, %v1992
        %v2078 = vmul.f32 %v1994, %v1994
        %v2079 = vmul.f32 %v2069, %v2069
        %v2080 = vmul.f32 %v2071, %v2071
        %v2081 = vmul.f32 %v1986, %v2073
        %v2082 = vmul.f32 %v1988, %v2074
        %v2083 = vmul.f32 %v2063, %v2075
        %v2084 = vmul.f32 %v2065, %v2076
        %v2085 = vmul.f32 %v1992, %v2077
        %v2086 = vmul.f32 %v1994, %v2078
        %v2087 = vmul.f32 %v2069, %v2079
        %v2088 = vmul.f32 %v2071, %v2080
        %v2089 = vmul.f32 %v2081, 0.044715
        %v2090 = vmul.f32 %v2082, 0.044715
        %v2091 = vmul.f32 %v2083, 0.044715
        %v2092 = vmul.f32 %v2084, 0.044715
        %v2093 = vmul.f32 %v2085, 0.044715
        %v2094 = vmul.f32 %v2086, 0.044715
        %v2095 = vmul.f32 %v2087, 0.044715
        %v2096 = vmul.f32 %v2088, 0.044715
        %v2097 = vadd.f32 %v1986, %v2089
        %v2098 = vadd.f32 %v1988, %v2090
        %v2099 = vadd.f32 %v2063, %v2091
        %v2100 = vadd.f32 %v2065, %v2092
        %v2101 = vadd.f32 %v1992, %v2093
        %v2102 = vadd.f32 %v1994, %v2094
        %v2103 = vadd.f32 %v2069, %v2095
        %v2104 = vadd.f32 %v2071, %v2096
        %v2105 = vmul.f32 %v2097, 0.7978846
        %v2106 = vmul.f32 %v2098, 0.7978846
        %v2107 = vmul.f32 %v2099, 0.7978846
        %v2108 = vmul.f32 %v2100, 0.7978846
        %v2109 = vmul.f32 %v2101, 0.7978846
        %v2110 = vmul.f32 %v2102, 0.7978846
        %v2111 = vmul.f32 %v2103, 0.7978846
        %v2112 = vmul.f32 %v2104, 0.7978846
        %v2113 = vtanh.pop %v2105
        %v2114 = vtanh.pop %v2106
        %v2115 = vtanh.pop %v2107
        %v2116 = vtanh.pop %v2108
        %v2117 = vtanh.pop %v2109
        %v2118 = vtanh.pop %v2110
        %v2119 = vtanh.pop %v2111
        %v2120 = vtanh.pop %v2112
        %v2121 = vadd.f32 %v2113, 1.0
        %v2122 = vadd.f32 %v2114, 1.0
        %v2123 = vadd.f32 %v2115, 1.0
        %v2124 = vadd.f32 %v2116, 1.0
        %v2125 = vadd.f32 %v2117, 1.0
        %v2126 = vadd.f32 %v2118, 1.0
        %v2127 = vadd.f32 %v2119, 1.0
        %v2128 = vadd.f32 %v2120, 1.0
        %v2129 = vmul.f32 %v2121, 0.5
        %v2130 = vmul.f32 %v2122, 0.5
        %v2131 = vmul.f32 %v2123, 0.5
        %v2132 = vmul.f32 %v2124, 0.5
        %v2133 = vmul.f32 %v2125, 0.5
        %v2134 = vmul.f32 %v2126, 0.5
        %v2135 = vmul.f32 %v2127, 0.5
        %v2136 = vmul.f32 %v2128, 0.5
        %v2137 = vmul.f32 %v1986, %v2129
        %v2138 = vmul.f32 %v1988, %v2130
        %v2139 = vmul.f32 %v2063, %v2131
        %v2140 = vmul.f32 %v2065, %v2132
        %v2141 = vmul.f32 %v1992, %v2133
        %v2142 = vmul.f32 %v1994, %v2134
        %v2143 = vmul.f32 %v2069, %v2135
        %v2144 = vmul.f32 %v2071, %v2136
        %v2145 = vld [vmem:[%s11] sm:$0xff]
        %v2146 = vld [vmem:[%s11 + $0x8] sm:$0xff]
        %v2147 = vld [vmem:[%s11 + $0x10] sm:$0xff]
        %v2148 = vld [vmem:[%s11 + $0x18] sm:$0xff]
        %v2149 = vld [vmem:[%s11 + $0x20] sm:$0xff]
        %v2150 = vld [vmem:[%s11 + $0x28] sm:$0xff]
        %v2151 = vld [vmem:[%s11 + $0x30] sm:$0xff]
        %v2152 = vld [vmem:[%s11 + $0x38] sm:$0xff]
        %v2153 = vld [vmem:[%s11 + $0x40] sm:$0xff]
        %v2154 = vld [vmem:[%s11 + $0x48] sm:$0xff]
        %v2155 = vld [vmem:[%s11 + $0x50] sm:$0xff]
        %v2156 = vld [vmem:[%s11 + $0x58] sm:$0xff]
        %v2157 = vld [vmem:[%s11 + $0x60] sm:$0xff]
        %v2158 = vld [vmem:[%s11 + $0x68] sm:$0xff]
        %v2159 = vld [vmem:[%s11 + $0x70] sm:$0xff]
        %v2160 = vld [vmem:[%s11 + $0x78] sm:$0xff]
        %v2161 = vld [vmem:[%s11 + $0x80] sm:$0xff]
        %v2162 = vld [vmem:[%s11 + $0x88] sm:$0xff]
        %v2163 = vld [vmem:[%s11 + $0x90] sm:$0xff]
        %v2164 = vld [vmem:[%s11 + $0x98] sm:$0xff]
        %v2165 = vld [vmem:[%s11 + $0xa0] sm:$0xff]
        %v2166 = vld [vmem:[%s11 + $0xa8] sm:$0xff]
        %v2167 = vld [vmem:[%s11 + $0xb0] sm:$0xff]
        %v2168 = vld [vmem:[%s11 + $0xb8] sm:$0xff]
        %v2169 = vld [vmem:[%s11 + $0xc0] sm:$0xff]
        %v2170 = vld [vmem:[%s11 + $0xc8] sm:$0xff]
        %v2171 = vld [vmem:[%s11 + $0xd0] sm:$0xff]
        %v2172 = vld [vmem:[%s11 + $0xd8] sm:$0xff]
        %v2173 = vld [vmem:[%s11 + $0xe0] sm:$0xff]
        %v2174 = vld [vmem:[%s11 + $0xe8] sm:$0xff]
        %v2175 = vld [vmem:[%s11 + $0xf0] sm:$0xff]
        %v2176 = vld [vmem:[%s11 + $0xf8] sm:$0xff]
        %v2177 = vld [vmem:[%s11 + $0x100] sm:$0xff]
        %v2178 = vld [vmem:[%s11 + $0x108] sm:$0xff]
        %v2179 = vld [vmem:[%s11 + $0x110] sm:$0xff]
        %v2180 = vld [vmem:[%s11 + $0x118] sm:$0xff]
        %v2181 = vld [vmem:[%s11 + $0x120] sm:$0xff]
        %v2182 = vld [vmem:[%s11 + $0x128] sm:$0xff]
        %v2183 = vld [vmem:[%s11 + $0x130] sm:$0xff]
        %v2184 = vld [vmem:[%s11 + $0x138] sm:$0xff]
        %v2185 = vld [vmem:[%s11 + $0x140] sm:$0xff]
        %v2186 = vld [vmem:[%s11 + $0x148] sm:$0xff]
        %v2187 = vld [vmem:[%s11 + $0x150] sm:$0xff]
        %v2188 = vld [vmem:[%s11 + $0x158] sm:$0xff]
        %v2189 = vld [vmem:[%s11 + $0x160] sm:$0xff]
        %v2190 = vld [vmem:[%s11 + $0x168] sm:$0xff]
        %v2191 = vld [vmem:[%s11 + $0x170] sm:$0xff]
        %v2192 = vld [vmem:[%s11 + $0x178] sm:$0xff]
        %v2193 = vld [vmem:[%s11 + $0x180] sm:$0xff]
        %v2194 = vld [vmem:[%s11 + $0x188] sm:$0xff]
        %v2195 = vld [vmem:[%s11 + $0x190] sm:$0xff]
        %v2196 = vld [vmem:[%s11 + $0x198] sm:$0xff]
        %v2197 = vld [vmem:[%s11 + $0x1a0] sm:$0xff]
        %v2198 = vld [vmem:[%s11 + $0x1a8] sm:$0xff]
        %v2199 = vld [vmem:[%s11 + $0x1b0] sm:$0xff]
        %v2200 = vld [vmem:[%s11 + $0x1b8] sm:$0xff]
        %v2201 = vld [vmem:[%s11 + $0x1c0] sm:$0xff]
        %v2202 = vld [vmem:[%s11 + $0x1c8] sm:$0xff]
        %v2203 = vld [vmem:[%s11 + $0x1d0] sm:$0xff]
        %v2204 = vld [vmem:[%s11 + $0x1d8] sm:$0xff]
        %v2205 = vld [vmem:[%s11 + $0x1e0] sm:$0xff]
        %v2206 = vld [vmem:[%s11 + $0x1e8] sm:$0xff]
        %v2207 = vld [vmem:[%s11 + $0x1f0] sm:$0xff]
        %v2208 = vld [vmem:[%s11 + $0x1f8] sm:$0xff]
        %2209 = vmatprep.subr.mxu0 0.0
        %2210 = vmatpush1.msra.mxu0 %v2160
        %2211 = vmatprep.subr.mxu0 0.0
        %2212 = vmatpush1.msra.mxu0 %v2159
        %2213 = vmatprep.subr.mxu0 0.0
        %2214 = vmatpush1.msra.mxu0 %v2158
        %2215 = vmatprep.subr.mxu0 0.0
        %2216 = vmatpush1.msra.mxu0 %v2157
        %2217 = vmatprep.subr.mxu0 0.0
        %2218 = vmatpush1.msra.mxu0 %v2156
        %2219 = vmatprep.subr.mxu0 0.0
        %2220 = vmatpush1.msra.mxu0 %v2155
        %2221 = vmatprep.subr.mxu0 0.0
        %2222 = vmatpush1.msra.mxu0 %v2154
        %2223 = vmatprep.subr.mxu0 0.0
        %2224 = vmatpush1.msra.mxu0 %v2153
        %2225 = vmatprep.subr.mxu0 0.0
        %2226 = vmatpush1.msra.mxu0 %v2152
        %2227 = vmatprep.subr.mxu0 0.0
        %2228 = vmatpush1.msra.mxu0 %v2151
        %2229 = vmatprep.subr.mxu0 0.0
        %2230 = vmatpush1.msra.mxu0 %v2150
        %2231 = vmatprep.subr.mxu0 0.0
        %2232 = vmatpush1.msra.mxu0 %v2149
        %2233 = vmatprep.subr.mxu0 0.0
        %2234 = vmatpush1.msra.mxu0 %v2148
        %2235 = vmatprep.subr.mxu0 0.0
        %2236 = vmatpush1.msra.mxu0 %v2147
        %2237 = vmatprep.subr.mxu0 0.0
        %2238 = vmatpush1.msra.mxu0 %v2146
        %2239 = vmatprep.subr.mxu0 0.0
        %2240 = vmatpush1.msra.mxu0 %v2145
        %2241 = vmatprep.subr.mxu0 0.0
        %2242 = vmatpush2.msra.mxu0 %v2176
        %2243 = vmatprep.subr.mxu0 0.0
        %2244 = vmatpush2.msra.mxu0 %v2175
        %2245 = vmatprep.subr.mxu0 0.0
        %2246 = vmatpush2.msra.mxu0 %v2174
        %2247 = vmatprep.subr.mxu0 0.0
        %2248 = vmatpush2.msra.mxu0 %v2173
        %2249 = vmatprep.subr.mxu0 0.0
        %2250 = vmatpush2.msra.mxu0 %v2172
        %2251 = vmatprep.subr.mxu0 0.0
        %2252 = vmatpush2.msra.mxu0 %v2171
        %2253 = vmatprep.subr.mxu0 0.0
        %2254 = vmatpush2.msra.mxu0 %v2170
        %2255 = vmatprep.subr.mxu0 0.0
        %2256 = vmatpush2.msra.mxu0 %v2169
        %2257 = vmatprep.subr.mxu0 0.0
        %2258 = vmatpush2.msra.mxu0 %v2168
        %2259 = vmatprep.subr.mxu0 0.0
        %2260 = vmatpush2.msra.mxu0 %v2167
        %2261 = vmatprep.subr.mxu0 0.0
        %2262 = vmatpush2.msra.mxu0 %v2166
        %2263 = vmatprep.subr.mxu0 0.0
        %2264 = vmatpush2.msra.mxu0 %v2165
        %2265 = vmatprep.subr.mxu0 0.0
        %2266 = vmatpush2.msra.mxu0 %v2164
        %2267 = vmatprep.subr.mxu0 0.0
        %2268 = vmatpush2.msra.mxu0 %v2163
        %2269 = vmatprep.subr.mxu0 0.0
        %2270 = vmatpush2.msra.mxu0 %v2162
        %2271 = vmatprep.subr.mxu0 0.0
        %2272 = vmatpush2.msra.mxu0 %v2161
        %2273 = vmatprep.mubr.f32.mxu0 %v2138
        %2274 = vmatmul.mubr.f32.gmra.mxu0 %v2137
        %v2275 = vpop.f32.mrf.mxu0
        %v2276 = vadd.f32 0.0, %v2275
        %v2277 = vpop.f32.mrf.mxu0
        %2278 = vmatprep.mubr.f32.mxu0 %v2142
        %2279 = vmatmul.mubr.f32.gmra.mxu0 %v2141
        %v2280 = vpop.f32.mrf.mxu0
        %v2281 = vadd.f32 0.0, %v2280
        %v2282 = vpop.f32.mrf.mxu0
        %2283 = vdwg.mxu0
        %2284 = vmatprep.subr.mxu0 0.0
        %2285 = vmatpush1.msra.mxu0 %v2192
        %2286 = vmatprep.subr.mxu0 0.0
        %2287 = vmatpush1.msra.mxu0 %v2191
        %2288 = vmatprep.subr.mxu0 0.0
        %2289 = vmatpush1.msra.mxu0 %v2190
        %2290 = vmatprep.subr.mxu0 0.0
        %2291 = vmatpush1.msra.mxu0 %v2189
        %2292 = vmatprep.subr.mxu0 0.0
        %2293 = vmatpush1.msra.mxu0 %v2188
        %2294 = vmatprep.subr.mxu0 0.0
        %2295 = vmatpush1.msra.mxu0 %v2187
        %2296 = vmatprep.subr.mxu0 0.0
        %2297 = vmatpush1.msra.mxu0 %v2186
        %2298 = vmatprep.subr.mxu0 0.0
        %2299 = vmatpush1.msra.mxu0 %v2185
        %2300 = vmatprep.subr.mxu0 0.0
        %2301 = vmatpush1.msra.mxu0 %v2184
        %2302 = vmatprep.subr.mxu0 0.0
        %2303 = vmatpush1.msra.mxu0 %v2183
        %2304 = vmatprep.subr.mxu0 0.0
        %2305 = vmatpush1.msra.mxu0 %v2182
        %2306 = vmatprep.subr.mxu0 0.0
        %2307 = vmatpush1.msra.mxu0 %v2181
        %2308 = vmatprep.subr.mxu0 0.0
        %2309 = vmatpush1.msra.mxu0 %v2180
        %2310 = vmatprep.subr.mxu0 0.0
        %2311 = vmatpush1.msra.mxu0 %v2179
        %2312 = vmatprep.subr.mxu0 0.0
        %2313 = vmatpush1.msra.mxu0 %v2178
        %2314 = vmatprep.subr.mxu0 0.0
        %2315 = vmatpush1.msra.mxu0 %v2177
        %2316 = vmatprep.subr.mxu0 0.0
        %2317 = vmatpush2.msra.mxu0 %v2208
        %2318 = vmatprep.subr.mxu0 0.0
        %2319 = vmatpush2.msra.mxu0 %v2207
        %2320 = vmatprep.subr.mxu0 0.0
        %2321 = vmatpush2.msra.mxu0 %v2206
        %2322 = vmatprep.subr.mxu0 0.0
        %2323 = vmatpush2.msra.mxu0 %v2205
        %2324 = vmatprep.subr.mxu0 0.0
        %2325 = vmatpush2.msra.mxu0 %v2204
        %2326 = vmatprep.subr.mxu0 0.0
        %2327 = vmatpush2.msra.mxu0 %v2203
        %2328 = vmatprep.subr.mxu0 0.0
        %2329 = vmatpush2.msra.mxu0 %v2202
        %2330 = vmatprep.subr.mxu0 0.0
        %2331 = vmatpush2.msra.mxu0 %v2201
        %2332 = vmatprep.subr.mxu0 0.0
        %2333 = vmatpush2.msra.mxu0 %v2200
        %2334 = vmatprep.subr.mxu0 0.0
        %2335 = vmatpush2.msra.mxu0 %v2199
        %2336 = vmatprep.subr.mxu0 0.0
        %2337 = vmatpush2.msra.mxu0 %v2198
        %2338 = vmatprep.subr.mxu0 0.0
        %2339 = vmatpush2.msra.mxu0 %v2197
        %2340 = vmatprep.subr.mxu0 0.0
        %2341 = vmatpush2.msra.mxu0 %v2196
        %2342 = vmatprep.subr.mxu0 0.0
        %2343 = vmatpush2.msra.mxu0 %v2195
        %2344 = vmatprep.subr.mxu0 0.0
        %2345 = vmatpush2.msra.mxu0 %v2194
        %2346 = vmatprep.subr.mxu0 0.0
        %2347 = vmatpush2.msra.mxu0 %v2193
        %2348 = vmatprep.mubr.f32.mxu0 %v2140
        %2349 = vmatmul.mubr.f32.gmra.mxu0 %v2139
        %v2350 = vpop.f32.mrf.mxu0
        %v2351 = vadd.f32 %v2276, %v2350
        %v2352 = vpop.f32.mrf.mxu0
        %2353 = vmatprep.mubr.f32.mxu0 %v2144
        %2354 = vmatmul.mubr.f32.gmra.mxu0 %v2143
        %v2355 = vpop.f32.mrf.mxu0
        %v2356 = vadd.f32 %v2281, %v2355
        %v2357 = vpop.f32.mrf.mxu0
        %2358 = vdwg.mxu0
        %v2359 = vadd.f32 %v1789, %v2351
        %v2360 = vadd.f32 %v1790, %v2356
        %v2361 = vld [vmem:[#allocation7] sm:$0x1]
        %v2363 = vlaneseq
        %v2364 = vshrl.u32 %v2363, 7
        %v2365 = vsub.s32 0, %v2364
        %v2366 = vrot.slane %v2361, %v2365
        %v2368 = vadd.f32 %v2359, %v2366
        %v2369 = vadd.f32 %v2360, %v2366
        %s2370 = scalar_lea.vmem %s1, 1
        %v2371 = vld [vmem:[%s2370] sm:$0x1]
        %s2372 = scalar_lea.vmem %s2, 1
        %v2373 = vld [vmem:[%s2372] sm:$0x1]
        %2374 = vadd.xlane.f32.xlu0 %v2368
        %v2375 = vpop.xlane.xlu0 %2374
        %v2376 = vsel %vm592, %v2369, 0.0
        %2377 = vadd.xlane.f32.xlu0 %v2376
        %v2378 = vpop.xlane.xlu0 %2377
        %v2379 = vmul.f32 %v2375, %v596
        %v2380 = vmul.f32 %v2378, %v596
        %v2381 = vsub.f32 %v2368, %v2379
        %v2382 = vsub.f32 %v2369, %v2380
        %v2383 = vmul.f32 %v2381, %v2381
        %v2384 = vmul.f32 %v2382, %v2382
        %2385 = vadd.xlane.f32.xlu0 %v2383
        %v2386 = vpop.xlane.xlu0 %2385
        %v2387 = vsel %vm592, %v2384, 0.0
        %2388 = vadd.xlane.f32.xlu0 %v2387
        %v2389 = vpop.xlane.xlu0 %2388
        %v2390 = vmul.f32 %v2386, %v596
        %v2391 = vmul.f32 %v2389, %v596
        %v2392 = vadd.f32 %v2390, 1e-06
        %v2393 = vadd.f32 %v2391, 1e-06
        %v2394 = vrsqrt.pop %v2392
        %v2395 = vrsqrt.pop %v2393
        %v2396 = vmul.f32 %v2381, %v2394
        %v2397 = vmul.f32 %v2382, %v2395
        %v2399 = vlaneseq
        %v2400 = vshrl.u32 %v2399, 7
        %v2401 = vsub.s32 0, %v2400
        %v2402 = vrot.slane %v2371, %v2401
        %v2404 = vmul.f32 %v2396, %v2402
        %v2405 = vmul.f32 %v2397, %v2402
        %v2407 = vlaneseq
        %v2408 = vshrl.u32 %v2407, 7
        %v2409 = vsub.s32 0, %v2408
        %v2410 = vrot.slane %v2373, %v2409
        %v2412 = vadd.f32 %v2404, %v2410
        %v2413 = vadd.f32 %v2405, %v2410
        %s2414 = scalar_lea.vmem [#allocation2], 384
        %v2415 = vld [vmem:[%s2414] sm:$0xff]
        %v2416 = vld [vmem:[%s2414 + $0x8] sm:$0xff]
        %v2417 = vld [vmem:[%s2414 + $0x10] sm:$0xff]
        %v2418 = vld [vmem:[%s2414 + $0x18] sm:$0xff]
        %v2419 = vld [vmem:[%s2414 + $0x20] sm:$0xff]
        %v2420 = vld [vmem:[%s2414 + $0x28] sm:$0xff]
        %v2421 = vld [vmem:[%s2414 + $0x30] sm:$0xff]
        %v2422 = vld [vmem:[%s2414 + $0x38] sm:$0xff]
        %v2423 = vld [vmem:[%s2414 + $0x40] sm:$0xff]
        %v2424 = vld [vmem:[%s2414 + $0x48] sm:$0xff]
        %v2425 = vld [vmem:[%s2414 + $0x50] sm:$0xff]
        %v2426 = vld [vmem:[%s2414 + $0x58] sm:$0xff]
        %v2427 = vld [vmem:[%s2414 + $0x60] sm:$0xff]
        %v2428 = vld [vmem:[%s2414 + $0x68] sm:$0xff]
        %v2429 = vld [vmem:[%s2414 + $0x70] sm:$0xff]
        %v2430 = vld [vmem:[%s2414 + $0x78] sm:$0xff]
        %v2431 = vld [vmem:[%s2414 + $0x80] sm:$0xff]
        %v2432 = vld [vmem:[%s2414 + $0x88] sm:$0xff]
        %v2433 = vld [vmem:[%s2414 + $0x90] sm:$0xff]
        %v2434 = vld [vmem:[%s2414 + $0x98] sm:$0xff]
        %v2435 = vld [vmem:[%s2414 + $0xa0] sm:$0xff]
        %v2436 = vld [vmem:[%s2414 + $0xa8] sm:$0xff]
        %v2437 = vld [vmem:[%s2414 + $0xb0] sm:$0xff]
        %v2438 = vld [vmem:[%s2414 + $0xb8] sm:$0xff]
        %v2439 = vld [vmem:[%s2414 + $0xc0] sm:$0xff]
        %v2440 = vld [vmem:[%s2414 + $0xc8] sm:$0xff]
        %v2441 = vld [vmem:[%s2414 + $0xd0] sm:$0xff]
        %v2442 = vld [vmem:[%s2414 + $0xd8] sm:$0xff]
        %v2443 = vld [vmem:[%s2414 + $0xe0] sm:$0xff]
        %v2444 = vld [vmem:[%s2414 + $0xe8] sm:$0xff]
        %v2445 = vld [vmem:[%s2414 + $0xf0] sm:$0xff]
        %v2446 = vld [vmem:[%s2414 + $0xf8] sm:$0xff]
        %v2447 = vld [vmem:[%s2414 + $0x100] sm:$0xff]
        %v2448 = vld [vmem:[%s2414 + $0x108] sm:$0xff]
        %v2449 = vld [vmem:[%s2414 + $0x110] sm:$0xff]
        %v2450 = vld [vmem:[%s2414 + $0x118] sm:$0xff]
        %v2451 = vld [vmem:[%s2414 + $0x120] sm:$0xff]
        %v2452 = vld [vmem:[%s2414 + $0x128] sm:$0xff]
        %v2453 = vld [vmem:[%s2414 + $0x130] sm:$0xff]
        %v2454 = vld [vmem:[%s2414 + $0x138] sm:$0xff]
        %v2455 = vld [vmem:[%s2414 + $0x140] sm:$0xff]
        %v2456 = vld [vmem:[%s2414 + $0x148] sm:$0xff]
        %v2457 = vld [vmem:[%s2414 + $0x150] sm:$0xff]
        %v2458 = vld [vmem:[%s2414 + $0x158] sm:$0xff]
        %v2459 = vld [vmem:[%s2414 + $0x160] sm:$0xff]
        %v2460 = vld [vmem:[%s2414 + $0x168] sm:$0xff]
        %v2461 = vld [vmem:[%s2414 + $0x170] sm:$0xff]
        %v2462 = vld [vmem:[%s2414 + $0x178] sm:$0xff]
        %s2463 = scalar_lea.vmem %s4, 3
        %v2464 = vld [vmem:[%s2463] sm:$0x7]
        %v2466 = vlaneseq
        %v2467 = vshrl.u32 %v2466, 7
        %v2468 = vsub.s32 0, %v2467
        %v2469 = vrot.slane %v2464, %v2468
        %v2470 = vlaneseq
        %v2471 = vshrl.u32 %v2470, 7
        %v2472 = vsub.s32 1, %v2471
        %v2473 = vrot.slane %v2464, %v2472
        %v2474 = vlaneseq
        %v2475 = vshrl.u32 %v2474, 7
        %v2476 = vsub.s32 2, %v2475
        %v2477 = vrot.slane %v2464, %v2476
        %2481 = vmatprep.subr.mxu0 %v2461
        %2482 = vmatpush1.msra.mxu0 %v2460
        %2483 = vmatprep.subr.mxu0 %v2458
        %2484 = vmatpush1.msra.mxu0 %v2457
        %2485 = vmatprep.subr.mxu0 %v2455
        %2486 = vmatpush1.msra.mxu0 %v2454
        %2487 = vmatprep.subr.mxu0 %v2452
        %2488 = vmatpush1.msra.mxu0 %v2451
        %2489 = vmatprep.subr.mxu0 %v2449
        %2490 = vmatpush1.msra.mxu0 %v2448
        %2491 = vmatprep.subr.mxu0 %v2446
        %2492 = vmatpush1.msra.mxu0 %v2445
        %2493 = vmatprep.subr.mxu0 %v2443
        %2494 = vmatpush1.msra.mxu0 %v2442
        %2495 = vmatprep.subr.mxu0 %v2440
        %2496 = vmatpush1.msra.mxu0 %v2439
        %2497 = vmatprep.subr.mxu0 %v2437
        %2498 = vmatpush1.msra.mxu0 %v2436
        %2499 = vmatprep.subr.mxu0 %v2434
        %2500 = vmatpush1.msra.mxu0 %v2433
        %2501 = vmatprep.subr.mxu0 %v2431
        %2502 = vmatpush1.msra.mxu0 %v2430
        %2503 = vmatprep.subr.mxu0 %v2428
        %2504 = vmatpush1.msra.mxu0 %v2427
        %2505 = vmatprep.subr.mxu0 %v2425
        %2506 = vmatpush1.msra.mxu0 %v2424
        %2507 = vmatprep.subr.mxu0 %v2422
        %2508 = vmatpush1.msra.mxu0 %v2421
        %2509 = vmatprep.subr.mxu0 %v2419
        %2510 = vmatpush1.msra.mxu0 %v2418
        %2511 = vmatprep.subr.mxu0 %v2416
        %2512 = vmatpush1.msra.mxu0 %v2415
        %2513 = vmatprep.subr.mxu0 0.0
        %2514 = vmatpush2.msra.mxu0 0.0
        %2515 = vmatprep.subr.mxu0 0.0
        %2516 = vmatpush2.msra.mxu0 0.0
        %2517 = vmatprep.subr.mxu0 0.0
        %2518 = vmatpush2.msra.mxu0 0.0
        %2519 = vmatprep.subr.mxu0 0.0
        %2520 = vmatpush2.msra.mxu0 0.0
        %2521 = vmatprep.subr.mxu0 0.0
        %2522 = vmatpush2.msra.mxu0 0.0
        %2523 = vmatprep.subr.mxu0 0.0
        %2524 = vmatpush2.msra.mxu0 0.0
        %2525 = vmatprep.subr.mxu0 0.0
        %2526 = vmatpush2.msra.mxu0 0.0
        %2527 = vmatprep.subr.mxu0 0.0
        %2528 = vmatpush2.msra.mxu0 0.0
        %2529 = vmatprep.subr.mxu0 0.0
        %2530 = vmatpush2.msra.mxu0 0.0
        %2531 = vmatprep.subr.mxu0 0.0
        %2532 = vmatpush2.msra.mxu0 0.0
        %2533 = vmatprep.subr.mxu0 0.0
        %2534 = vmatpush2.msra.mxu0 0.0
        %2535 = vmatprep.subr.mxu0 0.0
        %2536 = vmatpush2.msra.mxu0 0.0
        %2537 = vmatprep.subr.mxu0 0.0
        %2538 = vmatpush2.msra.mxu0 0.0
        %2539 = vmatprep.subr.mxu0 0.0
        %2540 = vmatpush2.msra.mxu0 0.0
        %2541 = vmatprep.subr.mxu0 0.0
        %2542 = vmatpush2.msra.mxu0 0.0
        %2543 = vmatprep.subr.mxu0 0.0
        %2544 = vmatpush2.msra.mxu0 0.0
        %2545 = vmatprep.mubr.f32.mxu0 0.0
        %2546 = vmatmul.mubr.f32.gmra.mxu0 %v2412
        %v2547 = vpop.f32.mrf.mxu0
        %v2548 = vadd.f32 %v2469, %v2547
        %v2549 = vpop.f32.mrf.mxu0
        %v2550 = vadd.f32 %v2473, %v2549
        %2551 = vmatprep.mubr.f32.mxu0 0.0
        %2552 = vmatmul.mubr.f32.gmra.mxu0 %v2413
        %v2553 = vpop.f32.mrf.mxu0
        %v2554 = vadd.f32 %v2469, %v2553
        %v2555 = vpop.f32.mrf.mxu0
        %v2556 = vadd.f32 %v2473, %v2555
        %2557 = vdwg.mxu0
        %2558 = vmatprep.subr.mxu0 0.0
        %2559 = vmatpush1.msra.mxu0 %v2462
        %2560 = vmatprep.subr.mxu0 0.0
        %2561 = vmatpush1.msra.mxu0 %v2459
        %2562 = vmatprep.subr.mxu0 0.0
        %2563 = vmatpush1.msra.mxu0 %v2456
        %2564 = vmatprep.subr.mxu0 0.0
        %2565 = vmatpush1.msra.mxu0 %v2453
        %2566 = vmatprep.subr.mxu0 0.0
        %2567 = vmatpush1.msra.mxu0 %v2450
        %2568 = vmatprep.subr.mxu0 0.0
        %2569 = vmatpush1.msra.mxu0 %v2447
        %2570 = vmatprep.subr.mxu0 0.0
        %2571 = vmatpush1.msra.mxu0 %v2444
        %2572 = vmatprep.subr.mxu0 0.0
        %2573 = vmatpush1.msra.mxu0 %v2441
        %2574 = vmatprep.subr.mxu0 0.0
        %2575 = vmatpush1.msra.mxu0 %v2438
        %2576 = vmatprep.subr.mxu0 0.0
        %2577 = vmatpush1.msra.mxu0 %v2435
        %2578 = vmatprep.subr.mxu0 0.0
        %2579 = vmatpush1.msra.mxu0 %v2432
        %2580 = vmatprep.subr.mxu0 0.0
        %2581 = vmatpush1.msra.mxu0 %v2429
        %2582 = vmatprep.subr.mxu0 0.0
        %2583 = vmatpush1.msra.mxu0 %v2426
        %2584 = vmatprep.subr.mxu0 0.0
        %2585 = vmatpush1.msra.mxu0 %v2423
        %2586 = vmatprep.subr.mxu0 0.0
        %2587 = vmatpush1.msra.mxu0 %v2420
        %2588 = vmatprep.subr.mxu0 0.0
        %2589 = vmatpush1.msra.mxu0 %v2417
        %2590 = vmatprep.subr.mxu0 0.0
        %2591 = vmatpush2.msra.mxu0 0.0
        %2592 = vmatprep.subr.mxu0 0.0
        %2593 = vmatpush2.msra.mxu0 0.0
        %2594 = vmatprep.subr.mxu0 0.0
        %2595 = vmatpush2.msra.mxu0 0.0
        %2596 = vmatprep.subr.mxu0 0.0
        %2597 = vmatpush2.msra.mxu0 0.0
        %2598 = vmatprep.subr.mxu0 0.0
        %2599 = vmatpush2.msra.mxu0 0.0
        %2600 = vmatprep.subr.mxu0 0.0
        %2601 = vmatpush2.msra.mxu0 0.0
        %2602 = vmatprep.subr.mxu0 0.0
        %2603 = vmatpush2.msra.mxu0 0.0
        %2604 = vmatprep.subr.mxu0 0.0
        %2605 = vmatpush2.msra.mxu0 0.0
        %2606 = vmatprep.subr.mxu0 0.0
        %2607 = vmatpush2.msra.mxu0 0.0
        %2608 = vmatprep.subr.mxu0 0.0
        %2609 = vmatpush2.msra.mxu0 0.0
        %2610 = vmatprep.subr.mxu0 0.0
        %2611 = vmatpush2.msra.mxu0 0.0
        %2612 = vmatprep.subr.mxu0 0.0
        %2613 = vmatpush2.msra.mxu0 0.0
        %2614 = vmatprep.subr.mxu0 0.0
        %2615 = vmatpush2.msra.mxu0 0.0
        %2616 = vmatprep.subr.mxu0 0.0
        %2617 = vmatpush2.msra.mxu0 0.0
        %2618 = vmatprep.subr.mxu0 0.0
        %2619 = vmatpush2.msra.mxu0 0.0
        %2620 = vmatprep.subr.mxu0 0.0
        %2621 = vmatpush2.msra.mxu0 0.0
        %2622 = vmatprep.mubr.f32.mxu0 0.0
        %2623 = vmatmul.mubr.f32.gmra.mxu0 %v2412
        %v2624 = vpop.f32.mrf.mxu0
        %v2625 = vadd.f32 %v2477, %v2624
        %v2626 = vpop.f32.mrf.mxu0
        %2627 = vmatprep.mubr.f32.mxu0 0.0
        %2628 = vmatmul.mubr.f32.gmra.mxu0 %v2413
        %v2629 = vpop.f32.mrf.mxu0
        %v2630 = vadd.f32 %v2477, %v2629
        %v2631 = vpop.f32.mrf.mxu0
        %2632 = vdwg.mxu0
        %v2634 = vsel %vm849, %v2548, 0
        %v2637 = vsel %vm849, %v2554, 0
        %v2640 = vsel %vm849, %v2550, 0
        %v2643 = vsel %vm849, %v2556, 0
        %2645 = vmatprep.subr.mxu0 0.0
        %2646 = vmatpush1.xpose.msra.mxu0 0.0
        %2647 = vmatprep.subr.mxu0 0.0
        %2648 = vmatpush1.xpose.msra.mxu0 0.0
        %2649 = vmatprep.subr.mxu0 0.0
        %2650 = vmatpush1.xpose.msra.mxu0 0.0
        %2651 = vmatprep.subr.mxu0 0.0
        %2652 = vmatpush1.xpose.msra.mxu0 0.0
        %2653 = vmatprep.subr.mxu0 0.0
        %2654 = vmatpush1.xpose.msra.mxu0 0.0
        %2655 = vmatprep.subr.mxu0 0.0
        %2656 = vmatpush1.xpose.msra.mxu0 0.0
        %2657 = vmatprep.subr.mxu0 0.0
        %2658 = vmatpush1.xpose.msra.mxu0 0.0
        %2659 = vmatprep.subr.mxu0 0.0
        %2660 = vmatpush1.xpose.msra.mxu0 0.0
        %2661 = vmatprep.subr.mxu0 0.0
        %2662 = vmatpush1.xpose.msra.mxu0 0.0
        %2663 = vmatprep.subr.mxu0 0.0
        %2664 = vmatpush1.xpose.msra.mxu0 0.0
        %2665 = vmatprep.subr.mxu0 0.0
        %2666 = vmatpush1.xpose.msra.mxu0 0.0
        %2667 = vmatprep.subr.mxu0 0.0
        %2668 = vmatpush1.xpose.msra.mxu0 0.0
        %2669 = vmatprep.subr.mxu0 0.0
        %2670 = vmatpush1.xpose.msra.mxu0 0.0
        %2671 = vmatprep.subr.mxu0 0.0
        %2672 = vmatpush1.xpose.msra.mxu0 0.0
        %2673 = vmatprep.subr.mxu0 0.0
        %2674 = vmatpush1.xpose.msra.mxu0 %v2643
        %2675 = vmatprep.subr.mxu0 0.0
        %2676 = vmatpush1.xpose.msra.mxu0 %v2640
        %2677 = vmatprep.subr.mxu0 0.0
        %2678 = vmatpush2.xpose.msra.mxu0 0.0
        %2679 = vmatprep.subr.mxu0 0.0
        %2680 = vmatpush2.xpose.msra.mxu0 0.0
        %2681 = vmatprep.subr.mxu0 0.0
        %2682 = vmatpush2.xpose.msra.mxu0 0.0
        %2683 = vmatprep.subr.mxu0 0.0
        %2684 = vmatpush2.xpose.msra.mxu0 0.0
        %2685 = vmatprep.subr.mxu0 0.0
        %2686 = vmatpush2.xpose.msra.mxu0 0.0
        %2687 = vmatprep.subr.mxu0 0.0
        %2688 = vmatpush2.xpose.msra.mxu0 0.0
        %2689 = vmatprep.subr.mxu0 0.0
        %2690 = vmatpush2.xpose.msra.mxu0 0.0
        %2691 = vmatprep.subr.mxu0 0.0
        %2692 = vmatpush2.xpose.msra.mxu0 0.0
        %2693 = vmatprep.subr.mxu0 0.0
        %2694 = vmatpush2.xpose.msra.mxu0 0.0
        %2695 = vmatprep.subr.mxu0 0.0
        %2696 = vmatpush2.xpose.msra.mxu0 0.0
        %2697 = vmatprep.subr.mxu0 0.0
        %2698 = vmatpush2.xpose.msra.mxu0 0.0
        %2699 = vmatprep.subr.mxu0 0.0
        %2700 = vmatpush2.xpose.msra.mxu0 0.0
        %2701 = vmatprep.subr.mxu0 0.0
        %2702 = vmatpush2.xpose.msra.mxu0 0.0
        %2703 = vmatprep.subr.mxu0 0.0
        %2704 = vmatpush2.xpose.msra.mxu0 0.0
        %2705 = vmatprep.subr.mxu0 0.0
        %2706 = vmatpush2.xpose.msra.mxu0 0.0
        %2707 = vmatprep.subr.mxu0 0.0
        %2708 = vmatpush2.xpose.msra.mxu0 0.0
        %2709 = vmatprep.mubr.f32.mxu0 0.0
        %2710 = vmatmul.mubr.f32.gmra.mxu0 %v2634
        %v2711 = vpop.f32.mrf.mxu0
        %v2712 = vadd.f32 0.0, %v2711
        %v2713 = vpop.f32.mrf.mxu0
        %2714 = vmatprep.mubr.f32.mxu0 0.0
        %2715 = vmatmul.mubr.f32.gmra.mxu0 %v2637
        %v2716 = vpop.f32.mrf.mxu0
        %v2717 = vadd.f32 0.0, %v2716
        %v2718 = vpop.f32.mrf.mxu0
        %2719 = vdwg.mxu0
        %v2720 = vmul.f32 %v2712, 0.17677669
        %v2721 = vmul.f32 %v2717, 0.17677669
        %v2722 = vsel %vm939, %v2720, -inf
        %2723 = vmax.xlane.f32.xlu0 %v2722
        %v2724 = vpop.xlane.xlu0 %2723
        %v2725 = vsel %vm943, %v2721, -inf
        %2726 = vmax.xlane.f32.xlu0 %v2725
        %v2727 = vpop.xlane.xlu0 %2726
        %v2728 = vsub.f32 %v2720, %v2724
        %v2729 = vsub.f32 %v2721, %v2727
        %v2730 = vmul.f32 %v2728, 1.442695
        %v2731 = vpow.pop %v2730
        %v2732 = vmul.f32 %v2729, 1.442695
        %v2733 = vpow.pop %v2732
        %v2734 = vsel %vm939, %v2731, 0.0
        %2735 = vadd.xlane.f32.xlu0 %v2734
        %v2736 = vpop.xlane.xlu0 %2735
        %v2737 = vsel %vm943, %v2733, 0.0
        %2738 = vadd.xlane.f32.xlu0 %v2737
        %v2739 = vpop.xlane.xlu0 %2738
        %v2740 = vrcp.pop %v2736
        %v2741 = vrcp.pop %v2739
        %v2742 = vmul.f32 %v2731, %v2740
        %v2743 = vmul.f32 %v2733, %v2741
        %v2745 = vsel %vm939, %v2742, 0
        %v2748 = vsel %vm939, %v2743, 0
        %v2751 = vsel %vm592, %v2630, 0
        %2753 = vmatprep.subr.mxu0 0.0
        %2754 = vmatpush1.msra.mxu0 0.0
        %2755 = vmatprep.subr.mxu0 0.0
        %2756 = vmatpush1.msra.mxu0 0.0
        %2757 = vmatprep.subr.mxu0 0.0
        %2758 = vmatpush1.msra.mxu0 0.0
        %2759 = vmatprep.subr.mxu0 0.0
        %2760 = vmatpush1.msra.mxu0 0.0
        %2761 = vmatprep.subr.mxu0 0.0
        %2762 = vmatpush1.msra.mxu0 0.0
        %2763 = vmatprep.subr.mxu0 0.0
        %2764 = vmatpush1.msra.mxu0 0.0
        %2765 = vmatprep.subr.mxu0 0.0
        %2766 = vmatpush1.msra.mxu0 0.0
        %2767 = vmatprep.subr.mxu0 0.0
        %2768 = vmatpush1.msra.mxu0 0.0
        %2769 = vmatprep.subr.mxu0 0.0
        %2770 = vmatpush1.msra.mxu0 0.0
        %2771 = vmatprep.subr.mxu0 0.0
        %2772 = vmatpush1.msra.mxu0 0.0
        %2773 = vmatprep.subr.mxu0 0.0
        %2774 = vmatpush1.msra.mxu0 0.0
        %2775 = vmatprep.subr.mxu0 0.0
        %2776 = vmatpush1.msra.mxu0 0.0
        %2777 = vmatprep.subr.mxu0 0.0
        %2778 = vmatpush1.msra.mxu0 0.0
        %2779 = vmatprep.subr.mxu0 0.0
        %2780 = vmatpush1.msra.mxu0 0.0
        %2781 = vmatprep.subr.mxu0 0.0
        %2782 = vmatpush1.msra.mxu0 %v2751
        %2783 = vmatprep.subr.mxu0 0.0
        %2784 = vmatpush1.msra.mxu0 %v2625
        %2785 = vmatprep.subr.mxu0 0.0
        %2786 = vmatpush2.msra.mxu0 0.0
        %2787 = vmatprep.subr.mxu0 0.0
        %2788 = vmatpush2.msra.mxu0 0.0
        %2789 = vmatprep.subr.mxu0 0.0
        %2790 = vmatpush2.msra.mxu0 0.0
        %2791 = vmatprep.subr.mxu0 0.0
        %2792 = vmatpush2.msra.mxu0 0.0
        %2793 = vmatprep.subr.mxu0 0.0
        %2794 = vmatpush2.msra.mxu0 0.0
        %2795 = vmatprep.subr.mxu0 0.0
        %2796 = vmatpush2.msra.mxu0 0.0
        %2797 = vmatprep.subr.mxu0 0.0
        %2798 = vmatpush2.msra.mxu0 0.0
        %2799 = vmatprep.subr.mxu0 0.0
        %2800 = vmatpush2.msra.mxu0 0.0
        %2801 = vmatprep.subr.mxu0 0.0
        %2802 = vmatpush2.msra.mxu0 0.0
        %2803 = vmatprep.subr.mxu0 0.0
        %2804 = vmatpush2.msra.mxu0 0.0
        %2805 = vmatprep.subr.mxu0 0.0
        %2806 = vmatpush2.msra.mxu0 0.0
        %2807 = vmatprep.subr.mxu0 0.0
        %2808 = vmatpush2.msra.mxu0 0.0
        %2809 = vmatprep.subr.mxu0 0.0
        %2810 = vmatpush2.msra.mxu0 0.0
        %2811 = vmatprep.subr.mxu0 0.0
        %2812 = vmatpush2.msra.mxu0 0.0
        %2813 = vmatprep.subr.mxu0 0.0
        %2814 = vmatpush2.msra.mxu0 0.0
        %2815 = vmatprep.subr.mxu0 0.0
        %2816 = vmatpush2.msra.mxu0 0.0
        %2817 = vmatprep.mubr.f32.mxu0 0.0
        %2818 = vmatmul.mubr.f32.gmra.mxu0 %v2745
        %v2819 = vpop.f32.mrf.mxu0
        %v2820 = vadd.f32 0.0, %v2819
        %v2821 = vpop.f32.mrf.mxu0
        %2822 = vmatprep.mubr.f32.mxu0 0.0
        %2823 = vmatmul.mubr.f32.gmra.mxu0 %v2748
        %v2824 = vpop.f32.mrf.mxu0
        %v2825 = vadd.f32 0.0, %v2824
        %v2826 = vpop.f32.mrf.mxu0
        %2827 = vdwg.mxu0
        %2828 = vrot.lane.b32.xlu0 %v2548, 96
        %v2829 = vpop.permute.xlu0 %2828
        %2830 = vrot.lane.b32.xlu0 %v2554, 96
        %v2831 = vpop.permute.xlu0 %2830
        %2832 = vrot.lane.b32.xlu0 %v2550, 96
        %v2833 = vpop.permute.xlu0 %2832
        %2834 = vrot.lane.b32.xlu0 %v2556, 96
        %v2835 = vpop.permute.xlu0 %2834
        %v2836 = vsel %vm849, %v2829, 0
        %v2838 = vsel %vm849, %v2831, 0
        %v2840 = vsel %vm849, %v2833, 0
        %v2842 = vsel %vm849, %v2835, 0
        %2844 = vmatprep.subr.mxu0 0.0
        %2845 = vmatpush1.xpose.msra.mxu0 0.0
        %2846 = vmatprep.subr.mxu0 0.0
        %2847 = vmatpush1.xpose.msra.mxu0 0.0
        %2848 = vmatprep.subr.mxu0 0.0
        %2849 = vmatpush1.xpose.msra.mxu0 0.0
        %2850 = vmatprep.subr.mxu0 0.0
        %2851 = vmatpush1.xpose.msra.mxu0 0.0
        %2852 = vmatprep.subr.mxu0 0.0
        %2853 = vmatpush1.xpose.msra.mxu0 0.0
        %2854 = vmatprep.subr.mxu0 0.0
        %2855 = vmatpush1.xpose.msra.mxu0 0.0
        %2856 = vmatprep.subr.mxu0 0.0
        %2857 = vmatpush1.xpose.msra.mxu0 0.0
        %2858 = vmatprep.subr.mxu0 0.0
        %2859 = vmatpush1.xpose.msra.mxu0 0.0
        %2860 = vmatprep.subr.mxu0 0.0
        %2861 = vmatpush1.xpose.msra.mxu0 0.0
        %2862 = vmatprep.subr.mxu0 0.0
        %2863 = vmatpush1.xpose.msra.mxu0 0.0
        %2864 = vmatprep.subr.mxu0 0.0
        %2865 = vmatpush1.xpose.msra.mxu0 0.0
        %2866 = vmatprep.subr.mxu0 0.0
        %2867 = vmatpush1.xpose.msra.mxu0 0.0
        %2868 = vmatprep.subr.mxu0 0.0
        %2869 = vmatpush1.xpose.msra.mxu0 0.0
        %2870 = vmatprep.subr.mxu0 0.0
        %2871 = vmatpush1.xpose.msra.mxu0 0.0
        %2872 = vmatprep.subr.mxu0 0.0
        %2873 = vmatpush1.xpose.msra.mxu0 %v2842
        %2874 = vmatprep.subr.mxu0 0.0
        %2875 = vmatpush1.xpose.msra.mxu0 %v2840
        %2876 = vmatprep.subr.mxu0 0.0
        %2877 = vmatpush2.xpose.msra.mxu0 0.0
        %2878 = vmatprep.subr.mxu0 0.0
        %2879 = vmatpush2.xpose.msra.mxu0 0.0
        %2880 = vmatprep.subr.mxu0 0.0
        %2881 = vmatpush2.xpose.msra.mxu0 0.0
        %2882 = vmatprep.subr.mxu0 0.0
        %2883 = vmatpush2.xpose.msra.mxu0 0.0
        %2884 = vmatprep.subr.mxu0 0.0
        %2885 = vmatpush2.xpose.msra.mxu0 0.0
        %2886 = vmatprep.subr.mxu0 0.0
        %2887 = vmatpush2.xpose.msra.mxu0 0.0
        %2888 = vmatprep.subr.mxu0 0.0
        %2889 = vmatpush2.xpose.msra.mxu0 0.0
        %2890 = vmatprep.subr.mxu0 0.0
        %2891 = vmatpush2.xpose.msra.mxu0 0.0
        %2892 = vmatprep.subr.mxu0 0.0
        %2893 = vmatpush2.xpose.msra.mxu0 0.0
        %2894 = vmatprep.subr.mxu0 0.0
        %2895 = vmatpush2.xpose.msra.mxu0 0.0
        %2896 = vmatprep.subr.mxu0 0.0
        %2897 = vmatpush2.xpose.msra.mxu0 0.0
        %2898 = vmatprep.subr.mxu0 0.0
        %2899 = vmatpush2.xpose.msra.mxu0 0.0
        %2900 = vmatprep.subr.mxu0 0.0
        %2901 = vmatpush2.xpose.msra.mxu0 0.0
        %2902 = vmatprep.subr.mxu0 0.0
        %2903 = vmatpush2.xpose.msra.mxu0 0.0
        %2904 = vmatprep.subr.mxu0 0.0
        %2905 = vmatpush2.xpose.msra.mxu0 0.0
        %2906 = vmatprep.subr.mxu0 0.0
        %2907 = vmatpush2.xpose.msra.mxu0 0.0
        %2908 = vmatprep.mubr.f32.mxu0 0.0
        %2909 = vmatmul.mubr.f32.gmra.mxu0 %v2836
        %v2910 = vpop.f32.mrf.mxu0
        %v2911 = vadd.f32 0.0, %v2910
        %v2912 = vpop.f32.mrf.mxu0
        %2913 = vmatprep.mubr.f32.mxu0 0.0
        %2914 = vmatmul.mubr.f32.gmra.mxu0 %v2838
        %v2915 = vpop.f32.mrf.mxu0
        %v2916 = vadd.f32 0.0, %v2915
        %v2917 = vpop.f32.mrf.mxu0
        %2918 = vdwg.mxu0
        %v2919 = vmul.f32 %v2911, 0.17677669
        %v2920 = vmul.f32 %v2916, 0.17677669
        %v2921 = vsel %vm939, %v2919, -inf
        %2922 = vmax.xlane.f32.xlu0 %v2921
        %v2923 = vpop.xlane.xlu0 %2922
        %v2924 = vsel %vm943, %v2920, -inf
        %2925 = vmax.xlane.f32.xlu0 %v2924
        %v2926 = vpop.xlane.xlu0 %2925
        %v2927 = vsub.f32 %v2919, %v2923
        %v2928 = vsub.f32 %v2920, %v2926
        %v2929 = vmul.f32 %v2927, 1.442695
        %v2930 = vpow.pop %v2929
        %v2931 = vmul.f32 %v2928, 1.442695
        %v2932 = vpow.pop %v2931
        %v2933 = vsel %vm939, %v2930, 0.0
        %2934 = vadd.xlane.f32.xlu0 %v2933
        %v2935 = vpop.xlane.xlu0 %2934
        %v2936 = vsel %vm943, %v2932, 0.0
        %2937 = vadd.xlane.f32.xlu0 %v2936
        %v2938 = vpop.xlane.xlu0 %2937
        %v2939 = vrcp.pop %v2935
        %v2940 = vrcp.pop %v2938
        %v2941 = vmul.f32 %v2930, %v2939
        %v2942 = vmul.f32 %v2932, %v2940
        %2944 = vrot.lane.b32.xlu0 %v2625, 96
        %v2945 = vpop.permute.xlu0 %2944
        %2946 = vrot.lane.b32.xlu0 %v2630, 96
        %v2947 = vpop.permute.xlu0 %2946
        %v2950 = vsel %vm939, %v2941, 0
        %v2953 = vsel %vm939, %v2942, 0
        %v2955 = vsel %vm592, %v2947, 0
        %2957 = vmatprep.subr.mxu0 0.0
        %2958 = vmatpush1.msra.mxu0 0.0
        %2959 = vmatprep.subr.mxu0 0.0
        %2960 = vmatpush1.msra.mxu0 0.0
        %2961 = vmatprep.subr.mxu0 0.0
        %2962 = vmatpush1.msra.mxu0 0.0
        %2963 = vmatprep.subr.mxu0 0.0
        %2964 = vmatpush1.msra.mxu0 0.0
        %2965 = vmatprep.subr.mxu0 0.0
        %2966 = vmatpush1.msra.mxu0 0.0
        %2967 = vmatprep.subr.mxu0 0.0
        %2968 = vmatpush1.msra.mxu0 0.0
        %2969 = vmatprep.subr.mxu0 0.0
        %2970 = vmatpush1.msra.mxu0 0.0
        %2971 = vmatprep.subr.mxu0 0.0
        %2972 = vmatpush1.msra.mxu0 0.0
        %2973 = vmatprep.subr.mxu0 0.0
        %2974 = vmatpush1.msra.mxu0 0.0
        %2975 = vmatprep.subr.mxu0 0.0
        %2976 = vmatpush1.msra.mxu0 0.0
        %2977 = vmatprep.subr.mxu0 0.0
        %2978 = vmatpush1.msra.mxu0 0.0
        %2979 = vmatprep.subr.mxu0 0.0
        %2980 = vmatpush1.msra.mxu0 0.0
        %2981 = vmatprep.subr.mxu0 0.0
        %2982 = vmatpush1.msra.mxu0 0.0
        %2983 = vmatprep.subr.mxu0 0.0
        %2984 = vmatpush1.msra.mxu0 0.0
        %2985 = vmatprep.subr.mxu0 0.0
        %2986 = vmatpush1.msra.mxu0 %v2955
        %2987 = vmatprep.subr.mxu0 0.0
        %2988 = vmatpush1.msra.mxu0 %v2945
        %2989 = vmatprep.subr.mxu0 0.0
        %2990 = vmatpush2.msra.mxu0 0.0
        %2991 = vmatprep.subr.mxu0 0.0
        %2992 = vmatpush2.msra.mxu0 0.0
        %2993 = vmatprep.subr.mxu0 0.0
        %2994 = vmatpush2.msra.mxu0 0.0
        %2995 = vmatprep.subr.mxu0 0.0
        %2996 = vmatpush2.msra.mxu0 0.0
        %2997 = vmatprep.subr.mxu0 0.0
        %2998 = vmatpush2.msra.mxu0 0.0
        %2999 = vmatprep.subr.mxu0 0.0
        %3000 = vmatpush2.msra.mxu0 0.0
        %3001 = vmatprep.subr.mxu0 0.0
        %3002 = vmatpush2.msra.mxu0 0.0
        %3003 = vmatprep.subr.mxu0 0.0
        %3004 = vmatpush2.msra.mxu0 0.0
        %3005 = vmatprep.subr.mxu0 0.0
        %3006 = vmatpush2.msra.mxu0 0.0
        %3007 = vmatprep.subr.mxu0 0.0
        %3008 = vmatpush2.msra.mxu0 0.0
        %3009 = vmatprep.subr.mxu0 0.0
        %3010 = vmatpush2.msra.mxu0 0.0
        %3011 = vmatprep.subr.mxu0 0.0
        %3012 = vmatpush2.msra.mxu0 0.0
        %3013 = vmatprep.subr.mxu0 0.0
        %3014 = vmatpush2.msra.mxu0 0.0
        %3015 = vmatprep.subr.mxu0 0.0
        %3016 = vmatpush2.msra.mxu0 0.0
        %3017 = vmatprep.subr.mxu0 0.0
        %3018 = vmatpush2.msra.mxu0 0.0
        %3019 = vmatprep.subr.mxu0 0.0
        %3020 = vmatpush2.msra.mxu0 0.0
        %3021 = vmatprep.mubr.f32.mxu0 0.0
        %3022 = vmatmul.mubr.f32.gmra.mxu0 %v2950
        %v3023 = vpop.f32.mrf.mxu0
        %v3024 = vadd.f32 0.0, %v3023
        %v3025 = vpop.f32.mrf.mxu0
        %3026 = vmatprep.mubr.f32.mxu0 0.0
        %3027 = vmatmul.mubr.f32.gmra.mxu0 %v2953
        %v3028 = vpop.f32.mrf.mxu0
        %v3029 = vadd.f32 0.0, %v3028
        %v3030 = vpop.f32.mrf.mxu0
        %3031 = vdwg.mxu0
        %3032 = vrot.lane.b32.xlu0 %v2548, 64
        %v3033 = vpop.permute.xlu0 %3032
        %3034 = vrot.lane.b32.xlu0 %v2554, 64
        %v3035 = vpop.permute.xlu0 %3034
        %3036 = vrot.lane.b32.xlu0 %v2550, 64
        %v3037 = vpop.permute.xlu0 %3036
        %3038 = vrot.lane.b32.xlu0 %v2556, 64
        %v3039 = vpop.permute.xlu0 %3038
        %v3040 = vsel %vm849, %v3033, 0
        %v3042 = vsel %vm849, %v3035, 0
        %v3044 = vsel %vm849, %v3037, 0
        %v3046 = vsel %vm849, %v3039, 0
        %3048 = vmatprep.subr.mxu0 0.0
        %3049 = vmatpush1.xpose.msra.mxu0 0.0
        %3050 = vmatprep.subr.mxu0 0.0
        %3051 = vmatpush1.xpose.msra.mxu0 0.0
        %3052 = vmatprep.subr.mxu0 0.0
        %3053 = vmatpush1.xpose.msra.mxu0 0.0
        %3054 = vmatprep.subr.mxu0 0.0
        %3055 = vmatpush1.xpose.msra.mxu0 0.0
        %3056 = vmatprep.subr.mxu0 0.0
        %3057 = vmatpush1.xpose.msra.mxu0 0.0
        %3058 = vmatprep.subr.mxu0 0.0
        %3059 = vmatpush1.xpose.msra.mxu0 0.0
        %3060 = vmatprep.subr.mxu0 0.0
        %3061 = vmatpush1.xpose.msra.mxu0 0.0
        %3062 = vmatprep.subr.mxu0 0.0
        %3063 = vmatpush1.xpose.msra.mxu0 0.0
        %3064 = vmatprep.subr.mxu0 0.0
        %3065 = vmatpush1.xpose.msra.mxu0 0.0
        %3066 = vmatprep.subr.mxu0 0.0
        %3067 = vmatpush1.xpose.msra.mxu0 0.0
        %3068 = vmatprep.subr.mxu0 0.0
        %3069 = vmatpush1.xpose.msra.mxu0 0.0
        %3070 = vmatprep.subr.mxu0 0.0
        %3071 = vmatpush1.xpose.msra.mxu0 0.0
        %3072 = vmatprep.subr.mxu0 0.0
        %3073 = vmatpush1.xpose.msra.mxu0 0.0
        %3074 = vmatprep.subr.mxu0 0.0
        %3075 = vmatpush1.xpose.msra.mxu0 0.0
        %3076 = vmatprep.subr.mxu0 0.0
        %3077 = vmatpush1.xpose.msra.mxu0 %v3046
        %3078 = vmatprep.subr.mxu0 0.0
        %3079 = vmatpush1.xpose.msra.mxu0 %v3044
        %3080 = vmatprep.subr.mxu0 0.0
        %3081 = vmatpush2.xpose.msra.mxu0 0.0
        %3082 = vmatprep.subr.mxu0 0.0
        %3083 = vmatpush2.xpose.msra.mxu0 0.0
        %3084 = vmatprep.subr.mxu0 0.0
        %3085 = vmatpush2.xpose.msra.mxu0 0.0
        %3086 = vmatprep.subr.mxu0 0.0
        %3087 = vmatpush2.xpose.msra.mxu0 0.0
        %3088 = vmatprep.subr.mxu0 0.0
        %3089 = vmatpush2.xpose.msra.mxu0 0.0
        %3090 = vmatprep.subr.mxu0 0.0
        %3091 = vmatpush2.xpose.msra.mxu0 0.0
        %3092 = vmatprep.subr.mxu0 0.0
        %3093 = vmatpush2.xpose.msra.mxu0 0.0
        %3094 = vmatprep.subr.mxu0 0.0
        %3095 = vmatpush2.xpose.msra.mxu0 0.0
        %3096 = vmatprep.subr.mxu0 0.0
        %3097 = vmatpush2.xpose.msra.mxu0 0.0
        %3098 = vmatprep.subr.mxu0 0.0
        %3099 = vmatpush2.xpose.msra.mxu0 0.0
        %3100 = vmatprep.subr.mxu0 0.0
        %3101 = vmatpush2.xpose.msra.mxu0 0.0
        %3102 = vmatprep.subr.mxu0 0.0
        %3103 = vmatpush2.xpose.msra.mxu0 0.0
        %3104 = vmatprep.subr.mxu0 0.0
        %3105 = vmatpush2.xpose.msra.mxu0 0.0
        %3106 = vmatprep.subr.mxu0 0.0
        %3107 = vmatpush2.xpose.msra.mxu0 0.0
        %3108 = vmatprep.subr.mxu0 0.0
        %3109 = vmatpush2.xpose.msra.mxu0 0.0
        %3110 = vmatprep.subr.mxu0 0.0
        %3111 = vmatpush2.xpose.msra.mxu0 0.0
        %3112 = vmatprep.mubr.f32.mxu0 0.0
        %3113 = vmatmul.mubr.f32.gmra.mxu0 %v3040
        %v3114 = vpop.f32.mrf.mxu0
        %v3115 = vadd.f32 0.0, %v3114
        %v3116 = vpop.f32.mrf.mxu0
        %3117 = vmatprep.mubr.f32.mxu0 0.0
        %3118 = vmatmul.mubr.f32.gmra.mxu0 %v3042
        %v3119 = vpop.f32.mrf.mxu0
        %v3120 = vadd.f32 0.0, %v3119
        %v3121 = vpop.f32.mrf.mxu0
        %3122 = vdwg.mxu0
        %v3123 = vmul.f32 %v3115, 0.17677669
        %v3124 = vmul.f32 %v3120, 0.17677669
        %v3125 = vsel %vm939, %v3123, -inf
        %3126 = vmax.xlane.f32.xlu0 %v3125
        %v3127 = vpop.xlane.xlu0 %3126
        %v3128 = vsel %vm943, %v3124, -inf
        %3129 = vmax.xlane.f32.xlu0 %v3128
        %v3130 = vpop.xlane.xlu0 %3129
        %v3131 = vsub.f32 %v3123, %v3127
        %v3132 = vsub.f32 %v3124, %v3130
        %v3133 = vmul.f32 %v3131, 1.442695
        %v3134 = vpow.pop %v3133
        %v3135 = vmul.f32 %v3132, 1.442695
        %v3136 = vpow.pop %v3135
        %v3137 = vsel %vm939, %v3134, 0.0
        %3138 = vadd.xlane.f32.xlu0 %v3137
        %v3139 = vpop.xlane.xlu0 %3138
        %v3140 = vsel %vm943, %v3136, 0.0
        %3141 = vadd.xlane.f32.xlu0 %v3140
        %v3142 = vpop.xlane.xlu0 %3141
        %v3143 = vrcp.pop %v3139
        %v3144 = vrcp.pop %v3142
        %v3145 = vmul.f32 %v3134, %v3143
        %v3146 = vmul.f32 %v3136, %v3144
        %3147 = vrot.lane.b32.xlu0 %v2625, 64
        %v3148 = vpop.permute.xlu0 %3147
        %3149 = vrot.lane.b32.xlu0 %v2630, 64
        %v3150 = vpop.permute.xlu0 %3149
        %v3153 = vsel %vm939, %v3145, 0
        %v3156 = vsel %vm939, %v3146, 0
        %v3158 = vsel %vm592, %v3150, 0
        %3160 = vmatprep.subr.mxu0 0.0
        %3161 = vmatpush1.msra.mxu0 0.0
        %3162 = vmatprep.subr.mxu0 0.0
        %3163 = vmatpush1.msra.mxu0 0.0
        %3164 = vmatprep.subr.mxu0 0.0
        %3165 = vmatpush1.msra.mxu0 0.0
        %3166 = vmatprep.subr.mxu0 0.0
        %3167 = vmatpush1.msra.mxu0 0.0
        %3168 = vmatprep.subr.mxu0 0.0
        %3169 = vmatpush1.msra.mxu0 0.0
        %3170 = vmatprep.subr.mxu0 0.0
        %3171 = vmatpush1.msra.mxu0 0.0
        %3172 = vmatprep.subr.mxu0 0.0
        %3173 = vmatpush1.msra.mxu0 0.0
        %3174 = vmatprep.subr.mxu0 0.0
        %3175 = vmatpush1.msra.mxu0 0.0
        %3176 = vmatprep.subr.mxu0 0.0
        %3177 = vmatpush1.msra.mxu0 0.0
        %3178 = vmatprep.subr.mxu0 0.0
        %3179 = vmatpush1.msra.mxu0 0.0
        %3180 = vmatprep.subr.mxu0 0.0
        %3181 = vmatpush1.msra.mxu0 0.0
        %3182 = vmatprep.subr.mxu0 0.0
        %3183 = vmatpush1.msra.mxu0 0.0
        %3184 = vmatprep.subr.mxu0 0.0
        %3185 = vmatpush1.msra.mxu0 0.0
        %3186 = vmatprep.subr.mxu0 0.0
        %3187 = vmatpush1.msra.mxu0 0.0
        %3188 = vmatprep.subr.mxu0 0.0
        %3189 = vmatpush1.msra.mxu0 %v3158
        %3190 = vmatprep.subr.mxu0 0.0
        %3191 = vmatpush1.msra.mxu0 %v3148
        %3192 = vmatprep.subr.mxu0 0.0
        %3193 = vmatpush2.msra.mxu0 0.0
        %3194 = vmatprep.subr.mxu0 0.0
        %3195 = vmatpush2.msra.mxu0 0.0
        %3196 = vmatprep.subr.mxu0 0.0
        %3197 = vmatpush2.msra.mxu0 0.0
        %3198 = vmatprep.subr.mxu0 0.0
        %3199 = vmatpush2.msra.mxu0 0.0
        %3200 = vmatprep.subr.mxu0 0.0
        %3201 = vmatpush2.msra.mxu0 0.0
        %3202 = vmatprep.subr.mxu0 0.0
        %3203 = vmatpush2.msra.mxu0 0.0
        %3204 = vmatprep.subr.mxu0 0.0
        %3205 = vmatpush2.msra.mxu0 0.0
        %3206 = vmatprep.subr.mxu0 0.0
        %3207 = vmatpush2.msra.mxu0 0.0
        %3208 = vmatprep.subr.mxu0 0.0
        %3209 = vmatpush2.msra.mxu0 0.0
        %3210 = vmatprep.subr.mxu0 0.0
        %3211 = vmatpush2.msra.mxu0 0.0
        %3212 = vmatprep.subr.mxu0 0.0
        %3213 = vmatpush2.msra.mxu0 0.0
        %3214 = vmatprep.subr.mxu0 0.0
        %3215 = vmatpush2.msra.mxu0 0.0
        %3216 = vmatprep.subr.mxu0 0.0
        %3217 = vmatpush2.msra.mxu0 0.0
        %3218 = vmatprep.subr.mxu0 0.0
        %3219 = vmatpush2.msra.mxu0 0.0
        %3220 = vmatprep.subr.mxu0 0.0
        %3221 = vmatpush2.msra.mxu0 0.0
        %3222 = vmatprep.subr.mxu0 0.0
        %3223 = vmatpush2.msra.mxu0 0.0
        %3224 = vmatprep.mubr.f32.mxu0 0.0
        %3225 = vmatmul.mubr.f32.gmra.mxu0 %v3153
        %v3226 = vpop.f32.mrf.mxu0
        %v3227 = vadd.f32 0.0, %v3226
        %v3228 = vpop.f32.mrf.mxu0
        %3229 = vmatprep.mubr.f32.mxu0 0.0
        %3230 = vmatmul.mubr.f32.gmra.mxu0 %v3156
        %v3231 = vpop.f32.mrf.mxu0
        %v3232 = vadd.f32 0.0, %v3231
        %v3233 = vpop.f32.mrf.mxu0
        %3234 = vdwg.mxu0
        %3235 = vrot.lane.b32.xlu0 %v2548, 32
        %v3236 = vpop.permute.xlu0 %3235
        %3237 = vrot.lane.b32.xlu0 %v2554, 32
        %v3238 = vpop.permute.xlu0 %3237
        %3239 = vrot.lane.b32.xlu0 %v2550, 32
        %v3240 = vpop.permute.xlu0 %3239
        %3241 = vrot.lane.b32.xlu0 %v2556, 32
        %v3242 = vpop.permute.xlu0 %3241
        %v3243 = vsel %vm849, %v3236, 0
        %v3245 = vsel %vm849, %v3238, 0
        %v3247 = vsel %vm849, %v3240, 0
        %v3249 = vsel %vm849, %v3242, 0
        %3251 = vmatprep.subr.mxu0 0.0
        %3252 = vmatpush1.xpose.msra.mxu0 0.0
        %3253 = vmatprep.subr.mxu0 0.0
        %3254 = vmatpush1.xpose.msra.mxu0 0.0
        %3255 = vmatprep.subr.mxu0 0.0
        %3256 = vmatpush1.xpose.msra.mxu0 0.0
        %3257 = vmatprep.subr.mxu0 0.0
        %3258 = vmatpush1.xpose.msra.mxu0 0.0
        %3259 = vmatprep.subr.mxu0 0.0
        %3260 = vmatpush1.xpose.msra.mxu0 0.0
        %3261 = vmatprep.subr.mxu0 0.0
        %3262 = vmatpush1.xpose.msra.mxu0 0.0
        %3263 = vmatprep.subr.mxu0 0.0
        %3264 = vmatpush1.xpose.msra.mxu0 0.0
        %3265 = vmatprep.subr.mxu0 0.0
        %3266 = vmatpush1.xpose.msra.mxu0 0.0
        %3267 = vmatprep.subr.mxu0 0.0
        %3268 = vmatpush1.xpose.msra.mxu0 0.0
        %3269 = vmatprep.subr.mxu0 0.0
        %3270 = vmatpush1.xpose.msra.mxu0 0.0
        %3271 = vmatprep.subr.mxu0 0.0
        %3272 = vmatpush1.xpose.msra.mxu0 0.0
        %3273 = vmatprep.subr.mxu0 0.0
        %3274 = vmatpush1.xpose.msra.mxu0 0.0
        %3275 = vmatprep.subr.mxu0 0.0
        %3276 = vmatpush1.xpose.msra.mxu0 0.0
        %3277 = vmatprep.subr.mxu0 0.0
        %3278 = vmatpush1.xpose.msra.mxu0 0.0
        %3279 = vmatprep.subr.mxu0 0.0
        %3280 = vmatpush1.xpose.msra.mxu0 %v3249
        %3281 = vmatprep.subr.mxu0 0.0
        %3282 = vmatpush1.xpose.msra.mxu0 %v3247
        %3283 = vmatprep.subr.mxu0 0.0
        %3284 = vmatpush2.xpose.msra.mxu0 0.0
        %3285 = vmatprep.subr.mxu0 0.0
        %3286 = vmatpush2.xpose.msra.mxu0 0.0
        %3287 = vmatprep.subr.mxu0 0.0
        %3288 = vmatpush2.xpose.msra.mxu0 0.0
        %3289 = vmatprep.subr.mxu0 0.0
        %3290 = vmatpush2.xpose.msra.mxu0 0.0
        %3291 = vmatprep.subr.mxu0 0.0
        %3292 = vmatpush2.xpose.msra.mxu0 0.0
        %3293 = vmatprep.subr.mxu0 0.0
        %3294 = vmatpush2.xpose.msra.mxu0 0.0
        %3295 = vmatprep.subr.mxu0 0.0
        %3296 = vmatpush2.xpose.msra.mxu0 0.0
        %3297 = vmatprep.subr.mxu0 0.0
        %3298 = vmatpush2.xpose.msra.mxu0 0.0
        %3299 = vmatprep.subr.mxu0 0.0
        %3300 = vmatpush2.xpose.msra.mxu0 0.0
        %3301 = vmatprep.subr.mxu0 0.0
        %3302 = vmatpush2.xpose.msra.mxu0 0.0
        %3303 = vmatprep.subr.mxu0 0.0
        %3304 = vmatpush2.xpose.msra.mxu0 0.0
        %3305 = vmatprep.subr.mxu0 0.0
        %3306 = vmatpush2.xpose.msra.mxu0 0.0
        %3307 = vmatprep.subr.mxu0 0.0
        %3308 = vmatpush2.xpose.msra.mxu0 0.0
        %3309 = vmatprep.subr.mxu0 0.0
        %3310 = vmatpush2.xpose.msra.mxu0 0.0
        %3311 = vmatprep.subr.mxu0 0.0
        %3312 = vmatpush2.xpose.msra.mxu0 0.0
        %3313 = vmatprep.subr.mxu0 0.0
        %3314 = vmatpush2.xpose.msra.mxu0 0.0
        %3315 = vmatprep.mubr.f32.mxu0 0.0
        %3316 = vmatmul.mubr.f32.gmra.mxu0 %v3243
        %v3317 = vpop.f32.mrf.mxu0
        %v3318 = vadd.f32 0.0, %v3317
        %v3319 = vpop.f32.mrf.mxu0
        %3320 = vmatprep.mubr.f32.mxu0 0.0
        %3321 = vmatmul.mubr.f32.gmra.mxu0 %v3245
        %v3322 = vpop.f32.mrf.mxu0
        %v3323 = vadd.f32 0.0, %v3322
        %v3324 = vpop.f32.mrf.mxu0
        %3325 = vdwg.mxu0
        %v3326 = vmul.f32 %v3318, 0.17677669
        %v3327 = vmul.f32 %v3323, 0.17677669
        %v3328 = vsel %vm939, %v3326, -inf
        %3329 = vmax.xlane.f32.xlu0 %v3328
        %v3330 = vpop.xlane.xlu0 %3329
        %v3331 = vsel %vm943, %v3327, -inf
        %3332 = vmax.xlane.f32.xlu0 %v3331
        %v3333 = vpop.xlane.xlu0 %3332
        %v3334 = vsub.f32 %v3326, %v3330
        %v3335 = vsub.f32 %v3327, %v3333
        %v3336 = vmul.f32 %v3334, 1.442695
        %v3337 = vpow.pop %v3336
        %v3338 = vmul.f32 %v3335, 1.442695
        %v3339 = vpow.pop %v3338
        %v3340 = vsel %vm939, %v3337, 0.0
        %3341 = vadd.xlane.f32.xlu0 %v3340
        %v3342 = vpop.xlane.xlu0 %3341
        %v3343 = vsel %vm943, %v3339, 0.0
        %3344 = vadd.xlane.f32.xlu0 %v3343
        %v3345 = vpop.xlane.xlu0 %3344
        %v3346 = vrcp.pop %v3342
        %v3347 = vrcp.pop %v3345
        %v3348 = vmul.f32 %v3337, %v3346
        %v3349 = vmul.f32 %v3339, %v3347
        %3350 = vrot.lane.b32.xlu0 %v2625, 32
        %v3351 = vpop.permute.xlu0 %3350
        %3352 = vrot.lane.b32.xlu0 %v2630, 32
        %v3353 = vpop.permute.xlu0 %3352
        %v3356 = vsel %vm939, %v3348, 0
        %v3359 = vsel %vm939, %v3349, 0
        %v3361 = vsel %vm592, %v3353, 0
        %3363 = vmatprep.subr.mxu0 0.0
        %3364 = vmatpush1.msra.mxu0 0.0
        %3365 = vmatprep.subr.mxu0 0.0
        %3366 = vmatpush1.msra.mxu0 0.0
        %3367 = vmatprep.subr.mxu0 0.0
        %3368 = vmatpush1.msra.mxu0 0.0
        %3369 = vmatprep.subr.mxu0 0.0
        %3370 = vmatpush1.msra.mxu0 0.0
        %3371 = vmatprep.subr.mxu0 0.0
        %3372 = vmatpush1.msra.mxu0 0.0
        %3373 = vmatprep.subr.mxu0 0.0
        %3374 = vmatpush1.msra.mxu0 0.0
        %3375 = vmatprep.subr.mxu0 0.0
        %3376 = vmatpush1.msra.mxu0 0.0
        %3377 = vmatprep.subr.mxu0 0.0
        %3378 = vmatpush1.msra.mxu0 0.0
        %3379 = vmatprep.subr.mxu0 0.0
        %3380 = vmatpush1.msra.mxu0 0.0
        %3381 = vmatprep.subr.mxu0 0.0
        %3382 = vmatpush1.msra.mxu0 0.0
        %3383 = vmatprep.subr.mxu0 0.0
        %3384 = vmatpush1.msra.mxu0 0.0
        %3385 = vmatprep.subr.mxu0 0.0
        %3386 = vmatpush1.msra.mxu0 0.0
        %3387 = vmatprep.subr.mxu0 0.0
        %3388 = vmatpush1.msra.mxu0 0.0
        %3389 = vmatprep.subr.mxu0 0.0
        %3390 = vmatpush1.msra.mxu0 0.0
        %3391 = vmatprep.subr.mxu0 0.0
        %3392 = vmatpush1.msra.mxu0 %v3361
        %3393 = vmatprep.subr.mxu0 0.0
        %3394 = vmatpush1.msra.mxu0 %v3351
        %3395 = vmatprep.subr.mxu0 0.0
        %3396 = vmatpush2.msra.mxu0 0.0
        %3397 = vmatprep.subr.mxu0 0.0
        %3398 = vmatpush2.msra.mxu0 0.0
        %3399 = vmatprep.subr.mxu0 0.0
        %3400 = vmatpush2.msra.mxu0 0.0
        %3401 = vmatprep.subr.mxu0 0.0
        %3402 = vmatpush2.msra.mxu0 0.0
        %3403 = vmatprep.subr.mxu0 0.0
        %3404 = vmatpush2.msra.mxu0 0.0
        %3405 = vmatprep.subr.mxu0 0.0
        %3406 = vmatpush2.msra.mxu0 0.0
        %3407 = vmatprep.subr.mxu0 0.0
        %3408 = vmatpush2.msra.mxu0 0.0
        %3409 = vmatprep.subr.mxu0 0.0
        %3410 = vmatpush2.msra.mxu0 0.0
        %3411 = vmatprep.subr.mxu0 0.0
        %3412 = vmatpush2.msra.mxu0 0.0
        %3413 = vmatprep.subr.mxu0 0.0
        %3414 = vmatpush2.msra.mxu0 0.0
        %3415 = vmatprep.subr.mxu0 0.0
        %3416 = vmatpush2.msra.mxu0 0.0
        %3417 = vmatprep.subr.mxu0 0.0
        %3418 = vmatpush2.msra.mxu0 0.0
        %3419 = vmatprep.subr.mxu0 0.0
        %3420 = vmatpush2.msra.mxu0 0.0
        %3421 = vmatprep.subr.mxu0 0.0
        %3422 = vmatpush2.msra.mxu0 0.0
        %3423 = vmatprep.subr.mxu0 0.0
        %3424 = vmatpush2.msra.mxu0 0.0
        %3425 = vmatprep.subr.mxu0 0.0
        %3426 = vmatpush2.msra.mxu0 0.0
        %3427 = vmatprep.mubr.f32.mxu0 0.0
        %3428 = vmatmul.mubr.f32.gmra.mxu0 %v3356
        %v3429 = vpop.f32.mrf.mxu0
        %v3430 = vadd.f32 0.0, %v3429
        %v3431 = vpop.f32.mrf.mxu0
        %3432 = vmatprep.mubr.f32.mxu0 0.0
        %3433 = vmatmul.mubr.f32.gmra.mxu0 %v3359
        %v3434 = vpop.f32.mrf.mxu0
        %v3435 = vadd.f32 0.0, %v3434
        %v3436 = vpop.f32.mrf.mxu0
        %3437 = vdwg.mxu0
        %3440 = vrot.lane.b32.xlu0 %v3024, 32
        %v3441 = vpop.permute.xlu0 %3440
        %3442 = vrot.lane.b32.xlu0 %v3029, 32
        %v3443 = vpop.permute.xlu0 %3442
        %3448 = vrot.lane.b32.xlu0 %v3227, 64
        %v3449 = vpop.permute.xlu0 %3448
        %3450 = vrot.lane.b32.xlu0 %v3232, 64
        %v3451 = vpop.permute.xlu0 %3450
        %3456 = vrot.lane.b32.xlu0 %v3430, 96
        %v3457 = vpop.permute.xlu0 %3456
        %3458 = vrot.lane.b32.xlu0 %v3435, 96
        %v3459 = vpop.permute.xlu0 %3458
        %v3462 = vsel %vm849, %v2820, %v3441
        %v3463 = vsel %vm849, %v2825, %v3443
        %v3464 = vsel %vm1683, %v3462, %v3449
        %v3465 = vsel %vm1683, %v3463, %v3451
        %v3466 = vsel %vm1686, %v3464, %v3457
        %v3467 = vsel %vm1686, %v3465, %v3459
        %s3468 = scalar_lea.vmem %s5, 128
        %v3469 = vld [vmem:[%s3468] sm:$0xff]
        %v3470 = vld [vmem:[%s3468 + $0x8] sm:$0xff]
        %v3471 = vld [vmem:[%s3468 + $0x10] sm:$0xff]
        %v3472 = vld [vmem:[%s3468 + $0x18] sm:$0xff]
        %v3473 = vld [vmem:[%s3468 + $0x20] sm:$0xff]
        %v3474 = vld [vmem:[%s3468 + $0x28] sm:$0xff]
        %v3475 = vld [vmem:[%s3468 + $0x30] sm:$0xff]
        %v3476 = vld [vmem:[%s3468 + $0x38] sm:$0xff]
        %v3477 = vld [vmem:[%s3468 + $0x40] sm:$0xff]
        %v3478 = vld [vmem:[%s3468 + $0x48] sm:$0xff]
        %v3479 = vld [vmem:[%s3468 + $0x50] sm:$0xff]
        %v3480 = vld [vmem:[%s3468 + $0x58] sm:$0xff]
        %v3481 = vld [vmem:[%s3468 + $0x60] sm:$0xff]
        %v3482 = vld [vmem:[%s3468 + $0x68] sm:$0xff]
        %v3483 = vld [vmem:[%s3468 + $0x70] sm:$0xff]
        %v3484 = vld [vmem:[%s3468 + $0x78] sm:$0xff]
        %3485 = vmatprep.subr.mxu0 0.0
        %3486 = vmatpush1.msra.mxu0 %v3484
        %3487 = vmatprep.subr.mxu0 0.0
        %3488 = vmatpush1.msra.mxu0 %v3483
        %3489 = vmatprep.subr.mxu0 0.0
        %3490 = vmatpush1.msra.mxu0 %v3482
        %3491 = vmatprep.subr.mxu0 0.0
        %3492 = vmatpush1.msra.mxu0 %v3481
        %3493 = vmatprep.subr.mxu0 0.0
        %3494 = vmatpush1.msra.mxu0 %v3480
        %3495 = vmatprep.subr.mxu0 0.0
        %3496 = vmatpush1.msra.mxu0 %v3479
        %3497 = vmatprep.subr.mxu0 0.0
        %3498 = vmatpush1.msra.mxu0 %v3478
        %3499 = vmatprep.subr.mxu0 0.0
        %3500 = vmatpush1.msra.mxu0 %v3477
        %3501 = vmatprep.subr.mxu0 0.0
        %3502 = vmatpush1.msra.mxu0 %v3476
        %3503 = vmatprep.subr.mxu0 0.0
        %3504 = vmatpush1.msra.mxu0 %v3475
        %3505 = vmatprep.subr.mxu0 0.0
        %3506 = vmatpush1.msra.mxu0 %v3474
        %3507 = vmatprep.subr.mxu0 0.0
        %3508 = vmatpush1.msra.mxu0 %v3473
        %3509 = vmatprep.subr.mxu0 0.0
        %3510 = vmatpush1.msra.mxu0 %v3472
        %3511 = vmatprep.subr.mxu0 0.0
        %3512 = vmatpush1.msra.mxu0 %v3471
        %3513 = vmatprep.subr.mxu0 0.0
        %3514 = vmatpush1.msra.mxu0 %v3470
        %3515 = vmatprep.subr.mxu0 0.0
        %3516 = vmatpush1.msra.mxu0 %v3469
        %3517 = vmatprep.subr.mxu0 0.0
        %3518 = vmatpush2.msra.mxu0 0.0
        %3519 = vmatprep.subr.mxu0 0.0
        %3520 = vmatpush2.msra.mxu0 0.0
        %3521 = vmatprep.subr.mxu0 0.0
        %3522 = vmatpush2.msra.mxu0 0.0
        %3523 = vmatprep.subr.mxu0 0.0
        %3524 = vmatpush2.msra.mxu0 0.0
        %3525 = vmatprep.subr.mxu0 0.0
        %3526 = vmatpush2.msra.mxu0 0.0
        %3527 = vmatprep.subr.mxu0 0.0
        %3528 = vmatpush2.msra.mxu0 0.0
        %3529 = vmatprep.subr.mxu0 0.0
        %3530 = vmatpush2.msra.mxu0 0.0
        %3531 = vmatprep.subr.mxu0 0.0
        %3532 = vmatpush2.msra.mxu0 0.0
        %3533 = vmatprep.subr.mxu0 0.0
        %3534 = vmatpush2.msra.mxu0 0.0
        %3535 = vmatprep.subr.mxu0 0.0
        %3536 = vmatpush2.msra.mxu0 0.0
        %3537 = vmatprep.subr.mxu0 0.0
        %3538 = vmatpush2.msra.mxu0 0.0
        %3539 = vmatprep.subr.mxu0 0.0
        %3540 = vmatpush2.msra.mxu0 0.0
        %3541 = vmatprep.subr.mxu0 0.0
        %3542 = vmatpush2.msra.mxu0 0.0
        %3543 = vmatprep.subr.mxu0 0.0
        %3544 = vmatpush2.msra.mxu0 0.0
        %3545 = vmatprep.subr.mxu0 0.0
        %3546 = vmatpush2.msra.mxu0 0.0
        %3547 = vmatprep.subr.mxu0 0.0
        %3548 = vmatpush2.msra.mxu0 0.0
        %3549 = vmatprep.mubr.f32.mxu0 0.0
        %3550 = vmatmul.mubr.f32.gmra.mxu0 %v3466
        %v3551 = vpop.f32.mrf.mxu0
        %v3552 = vadd.f32 0.0, %v3551
        %v3553 = vpop.f32.mrf.mxu0
        %3554 = vmatprep.mubr.f32.mxu0 0.0
        %3555 = vmatmul.mubr.f32.gmra.mxu0 %v3467
        %v3556 = vpop.f32.mrf.mxu0
        %v3557 = vadd.f32 0.0, %v3556
        %v3558 = vpop.f32.mrf.mxu0
        %3559 = vdwg.mxu0
        %v3560 = vadd.f32 %v2368, %v3552
        %v3561 = vadd.f32 %v2369, %v3557
        %s3562 = scalar_lea.vmem %s6, 1
        %v3563 = vld [vmem:[%s3562] sm:$0x1]
        %v3565 = vlaneseq
        %v3566 = vshrl.u32 %v3565, 7
        %v3567 = vsub.s32 0, %v3566
        %v3568 = vrot.slane %v3563, %v3567
        %v3570 = vadd.f32 %v3560, %v3568
        %v3571 = vadd.f32 %v3561, %v3568
        %s3572 = scalar_lea.vmem [#allocation4], 1
        %v3573 = vld [vmem:[%s3572] sm:$0x1]
        %s3574 = scalar_lea.vmem [#allocation6], 1
        %v3575 = vld [vmem:[%s3574] sm:$0x1]
        %3576 = vadd.xlane.f32.xlu0 %v3570
        %v3577 = vpop.xlane.xlu0 %3576
        %v3578 = vsel %vm592, %v3571, 0.0
        %3579 = vadd.xlane.f32.xlu0 %v3578
        %v3580 = vpop.xlane.xlu0 %3579
        %v3581 = vmul.f32 %v3577, %v596
        %v3582 = vmul.f32 %v3580, %v596
        %v3583 = vsub.f32 %v3570, %v3581
        %v3584 = vsub.f32 %v3571, %v3582
        %v3585 = vmul.f32 %v3583, %v3583
        %v3586 = vmul.f32 %v3584, %v3584
        %3587 = vadd.xlane.f32.xlu0 %v3585
        %v3588 = vpop.xlane.xlu0 %3587
        %v3589 = vsel %vm592, %v3586, 0.0
        %3590 = vadd.xlane.f32.xlu0 %v3589
        %v3591 = vpop.xlane.xlu0 %3590
        %v3592 = vmul.f32 %v3588, %v596
        %v3593 = vmul.f32 %v3591, %v596
        %v3594 = vadd.f32 %v3592, 1e-06
        %v3595 = vadd.f32 %v3593, 1e-06
        %v3596 = vrsqrt.pop %v3594
        %v3597 = vrsqrt.pop %v3595
        %v3598 = vmul.f32 %v3583, %v3596
        %v3599 = vmul.f32 %v3584, %v3597
        %v3601 = vlaneseq
        %v3602 = vshrl.u32 %v3601, 7
        %v3603 = vsub.s32 0, %v3602
        %v3604 = vrot.slane %v3573, %v3603
        %v3606 = vmul.f32 %v3598, %v3604
        %v3607 = vmul.f32 %v3599, %v3604
        %v3609 = vlaneseq
        %v3610 = vshrl.u32 %v3609, 7
        %v3611 = vsub.s32 0, %v3610
        %v3612 = vrot.slane %v3575, %v3611
        %v3614 = vadd.f32 %v3606, %v3612
        %v3615 = vadd.f32 %v3607, %v3612
        %s3616 = scalar_lea.vmem %s9, 512
        %v3617 = vld [vmem:[%s3616] sm:$0xff]
        %v3618 = vld [vmem:[%s3616 + $0x8] sm:$0xff]
        %v3619 = vld [vmem:[%s3616 + $0x10] sm:$0xff]
        %v3620 = vld [vmem:[%s3616 + $0x18] sm:$0xff]
        %v3621 = vld [vmem:[%s3616 + $0x20] sm:$0xff]
        %v3622 = vld [vmem:[%s3616 + $0x28] sm:$0xff]
        %v3623 = vld [vmem:[%s3616 + $0x30] sm:$0xff]
        %v3624 = vld [vmem:[%s3616 + $0x38] sm:$0xff]
        %v3625 = vld [vmem:[%s3616 + $0x40] sm:$0xff]
        %v3626 = vld [vmem:[%s3616 + $0x48] sm:$0xff]
        %v3627 = vld [vmem:[%s3616 + $0x50] sm:$0xff]
        %v3628 = vld [vmem:[%s3616 + $0x58] sm:$0xff]
        %v3629 = vld [vmem:[%s3616 + $0x60] sm:$0xff]
        %v3630 = vld [vmem:[%s3616 + $0x68] sm:$0xff]
        %v3631 = vld [vmem:[%s3616 + $0x70] sm:$0xff]
        %v3632 = vld [vmem:[%s3616 + $0x78] sm:$0xff]
        %v3633 = vld [vmem:[%s3616 + $0x80] sm:$0xff]
        %v3634 = vld [vmem:[%s3616 + $0x88] sm:$0xff]
        %v3635 = vld [vmem:[%s3616 + $0x90] sm:$0xff]
        %v3636 = vld [vmem:[%s3616 + $0x98] sm:$0xff]
        %v3637 = vld [vmem:[%s3616 + $0xa0] sm:$0xff]
        %v3638 = vld [vmem:[%s3616 + $0xa8] sm:$0xff]
        %v3639 = vld [vmem:[%s3616 + $0xb0] sm:$0xff]
        %v3640 = vld [vmem:[%s3616 + $0xb8] sm:$0xff]
        %v3641 = vld [vmem:[%s3616 + $0xc0] sm:$0xff]
        %v3642 = vld [vmem:[%s3616 + $0xc8] sm:$0xff]
        %v3643 = vld [vmem:[%s3616 + $0xd0] sm:$0xff]
        %v3644 = vld [vmem:[%s3616 + $0xd8] sm:$0xff]
        %v3645 = vld [vmem:[%s3616 + $0xe0] sm:$0xff]
        %v3646 = vld [vmem:[%s3616 + $0xe8] sm:$0xff]
        %v3647 = vld [vmem:[%s3616 + $0xf0] sm:$0xff]
        %v3648 = vld [vmem:[%s3616 + $0xf8] sm:$0xff]
        %v3649 = vld [vmem:[%s3616 + $0x100] sm:$0xff]
        %v3650 = vld [vmem:[%s3616 + $0x108] sm:$0xff]
        %v3651 = vld [vmem:[%s3616 + $0x110] sm:$0xff]
        %v3652 = vld [vmem:[%s3616 + $0x118] sm:$0xff]
        %v3653 = vld [vmem:[%s3616 + $0x120] sm:$0xff]
        %v3654 = vld [vmem:[%s3616 + $0x128] sm:$0xff]
        %v3655 = vld [vmem:[%s3616 + $0x130] sm:$0xff]
        %v3656 = vld [vmem:[%s3616 + $0x138] sm:$0xff]
        %v3657 = vld [vmem:[%s3616 + $0x140] sm:$0xff]
        %v3658 = vld [vmem:[%s3616 + $0x148] sm:$0xff]
        %v3659 = vld [vmem:[%s3616 + $0x150] sm:$0xff]
        %v3660 = vld [vmem:[%s3616 + $0x158] sm:$0xff]
        %v3661 = vld [vmem:[%s3616 + $0x160] sm:$0xff]
        %v3662 = vld [vmem:[%s3616 + $0x168] sm:$0xff]
        %v3663 = vld [vmem:[%s3616 + $0x170] sm:$0xff]
        %v3664 = vld [vmem:[%s3616 + $0x178] sm:$0xff]
        %v3665 = vld [vmem:[%s3616 + $0x180] sm:$0xff]
        %v3666 = vld [vmem:[%s3616 + $0x188] sm:$0xff]
        %v3667 = vld [vmem:[%s3616 + $0x190] sm:$0xff]
        %v3668 = vld [vmem:[%s3616 + $0x198] sm:$0xff]
        %v3669 = vld [vmem:[%s3616 + $0x1a0] sm:$0xff]
        %v3670 = vld [vmem:[%s3616 + $0x1a8] sm:$0xff]
        %v3671 = vld [vmem:[%s3616 + $0x1b0] sm:$0xff]
        %v3672 = vld [vmem:[%s3616 + $0x1b8] sm:$0xff]
        %v3673 = vld [vmem:[%s3616 + $0x1c0] sm:$0xff]
        %v3674 = vld [vmem:[%s3616 + $0x1c8] sm:$0xff]
        %v3675 = vld [vmem:[%s3616 + $0x1d0] sm:$0xff]
        %v3676 = vld [vmem:[%s3616 + $0x1d8] sm:$0xff]
        %v3677 = vld [vmem:[%s3616 + $0x1e0] sm:$0xff]
        %v3678 = vld [vmem:[%s3616 + $0x1e8] sm:$0xff]
        %v3679 = vld [vmem:[%s3616 + $0x1f0] sm:$0xff]
        %v3680 = vld [vmem:[%s3616 + $0x1f8] sm:$0xff]
        %s3681 = scalar_lea.vmem %s10, 4
        %v3682 = vld [vmem:[%s3681] sm:$0xf]
        %v3684 = vlaneseq
        %v3685 = vshrl.u32 %v3684, 7
        %v3686 = vsub.s32 0, %v3685
        %v3687 = vrot.slane %v3682, %v3686
        %v3688 = vlaneseq
        %v3689 = vshrl.u32 %v3688, 7
        %v3690 = vsub.s32 1, %v3689
        %v3691 = vrot.slane %v3682, %v3690
        %v3692 = vlaneseq
        %v3693 = vshrl.u32 %v3692, 7
        %v3694 = vsub.s32 2, %v3693
        %v3695 = vrot.slane %v3682, %v3694
        %v3696 = vlaneseq
        %v3697 = vshrl.u32 %v3696, 7
        %v3698 = vsub.s32 3, %v3697
        %v3699 = vrot.slane %v3682, %v3698
        %3704 = vmatprep.subr.mxu0 %v3678
        %3705 = vmatpush1.msra.mxu0 %v3677
        %3706 = vmatprep.subr.mxu0 %v3674
        %3707 = vmatpush1.msra.mxu0 %v3673
        %3708 = vmatprep.subr.mxu0 %v3670
        %3709 = vmatpush1.msra.mxu0 %v3669
        %3710 = vmatprep.subr.mxu0 %v3666
        %3711 = vmatpush1.msra.mxu0 %v3665
        %3712 = vmatprep.subr.mxu0 %v3662
        %3713 = vmatpush1.msra.mxu0 %v3661
        %3714 = vmatprep.subr.mxu0 %v3658
        %3715 = vmatpush1.msra.mxu0 %v3657
        %3716 = vmatprep.subr.mxu0 %v3654
        %3717 = vmatpush1.msra.mxu0 %v3653
        %3718 = vmatprep.subr.mxu0 %v3650
        %3719 = vmatpush1.msra.mxu0 %v3649
        %3720 = vmatprep.subr.mxu0 %v3646
        %3721 = vmatpush1.msra.mxu0 %v3645
        %3722 = vmatprep.subr.mxu0 %v3642
        %3723 = vmatpush1.msra.mxu0 %v3641
        %3724 = vmatprep.subr.mxu0 %v3638
        %3725 = vmatpush1.msra.mxu0 %v3637
        %3726 = vmatprep.subr.mxu0 %v3634
        %3727 = vmatpush1.msra.mxu0 %v3633
        %3728 = vmatprep.subr.mxu0 %v3630
        %3729 = vmatpush1.msra.mxu0 %v3629
        %3730 = vmatprep.subr.mxu0 %v3626
        %3731 = vmatpush1.msra.mxu0 %v3625
        %3732 = vmatprep.subr.mxu0 %v3622
        %3733 = vmatpush1.msra.mxu0 %v3621
        %3734 = vmatprep.subr.mxu0 %v3618
        %3735 = vmatpush1.msra.mxu0 %v3617
        %3736 = vmatprep.subr.mxu0 0.0
        %3737 = vmatpush2.msra.mxu0 0.0
        %3738 = vmatprep.subr.mxu0 0.0
        %3739 = vmatpush2.msra.mxu0 0.0
        %3740 = vmatprep.subr.mxu0 0.0
        %3741 = vmatpush2.msra.mxu0 0.0
        %3742 = vmatprep.subr.mxu0 0.0
        %3743 = vmatpush2.msra.mxu0 0.0
        %3744 = vmatprep.subr.mxu0 0.0
        %3745 = vmatpush2.msra.mxu0 0.0
        %3746 = vmatprep.subr.mxu0 0.0
        %3747 = vmatpush2.msra.mxu0 0.0
        %3748 = vmatprep.subr.mxu0 0.0
        %3749 = vmatpush2.msra.mxu0 0.0
        %3750 = vmatprep.subr.mxu0 0.0
        %3751 = vmatpush2.msra.mxu0 0.0
        %3752 = vmatprep.subr.mxu0 0.0
        %3753 = vmatpush2.msra.mxu0 0.0
        %3754 = vmatprep.subr.mxu0 0.0
        %3755 = vmatpush2.msra.mxu0 0.0
        %3756 = vmatprep.subr.mxu0 0.0
        %3757 = vmatpush2.msra.mxu0 0.0
        %3758 = vmatprep.subr.mxu0 0.0
        %3759 = vmatpush2.msra.mxu0 0.0
        %3760 = vmatprep.subr.mxu0 0.0
        %3761 = vmatpush2.msra.mxu0 0.0
        %3762 = vmatprep.subr.mxu0 0.0
        %3763 = vmatpush2.msra.mxu0 0.0
        %3764 = vmatprep.subr.mxu0 0.0
        %3765 = vmatpush2.msra.mxu0 0.0
        %3766 = vmatprep.subr.mxu0 0.0
        %3767 = vmatpush2.msra.mxu0 0.0
        %3768 = vmatprep.mubr.f32.mxu0 0.0
        %3769 = vmatmul.mubr.f32.gmra.mxu0 %v3614
        %v3770 = vpop.f32.mrf.mxu0
        %v3771 = vadd.f32 %v3687, %v3770
        %v3772 = vpop.f32.mrf.mxu0
        %v3773 = vadd.f32 %v3691, %v3772
        %3774 = vmatprep.mubr.f32.mxu0 0.0
        %3775 = vmatmul.mubr.f32.gmra.mxu0 %v3615
        %v3776 = vpop.f32.mrf.mxu0
        %v3777 = vadd.f32 %v3687, %v3776
        %v3778 = vpop.f32.mrf.mxu0
        %v3779 = vadd.f32 %v3691, %v3778
        %3780 = vdwg.mxu0
        %3781 = vmatprep.subr.mxu0 %v3680
        %3782 = vmatpush1.msra.mxu0 %v3679
        %3783 = vmatprep.subr.mxu0 %v3676
        %3784 = vmatpush1.msra.mxu0 %v3675
        %3785 = vmatprep.subr.mxu0 %v3672
        %3786 = vmatpush1.msra.mxu0 %v3671
        %3787 = vmatprep.subr.mxu0 %v3668
        %3788 = vmatpush1.msra.mxu0 %v3667
        %3789 = vmatprep.subr.mxu0 %v3664
        %3790 = vmatpush1.msra.mxu0 %v3663
        %3791 = vmatprep.subr.mxu0 %v3660
        %3792 = vmatpush1.msra.mxu0 %v3659
        %3793 = vmatprep.subr.mxu0 %v3656
        %3794 = vmatpush1.msra.mxu0 %v3655
        %3795 = vmatprep.subr.mxu0 %v3652
        %3796 = vmatpush1.msra.mxu0 %v3651
        %3797 = vmatprep.subr.mxu0 %v3648
        %3798 = vmatpush1.msra.mxu0 %v3647
        %3799 = vmatprep.subr.mxu0 %v3644
        %3800 = vmatpush1.msra.mxu0 %v3643
        %3801 = vmatprep.subr.mxu0 %v3640
        %3802 = vmatpush1.msra.mxu0 %v3639
        %3803 = vmatprep.subr.mxu0 %v3636
        %3804 = vmatpush1.msra.mxu0 %v3635
        %3805 = vmatprep.subr.mxu0 %v3632
        %3806 = vmatpush1.msra.mxu0 %v3631
        %3807 = vmatprep.subr.mxu0 %v3628
        %3808 = vmatpush1.msra.mxu0 %v3627
        %3809 = vmatprep.subr.mxu0 %v3624
        %3810 = vmatpush1.msra.mxu0 %v3623
        %3811 = vmatprep.subr.mxu0 %v3620
        %3812 = vmatpush1.msra.mxu0 %v3619
        %3813 = vmatprep.subr.mxu0 0.0
        %3814 = vmatpush2.msra.mxu0 0.0
        %3815 = vmatprep.subr.mxu0 0.0
        %3816 = vmatpush2.msra.mxu0 0.0
        %3817 = vmatprep.subr.mxu0 0.0
        %3818 = vmatpush2.msra.mxu0 0.0
        %3819 = vmatprep.subr.mxu0 0.0
        %3820 = vmatpush2.msra.mxu0 0.0
        %3821 = vmatprep.subr.mxu0 0.0
        %3822 = vmatpush2.msra.mxu0 0.0
        %3823 = vmatprep.subr.mxu0 0.0
        %3824 = vmatpush2.msra.mxu0 0.0
        %3825 = vmatprep.subr.mxu0 0.0
        %3826 = vmatpush2.msra.mxu0 0.0
        %3827 = vmatprep.subr.mxu0 0.0
        %3828 = vmatpush2.msra.mxu0 0.0
        %3829 = vmatprep.subr.mxu0 0.0
        %3830 = vmatpush2.msra.mxu0 0.0
        %3831 = vmatprep.subr.mxu0 0.0
        %3832 = vmatpush2.msra.mxu0 0.0
        %3833 = vmatprep.subr.mxu0 0.0
        %3834 = vmatpush2.msra.mxu0 0.0
        %3835 = vmatprep.subr.mxu0 0.0
        %3836 = vmatpush2.msra.mxu0 0.0
        %3837 = vmatprep.subr.mxu0 0.0
        %3838 = vmatpush2.msra.mxu0 0.0
        %3839 = vmatprep.subr.mxu0 0.0
        %3840 = vmatpush2.msra.mxu0 0.0
        %3841 = vmatprep.subr.mxu0 0.0
        %3842 = vmatpush2.msra.mxu0 0.0
        %3843 = vmatprep.subr.mxu0 0.0
        %3844 = vmatpush2.msra.mxu0 0.0
        %3845 = vmatprep.mubr.f32.mxu0 0.0
        %3846 = vmatmul.mubr.f32.gmra.mxu0 %v3614
        %v3847 = vpop.f32.mrf.mxu0
        %v3848 = vadd.f32 %v3695, %v3847
        %v3849 = vpop.f32.mrf.mxu0
        %v3850 = vadd.f32 %v3699, %v3849
        %3851 = vmatprep.mubr.f32.mxu0 0.0
        %3852 = vmatmul.mubr.f32.gmra.mxu0 %v3615
        %v3853 = vpop.f32.mrf.mxu0
        %v3854 = vadd.f32 %v3695, %v3853
        %v3855 = vpop.f32.mrf.mxu0
        %v3856 = vadd.f32 %v3699, %v3855
        %3857 = vdwg.mxu0
        %v3858 = vmul.f32 %v3771, %v3771
        %v3859 = vmul.f32 %v3773, %v3773
        %v3860 = vmul.f32 %v3848, %v3848
        %v3861 = vmul.f32 %v3850, %v3850
        %v3862 = vmul.f32 %v3777, %v3777
        %v3863 = vmul.f32 %v3779, %v3779
        %v3864 = vmul.f32 %v3854, %v3854
        %v3865 = vmul.f32 %v3856, %v3856
        %v3866 = vmul.f32 %v3771, %v3858
        %v3867 = vmul.f32 %v3773, %v3859
        %v3868 = vmul.f32 %v3848, %v3860
        %v3869 = vmul.f32 %v3850, %v3861
        %v3870 = vmul.f32 %v3777, %v3862
        %v3871 = vmul.f32 %v3779, %v3863
        %v3872 = vmul.f32 %v3854, %v3864
        %v3873 = vmul.f32 %v3856, %v3865
        %v3874 = vmul.f32 %v3866, 0.044715
        %v3875 = vmul.f32 %v3867, 0.044715
        %v3876 = vmul.f32 %v3868, 0.044715
        %v3877 = vmul.f32 %v3869, 0.044715
        %v3878 = vmul.f32 %v3870, 0.044715
        %v3879 = vmul.f32 %v3871, 0.044715
        %v3880 = vmul.f32 %v3872, 0.044715
        %v3881 = vmul.f32 %v3873, 0.044715
        %v3882 = vadd.f32 %v3771, %v3874
        %v3883 = vadd.f32 %v3773, %v3875
        %v3884 = vadd.f32 %v3848, %v3876
        %v3885 = vadd.f32 %v3850, %v3877
        %v3886 = vadd.f32 %v3777, %v3878
        %v3887 = vadd.f32 %v3779, %v3879
        %v3888 = vadd.f32 %v3854, %v3880
        %v3889 = vadd.f32 %v3856, %v3881
        %v3890 = vmul.f32 %v3882, 0.7978846
        %v3891 = vmul.f32 %v3883, 0.7978846
        %v3892 = vmul.f32 %v3884, 0.7978846
        %v3893 = vmul.f32 %v3885, 0.7978846
        %v3894 = vmul.f32 %v3886, 0.7978846
        %v3895 = vmul.f32 %v3887, 0.7978846
        %v3896 = vmul.f32 %v3888, 0.7978846
        %v3897 = vmul.f32 %v3889, 0.7978846
        %v3898 = vtanh.pop %v3890
        %v3899 = vtanh.pop %v3891
        %v3900 = vtanh.pop %v3892
        %v3901 = vtanh.pop %v3893
        %v3902 = vtanh.pop %v3894
        %v3903 = vtanh.pop %v3895
        %v3904 = vtanh.pop %v3896
        %v3905 = vtanh.pop %v3897
        %v3906 = vadd.f32 %v3898, 1.0
        %v3907 = vadd.f32 %v3899, 1.0
        %v3908 = vadd.f32 %v3900, 1.0
        %v3909 = vadd.f32 %v3901, 1.0
        %v3910 = vadd.f32 %v3902, 1.0
        %v3911 = vadd.f32 %v3903, 1.0
        %v3912 = vadd.f32 %v3904, 1.0
        %v3913 = vadd.f32 %v3905, 1.0
        %v3914 = vmul.f32 %v3906, 0.5
        %v3915 = vmul.f32 %v3907, 0.5
        %v3916 = vmul.f32 %v3908, 0.5
        %v3917 = vmul.f32 %v3909, 0.5
        %v3918 = vmul.f32 %v3910, 0.5
        %v3919 = vmul.f32 %v3911, 0.5
        %v3920 = vmul.f32 %v3912, 0.5
        %v3921 = vmul.f32 %v3913, 0.5
        %v3922 = vmul.f32 %v3771, %v3914
        %v3923 = vmul.f32 %v3773, %v3915
        %v3924 = vmul.f32 %v3848, %v3916
        %v3925 = vmul.f32 %v3850, %v3917
        %v3926 = vmul.f32 %v3777, %v3918
        %v3927 = vmul.f32 %v3779, %v3919
        %v3928 = vmul.f32 %v3854, %v3920
        %v3929 = vmul.f32 %v3856, %v3921
        %s3930 = scalar_lea.vmem %s11, 512
        %v3931 = vld [vmem:[%s3930] sm:$0xff]
        %v3932 = vld [vmem:[%s3930 + $0x8] sm:$0xff]
        %v3933 = vld [vmem:[%s3930 + $0x10] sm:$0xff]
        %v3934 = vld [vmem:[%s3930 + $0x18] sm:$0xff]
        %v3935 = vld [vmem:[%s3930 + $0x20] sm:$0xff]
        %v3936 = vld [vmem:[%s3930 + $0x28] sm:$0xff]
        %v3937 = vld [vmem:[%s3930 + $0x30] sm:$0xff]
        %v3938 = vld [vmem:[%s3930 + $0x38] sm:$0xff]
        %v3939 = vld [vmem:[%s3930 + $0x40] sm:$0xff]
        %v3940 = vld [vmem:[%s3930 + $0x48] sm:$0xff]
        %v3941 = vld [vmem:[%s3930 + $0x50] sm:$0xff]
        %v3942 = vld [vmem:[%s3930 + $0x58] sm:$0xff]
        %v3943 = vld [vmem:[%s3930 + $0x60] sm:$0xff]
        %v3944 = vld [vmem:[%s3930 + $0x68] sm:$0xff]
        %v3945 = vld [vmem:[%s3930 + $0x70] sm:$0xff]
        %v3946 = vld [vmem:[%s3930 + $0x78] sm:$0xff]
        %v3947 = vld [vmem:[%s3930 + $0x80] sm:$0xff]
        %v3948 = vld [vmem:[%s3930 + $0x88] sm:$0xff]
        %v3949 = vld [vmem:[%s3930 + $0x90] sm:$0xff]
        %v3950 = vld [vmem:[%s3930 + $0x98] sm:$0xff]
        %v3951 = vld [vmem:[%s3930 + $0xa0] sm:$0xff]
        %v3952 = vld [vmem:[%s3930 + $0xa8] sm:$0xff]
        %v3953 = vld [vmem:[%s3930 + $0xb0] sm:$0xff]
        %v3954 = vld [vmem:[%s3930 + $0xb8] sm:$0xff]
        %v3955 = vld [vmem:[%s3930 + $0xc0] sm:$0xff]
        %v3956 = vld [vmem:[%s3930 + $0xc8] sm:$0xff]
        %v3957 = vld [vmem:[%s3930 + $0xd0] sm:$0xff]
        %v3958 = vld [vmem:[%s3930 + $0xd8] sm:$0xff]
        %v3959 = vld [vmem:[%s3930 + $0xe0] sm:$0xff]
        %v3960 = vld [vmem:[%s3930 + $0xe8] sm:$0xff]
        %v3961 = vld [vmem:[%s3930 + $0xf0] sm:$0xff]
        %v3962 = vld [vmem:[%s3930 + $0xf8] sm:$0xff]
        %v3963 = vld [vmem:[%s3930 + $0x100] sm:$0xff]
        %v3964 = vld [vmem:[%s3930 + $0x108] sm:$0xff]
        %v3965 = vld [vmem:[%s3930 + $0x110] sm:$0xff]
        %v3966 = vld [vmem:[%s3930 + $0x118] sm:$0xff]
        %v3967 = vld [vmem:[%s3930 + $0x120] sm:$0xff]
        %v3968 = vld [vmem:[%s3930 + $0x128] sm:$0xff]
        %v3969 = vld [vmem:[%s3930 + $0x130] sm:$0xff]
        %v3970 = vld [vmem:[%s3930 + $0x138] sm:$0xff]
        %v3971 = vld [vmem:[%s3930 + $0x140] sm:$0xff]
        %v3972 = vld [vmem:[%s3930 + $0x148] sm:$0xff]
        %v3973 = vld [vmem:[%s3930 + $0x150] sm:$0xff]
        %v3974 = vld [vmem:[%s3930 + $0x158] sm:$0xff]
        %v3975 = vld [vmem:[%s3930 + $0x160] sm:$0xff]
        %v3976 = vld [vmem:[%s3930 + $0x168] sm:$0xff]
        %v3977 = vld [vmem:[%s3930 + $0x170] sm:$0xff]
        %v3978 = vld [vmem:[%s3930 + $0x178] sm:$0xff]
        %v3979 = vld [vmem:[%s3930 + $0x180] sm:$0xff]
        %v3980 = vld [vmem:[%s3930 + $0x188] sm:$0xff]
        %v3981 = vld [vmem:[%s3930 + $0x190] sm:$0xff]
        %v3982 = vld [vmem:[%s3930 + $0x198] sm:$0xff]
        %v3983 = vld [vmem:[%s3930 + $0x1a0] sm:$0xff]
        %v3984 = vld [vmem:[%s3930 + $0x1a8] sm:$0xff]
        %v3985 = vld [vmem:[%s3930 + $0x1b0] sm:$0xff]
        %v3986 = vld [vmem:[%s3930 + $0x1b8] sm:$0xff]
        %v3987 = vld [vmem:[%s3930 + $0x1c0] sm:$0xff]
        %v3988 = vld [vmem:[%s3930 + $0x1c8] sm:$0xff]
        %v3989 = vld [vmem:[%s3930 + $0x1d0] sm:$0xff]
        %v3990 = vld [vmem:[%s3930 + $0x1d8] sm:$0xff]
        %v3991 = vld [vmem:[%s3930 + $0x1e0] sm:$0xff]
        %v3992 = vld [vmem:[%s3930 + $0x1e8] sm:$0xff]
        %v3993 = vld [vmem:[%s3930 + $0x1f0] sm:$0xff]
        %v3994 = vld [vmem:[%s3930 + $0x1f8] sm:$0xff]
        %3995 = vmatprep.subr.mxu0 0.0
        %3996 = vmatpush1.msra.mxu0 %v3946
        %3997 = vmatprep.subr.mxu0 0.0
        %3998 = vmatpush1.msra.mxu0 %v3945
        %3999 = vmatprep.subr.mxu0 0.0
        %4000 = vmatpush1.msra.mxu0 %v3944
        %4001 = vmatprep.subr.mxu0 0.0
        %4002 = vmatpush1.msra.mxu0 %v3943
        %4003 = vmatprep.subr.mxu0 0.0
        %4004 = vmatpush1.msra.mxu0 %v3942
        %4005 = vmatprep.subr.mxu0 0.0
        %4006 = vmatpush1.msra.mxu0 %v3941
        %4007 = vmatprep.subr.mxu0 0.0
        %4008 = vmatpush1.msra.mxu0 %v3940
        %4009 = vmatprep.subr.mxu0 0.0
        %4010 = vmatpush1.msra.mxu0 %v3939
        %4011 = vmatprep.subr.mxu0 0.0
        %4012 = vmatpush1.msra.mxu0 %v3938
        %4013 = vmatprep.subr.mxu0 0.0
        %4014 = vmatpush1.msra.mxu0 %v3937
        %4015 = vmatprep.subr.mxu0 0.0
        %4016 = vmatpush1.msra.mxu0 %v3936
        %4017 = vmatprep.subr.mxu0 0.0
        %4018 = vmatpush1.msra.mxu0 %v3935
        %4019 = vmatprep.subr.mxu0 0.0
        %4020 = vmatpush1.msra.mxu0 %v3934
        %4021 = vmatprep.subr.mxu0 0.0
        %4022 = vmatpush1.msra.mxu0 %v3933
        %4023 = vmatprep.subr.mxu0 0.0
        %4024 = vmatpush1.msra.mxu0 %v3932
        %4025 = vmatprep.subr.mxu0 0.0
        %4026 = vmatpush1.msra.mxu0 %v3931
        %4027 = vmatprep.subr.mxu0 0.0
        %4028 = vmatpush2.msra.mxu0 %v3962
        %4029 = vmatprep.subr.mxu0 0.0
        %4030 = vmatpush2.msra.mxu0 %v3961
        %4031 = vmatprep.subr.mxu0 0.0
        %4032 = vmatpush2.msra.mxu0 %v3960
        %4033 = vmatprep.subr.mxu0 0.0
        %4034 = vmatpush2.msra.mxu0 %v3959
        %4035 = vmatprep.subr.mxu0 0.0
        %4036 = vmatpush2.msra.mxu0 %v3958
        %4037 = vmatprep.subr.mxu0 0.0
        %4038 = vmatpush2.msra.mxu0 %v3957
        %4039 = vmatprep.subr.mxu0 0.0
        %4040 = vmatpush2.msra.mxu0 %v3956
        %4041 = vmatprep.subr.mxu0 0.0
        %4042 = vmatpush2.msra.mxu0 %v3955
        %4043 = vmatprep.subr.mxu0 0.0
        %4044 = vmatpush2.msra.mxu0 %v3954
        %4045 = vmatprep.subr.mxu0 0.0
        %4046 = vmatpush2.msra.mxu0 %v3953
        %4047 = vmatprep.subr.mxu0 0.0
        %4048 = vmatpush2.msra.mxu0 %v3952
        %4049 = vmatprep.subr.mxu0 0.0
        %4050 = vmatpush2.msra.mxu0 %v3951
        %4051 = vmatprep.subr.mxu0 0.0
        %4052 = vmatpush2.msra.mxu0 %v3950
        %4053 = vmatprep.subr.mxu0 0.0
        %4054 = vmatpush2.msra.mxu0 %v3949
        %4055 = vmatprep.subr.mxu0 0.0
        %4056 = vmatpush2.msra.mxu0 %v3948
        %4057 = vmatprep.subr.mxu0 0.0
        %4058 = vmatpush2.msra.mxu0 %v3947
        %4059 = vmatprep.mubr.f32.mxu0 %v3923
        %4060 = vmatmul.mubr.f32.gmra.mxu0 %v3922
        %v4061 = vpop.f32.mrf.mxu0
        %v4062 = vadd.f32 0.0, %v4061
        %v4063 = vpop.f32.mrf.mxu0
        %4064 = vmatprep.mubr.f32.mxu0 %v3927
        %4065 = vmatmul.mubr.f32.gmra.mxu0 %v3926
        %v4066 = vpop.f32.mrf.mxu0
        %v4067 = vadd.f32 0.0, %v4066
        %v4068 = vpop.f32.mrf.mxu0
        %4069 = vdwg.mxu0
        %4070 = vmatprep.subr.mxu0 0.0
        %4071 = vmatpush1.msra.mxu0 %v3978
        %4072 = vmatprep.subr.mxu0 0.0
        %4073 = vmatpush1.msra.mxu0 %v3977
        %4074 = vmatprep.subr.mxu0 0.0
        %4075 = vmatpush1.msra.mxu0 %v3976
        %4076 = vmatprep.subr.mxu0 0.0
        %4077 = vmatpush1.msra.mxu0 %v3975
        %4078 = vmatprep.subr.mxu0 0.0
        %4079 = vmatpush1.msra.mxu0 %v3974
        %4080 = vmatprep.subr.mxu0 0.0
        %4081 = vmatpush1.msra.mxu0 %v3973
        %4082 = vmatprep.subr.mxu0 0.0
        %4083 = vmatpush1.msra.mxu0 %v3972
        %4084 = vmatprep.subr.mxu0 0.0
        %4085 = vmatpush1.msra.mxu0 %v3971
        %4086 = vmatprep.subr.mxu0 0.0
        %4087 = vmatpush1.msra.mxu0 %v3970
        %4088 = vmatprep.subr.mxu0 0.0
        %4089 = vmatpush1.msra.mxu0 %v3969
        %4090 = vmatprep.subr.mxu0 0.0
        %4091 = vmatpush1.msra.mxu0 %v3968
        %4092 = vmatprep.subr.mxu0 0.0
        %4093 = vmatpush1.msra.mxu0 %v3967
        %4094 = vmatprep.subr.mxu0 0.0
        %4095 = vmatpush1.msra.mxu0 %v3966
        %4096 = vmatprep.subr.mxu0 0.0
        %4097 = vmatpush1.msra.mxu0 %v3965
        %4098 = vmatprep.subr.mxu0 0.0
        %4099 = vmatpush1.msra.mxu0 %v3964
        %4100 = vmatprep.subr.mxu0 0.0
        %4101 = vmatpush1.msra.mxu0 %v3963
        %4102 = vmatprep.subr.mxu0 0.0
        %4103 = vmatpush2.msra.mxu0 %v3994
        %4104 = vmatprep.subr.mxu0 0.0
        %4105 = vmatpush2.msra.mxu0 %v3993
        %4106 = vmatprep.subr.mxu0 0.0
        %4107 = vmatpush2.msra.mxu0 %v3992
        %4108 = vmatprep.subr.mxu0 0.0
        %4109 = vmatpush2.msra.mxu0 %v3991
        %4110 = vmatprep.subr.mxu0 0.0
        %4111 = vmatpush2.msra.mxu0 %v3990
        %4112 = vmatprep.subr.mxu0 0.0
        %4113 = vmatpush2.msra.mxu0 %v3989
        %4114 = vmatprep.subr.mxu0 0.0
        %4115 = vmatpush2.msra.mxu0 %v3988
        %4116 = vmatprep.subr.mxu0 0.0
        %4117 = vmatpush2.msra.mxu0 %v3987
        %4118 = vmatprep.subr.mxu0 0.0
        %4119 = vmatpush2.msra.mxu0 %v3986
        %4120 = vmatprep.subr.mxu0 0.0
        %4121 = vmatpush2.msra.mxu0 %v3985
        %4122 = vmatprep.subr.mxu0 0.0
        %4123 = vmatpush2.msra.mxu0 %v3984
        %4124 = vmatprep.subr.mxu0 0.0
        %4125 = vmatpush2.msra.mxu0 %v3983
        %4126 = vmatprep.subr.mxu0 0.0
        %4127 = vmatpush2.msra.mxu0 %v3982
        %4128 = vmatprep.subr.mxu0 0.0
        %4129 = vmatpush2.msra.mxu0 %v3981
        %4130 = vmatprep.subr.mxu0 0.0
        %4131 = vmatpush2.msra.mxu0 %v3980
        %4132 = vmatprep.subr.mxu0 0.0
        %4133 = vmatpush2.msra.mxu0 %v3979
        %4134 = vmatprep.mubr.f32.mxu0 %v3925
        %4135 = vmatmul.mubr.f32.gmra.mxu0 %v3924
        %v4136 = vpop.f32.mrf.mxu0
        %v4137 = vadd.f32 %v4062, %v4136
        %v4138 = vpop.f32.mrf.mxu0
        %4139 = vmatprep.mubr.f32.mxu0 %v3929
        %4140 = vmatmul.mubr.f32.gmra.mxu0 %v3928
        %v4141 = vpop.f32.mrf.mxu0
        %v4142 = vadd.f32 %v4067, %v4141
        %v4143 = vpop.f32.mrf.mxu0
        %4144 = vdwg.mxu0
        %v4145 = vadd.f32 %v3570, %v4137
        %v4146 = vadd.f32 %v3571, %v4142
        %s4147 = scalar_lea.vmem [#allocation7], 1
        %v4148 = vld [vmem:[%s4147] sm:$0x1]
        %v4150 = vlaneseq
        %v4151 = vshrl.u32 %v4150, 7
        %v4152 = vsub.s32 0, %v4151
        %v4153 = vrot.slane %v4148, %v4152
        %v4155 = vadd.f32 %v4145, %v4153
        %v4156 = vadd.f32 %v4146, %v4153
        %v4157 = vld [vmem:[%s13] sm:$0x1]
        %v4158 = vld [vmem:[%s14] sm:$0x1]
        %4159 = vadd.xlane.f32.xlu0 %v4155
        %v4160 = vpop.xlane.xlu0 %4159
        %v4161 = vsel %vm592, %v4156, 0.0
        %4162 = vadd.xlane.f32.xlu0 %v4161
        %v4163 = vpop.xlane.xlu0 %4162
        %v4164 = vmul.f32 %v4160, %v596
        %v4165 = vmul.f32 %v4163, %v596
        %v4166 = vsub.f32 %v4155, %v4164
        %v4167 = vsub.f32 %v4156, %v4165
        %v4168 = vmul.f32 %v4166, %v4166
        %v4169 = vmul.f32 %v4167, %v4167
        %4170 = vadd.xlane.f32.xlu0 %v4168
        %v4171 = vpop.xlane.xlu0 %4170
        %v4172 = vsel %vm592, %v4169, 0.0
        %4173 = vadd.xlane.f32.xlu0 %v4172
        %v4174 = vpop.xlane.xlu0 %4173
        %v4175 = vmul.f32 %v4171, %v596
        %v4176 = vmul.f32 %v4174, %v596
        %v4177 = vadd.f32 %v4175, 1e-06
        %v4178 = vadd.f32 %v4176, 1e-06
        %v4179 = vrsqrt.pop %v4177
        %v4180 = vrsqrt.pop %v4178
        %v4181 = vmul.f32 %v4166, %v4179
        %v4182 = vmul.f32 %v4167, %v4180
        %v4184 = vlaneseq
        %v4185 = vshrl.u32 %v4184, 7
        %v4186 = vsub.s32 0, %v4185
        %v4187 = vrot.slane %v4157, %v4186
        %v4189 = vmul.f32 %v4181, %v4187
        %v4190 = vmul.f32 %v4182, %v4187
        %v4192 = vlaneseq
        %v4193 = vshrl.u32 %v4192, 7
        %v4194 = vsub.s32 0, %v4193
        %v4195 = vrot.slane %v4158, %v4194
        %v4197 = vadd.f32 %v4189, %v4195
        %v4198 = vadd.f32 %v4190, %v4195
        %v4199 = vsel %vm592, %v4198, 0.0
        %v4200 = vadd.f32 %v4197, %v4199
        %v4201 = vrot.slane %v4200, 4
        %v4202 = vadd.f32 %v4200, %v4201
        %v4203 = vrot.slane %v4202, 2
        %v4204 = vadd.f32 %v4202, %v4203
        %v4205 = vrot.slane %v4204, 1
        %v4206 = vadd.f32 %v4204, %v4205
        %4207 = vst [vmem:[%s582] sm:$0x1] %v4197
        %v4208 = vsub.f32 %v4206, %v4197
        %v4209 = vmul.f32 %v4208, 0.125
        %4210 = vst [vmem:[%s585] sm:$0x1] %v4209
        %p4211 = scmp.lt.s32.totalorder %s31, 1
        %s4212 = scalar_select %p4211, %s31, 1
        %s4213 = scalar_lea.vmem %s15, %s4212
        %p4214 = scmp.lt.s32.totalorder %s31, 1
        %s4215 = scalar_select %p4214, %s31, 1
        %s4216 = scalar_lea.vmem %s16, %s4215
        // Predicated region
        $region97: #{model_forward.3} parent=79 // pred_check
          %p4217 = pneg %p369
        $region98: #{model_forward.3} parent=79 // pred_check_branch
          %4219 = sbr.rel (%p4217) target = $region100
        $region99: #{model_forward.3} parent=79 // pred_region
          _
        $region100: #{model_forward.3} parent=79 // pred_fallthru
          _
        // Predicated region
        $region101: #{model_forward.3} parent=79 // pred_check
          %p4220 = pneg %p395
        $region102: #{model_forward.3} parent=79 // pred_check_branch
          %4222 = sbr.rel (%p4220) target = $region104
        $region103: #{model_forward.3} parent=79 // pred_region
          _
        $region104: #{model_forward.3} parent=79 // pred_fallthru
          _
      $region80: #{model_forward.3} parent=5 // pred_fallthru
        _
      %p4223 = scmp.le.s32.totalorder 2, %s26
      // Predicated region
      $region105: #{model_forward.3} parent=5 // pred_check
        %p4224 = pneg %p4223
      $region106: #{model_forward.3} parent=5 // pred_check_branch
        %4226 = sbr.rel (%p4224) target = $region108
      $region107: #{model_forward.3} parent=5 // pred_region
        %s4227 = ssub.s32 %s26, 2
        // Predicated region
        $region109: #{model_forward.3} parent=107 // pred_check
          %p4228 = pneg %p375
        $region110: #{model_forward.3} parent=107 // pred_check_branch
          %4230 = sbr.rel (%p4228) target = $region112
        $region111: #{model_forward.3} parent=107 // pred_region
          %p4231 = scmp.lt.s32.totalorder %s32, 1
          %s4232 = scalar_select %p4231, %s32, 1
          %s4233 = scalar_lea.vmem %s15, %s4232
        $region112: #{model_forward.3} parent=107 // pred_fallthru
          _
        // Predicated region
        $region113: #{model_forward.3} parent=107 // pred_check
          %p4234 = pneg %p401
        $region114: #{model_forward.3} parent=107 // pred_check_branch
          %4236 = sbr.rel (%p4234) target = $region116
        $region115: #{model_forward.3} parent=107 // pred_region
          %p4237 = scmp.lt.s32.totalorder %s32, 1
          %s4238 = scalar_select %p4237, %s32, 1
          %s4239 = scalar_lea.vmem %s16, %s4238
        $region116: #{model_forward.3} parent=107 // pred_fallthru
          _
      $region108: #{model_forward.3} parent=5 // pred_fallthru
        _
    $region6: #{model_forward.3} parent=1 // loop_footer
      %s30 = sadd.s32 1, %s26
    $region7: #{model_forward.3} parent=1 // loop_footer_branch
      %25 = sbr.rel target = $region3
    $region8: #{model_forward.3} parent=1 // loop_exit
      _
    %4240 = vsyncpa [#allocation3], 1
    %s4241 = scalar_lea.sflag [#allocation3], 1
    %4242 = vsyncpa %s4241, 1
    %4243 = vsyncpa [#allocation5], 1
    %4244 = vsyncpa [#allocation8], 1

</llo_original>
